<compile_context>
chip_gen: v5e
topology: v5e:2x2
jax: 0.10.0
libtpu: 0.0.40
codegen_flags: <defaults>
</compile_context>

<pallas_src>
import math

import jax
import jax.numpy as jnp
from jax.experimental import pallas as pl
from jax.experimental.pallas import tpu as pltpu


# ----------------------------- configuration --------------------------------
class Config:
    vocab_size = 100
    hidden_size = 32
    num_attention_heads = 4
    intermediate_size = 64
    max_position_embeddings = 16
    num_hidden_layers = 2


# ------------------------------- kernel --------------------------------------
def _layernorm(x, gamma, beta, eps):
    mean = jnp.mean(x, axis=-1, keepdims=True)
    var = jnp.mean((x - mean) ** 2, axis=-1, keepdims=True)
    return (x - mean) * jax.lax.rsqrt(var + eps) * gamma + beta


def encoder_kernel(emb_ref,
                   embg_ref, embb_ref,
                   ln1g_ref, ln1b_ref,
                   wq_ref, bq_ref, wk_ref, bk_ref, wv_ref, bv_ref,
                   wo_ref, bo_ref,
                   ln2g_ref, ln2b_ref,
                   w1_ref, b1_ref, w2_ref, b2_ref,
                   o_ref):
    """Full encoder (embedding LN + all layers) for one batch element, all in VMEM."""
    num_layers = ln1g_ref.shape[0]
    num_heads = wq_ref.shape[1]

    x = emb_ref[0].astype(jnp.float32)                           # (S, D)
    x = _layernorm(x, embg_ref[...], embb_ref[...], 1e-12)

    for l in range(num_layers):                                  # static unroll (L=2)
        # --- multi-head self attention on layer_norm_1(x) ---
        h = _layernorm(x, ln1g_ref[l], ln1b_ref[l], 1e-5)        # (S, D)
        attn = bo_ref[l]                                         # (1, D), broadcasts over S
        for hi in range(num_heads):                              # heads indexed on leading dims
            qh = jnp.dot(h, wq_ref[l, hi],
                         preferred_element_type=jnp.float32) + bq_ref[l, hi]   # (S, hd)
            kh = jnp.dot(h, wk_ref[l, hi],
                         preferred_element_type=jnp.float32) + bk_ref[l, hi]
            vh = jnp.dot(h, wv_ref[l, hi],
                         preferred_element_type=jnp.float32) + bv_ref[l, hi]
            # scores: contract head_dim directly (no materialized kh.T);
            # 1/sqrt(head_dim) already folded into wq/bq on the host.
            scores = jax.lax.dot_general(qh, kh, (((1,), (1,)), ((), ())),
                                         preferred_element_type=jnp.float32)   # (S, S)
            scores = scores - jnp.max(scores, axis=-1, keepdims=True)
            p = jnp.exp(scores)
            w = p * pl.reciprocal(jnp.sum(p, axis=-1, keepdims=True), approx=True)
            ctx = jnp.dot(w, vh, preferred_element_type=jnp.float32)            # (S, hd)
            attn = attn + jnp.dot(ctx, wo_ref[l, hi],
                                  preferred_element_type=jnp.float32)           # (S, D)
        x = x + attn                                             # residual 1

        # --- feed forward on layer_norm_2(x) ---
        h2 = _layernorm(x, ln2g_ref[l], ln2b_ref[l], 1e-5)
        ff = jnp.dot(h2, w1_ref[l], preferred_element_type=jnp.float32) + b1_ref[l]
        ff = 0.5 * ff * (1.0 + jax.lax.erf(ff * (1.0 / math.sqrt(2.0))))  # exact GELU
        ff = jnp.dot(ff, w2_ref[l], preferred_element_type=jnp.float32) + b2_ref[l]
        x = x + ff                                               # residual 2

    o_ref[0] = x.astype(o_ref.dtype)


# ------------------------------ wrapper ---------------------------------------
def _full_spec(shape):
    zeros = (0,) * len(shape)
    return pl.BlockSpec(shape, lambda b: zeros)


def transformer_encoder(input_ids, params, cfg):
    B, S = input_ids.shape
    D = cfg.hidden_size
    H = cfg.num_attention_heads
    hd = D // H
    I = cfg.intermediate_size
    L = cfg.num_hidden_layers

    # Embedding gather + position add stay in plain JAX (table lookup is glue);
    # the LayerNorm and everything after runs inside the fused kernel.
    tok = jnp.take(params["token_emb"], input_ids, axis=0)       # (B, S, D)
    pos = params["pos_emb"][:S][None, :, :]                      # (1, S, D)
    emb = tok + pos

    # --- host-side weight prep: stack layers, split heads on leading dims, fold scale ---
    def stack(name):
        return jnp.stack([lp[name] for lp in params["layers"]])

    scale = 1.0 / math.sqrt(hd)
    wq = stack("wq").reshape(L, D, H, hd).transpose(0, 2, 1, 3) * scale   # (L, H, D, hd)
    wk = stack("wk").reshape(L, D, H, hd).transpose(0, 2, 1, 3)
    wv = stack("wv").reshape(L, D, H, hd).transpose(0, 2, 1, 3)
    bq = stack("bq").reshape(L, H, 1, hd) * scale
    bk = stack("bk").reshape(L, H, 1, hd)
    bv = stack("bv").reshape(L, H, 1, hd)
    wo = stack("wo").reshape(L, H, hd, D)                                  # (L, H, hd, D)
    bo = stack("bo").reshape(L, 1, D)
    ln1g = stack("ln1_g").reshape(L, 1, D)
    ln1b = stack("ln1_b").reshape(L, 1, D)
    ln2g = stack("ln2_g").reshape(L, 1, D)
    ln2b = stack("ln2_b").reshape(L, 1, D)
    w1 = stack("w1")                                                       # (L, D, I)
    b1 = stack("b1").reshape(L, 1, I)
    w2 = stack("w2")                                                       # (L, I, D)
    b2 = stack("b2").reshape(L, 1, D)
    embg = params["emb_ln_g"].reshape(1, D)
    embb = params["emb_ln_b"].reshape(1, D)

    ins = (emb, embg, embb, ln1g, ln1b, wq, bq, wk, bk, wv, bv, wo, bo,
           ln2g, ln2b, w1, b1, w2, b2)
    in_specs = [pl.BlockSpec((1, S, D), lambda b: (b, 0, 0))] + \
               [_full_spec(a.shape) for a in ins[1:]]

    flops = int(B * L * (8 * S * D * D + 4 * H * S * S * hd + 4 * S * D * I))
    transcendentals = int(B * L * (H * S * S + S * I))
    bytes_accessed = int(sum(a.size * a.dtype.itemsize for a in ins) + B * S * D * 4)

    return pl.pallas_call(
        encoder_kernel,
        grid=(B,),
        in_specs=in_specs,
        out_specs=pl.BlockSpec((1, S, D), lambda b: (b, 0, 0)),
        out_shape=jax.ShapeDtypeStruct((B, S, D), emb.dtype),
        compiler_params=pltpu.CompilerParams(dimension_semantics=("parallel",)),
        cost_estimate=pl.CostEstimate(flops=flops,
                                      transcendentals=transcendentals,
                                      bytes_accessed=bytes_accessed),
    )(*ins)


# ---------------------------- reference (pure JAX) ----------------------------
def reference_encoder(input_ids, params, cfg):
    D = cfg.hidden_size
    H = cfg.num_attention_heads
    hd = D // H
    tok = jnp.take(params["token_emb"], input_ids, axis=0)
    pos = params["pos_emb"][:input_ids.shape[1]][None]
    x = _layernorm(tok + pos, params["emb_ln_g"], params["emb_ln_b"], 1e-12)
    for p in params["layers"]:
        h = _layernorm(x, p["ln1_g"], p["ln1_b"], 1e-5)
        q = h @ p["wq"] + p["bq"]
        k = h @ p["wk"] + p["bk"]
        v = h @ p["wv"] + p["bv"]
        outs = []
        for i in range(H):
            qh, kh, vh = (t[..., i * hd:(i + 1) * hd] for t in (q, k, v))
            s = jnp.einsum("bqd,bkd->bqk", qh, kh) / math.sqrt(hd)
            w = jax.nn.softmax(s, axis=-1)
            outs.append(jnp.einsum("bqk,bkd->bqd", w, vh))
        attn = jnp.concatenate(outs, axis=-1) @ p["wo"] + p["bo"]
        x = x + attn
        h2 = _layernorm(x, p["ln2_g"], p["ln2_b"], 1e-5)
        ff = h2 @ p["w1"] + p["b1"]
        ff = 0.5 * ff * (1.0 + jax.lax.erf(ff / math.sqrt(2.0)))
        ff = ff @ p["w2"] + p["b2"]
        x = x + ff
    return x


# ------------------------------ param init -----------------------------------
def init_params(cfg, key):
    D, I = cfg.hidden_size, cfg.intermediate_size
    keys = jax.random.split(key, 4 + 8 * cfg.num_hidden_layers)
    ki = iter(range(len(keys)))

    def rnd(shape, scale=0.02):
        return scale * jax.random.normal(keys[next(ki)], shape, jnp.float32)

    params = {
        "token_emb": rnd((cfg.vocab_size, D)),
        "pos_emb": rnd((cfg.max_position_embeddings, D)),
        "emb_ln_g": jnp.ones((D,), jnp.float32),
        "emb_ln_b": jnp.zeros((D,), jnp.float32),
        "layers": [],
    }
    for _ in range(cfg.num_hidden_layers):
        params["layers"].append({
            "ln1_g": jnp.ones((D,), jnp.float32), "ln1_b": jnp.zeros((D,), jnp.float32),
            "wq": rnd((D, D)), "bq": jnp.zeros((D,), jnp.float32),
            "wk": rnd((D, D)), "bk": jnp.zeros((D,), jnp.float32),
            "wv": rnd((D, D)), "bv": jnp.zeros((D,), jnp.float32),
            "wo": rnd((D, D)), "bo": jnp.zeros((D,), jnp.float32),
            "ln2_g": jnp.ones((D,), jnp.float32), "ln2_b": jnp.zeros((D,), jnp.float32),
            "w1": rnd((D, I)), "b1": jnp.zeros((I,), jnp.float32),
            "w2": rnd((I, D)), "b2": jnp.zeros((D,), jnp.float32),
        })
    return params


# --------------------------------- main ---------------------------------------
if __name__ == "__main__":
    cfg = Config()
    key = jax.random.PRNGKey(0)
    kp, kx = jax.random.split(key)
    params = init_params(cfg, kp)

    B, S = 2, 8
    input_ids = jax.random.randint(kx, (B, S), 0, cfg.vocab_size, dtype=jnp.int32)

    # TODO(synk): dropout layers are identity (inference mode), matching module.eval().
    out = transformer_encoder(input_ids, params, cfg)
    out = jax.block_until_ready(out)

    ref = reference_encoder(input_ids, params, cfg)
    assert out.shape == (B, S, cfg.hidden_size)
    assert jnp.allclose(out, ref, atol=1e-4, rtol=1e-4), "mismatch vs JAX reference"

    print("KERNEL_OK")
</pallas_src>

<mosaic_0001>
module attributes {stable_mosaic.version = 11 : i64} {
  func.func @encoder_kernel(%arg0: i32, %arg1: memref<1x8x32xf32, #tpu.memory_space<vmem>>, %arg2: memref<1x32xf32, #tpu.memory_space<vmem>>, %arg3: memref<1x32xf32, #tpu.memory_space<vmem>>, %arg4: memref<2x1x32xf32, #tpu.memory_space<vmem>>, %arg5: memref<2x1x32xf32, #tpu.memory_space<vmem>>, %arg6: memref<2x4x32x8xf32, #tpu.memory_space<vmem>>, %arg7: memref<2x4x1x8xf32, #tpu.memory_space<vmem>>, %arg8: memref<2x4x32x8xf32, #tpu.memory_space<vmem>>, %arg9: memref<2x4x1x8xf32, #tpu.memory_space<vmem>>, %arg10: memref<2x4x32x8xf32, #tpu.memory_space<vmem>>, %arg11: memref<2x4x1x8xf32, #tpu.memory_space<vmem>>, %arg12: memref<2x4x8x32xf32, #tpu.memory_space<vmem>>, %arg13: memref<2x1x32xf32, #tpu.memory_space<vmem>>, %arg14: memref<2x1x32xf32, #tpu.memory_space<vmem>>, %arg15: memref<2x1x32xf32, #tpu.memory_space<vmem>>, %arg16: memref<2x32x64xf32, #tpu.memory_space<vmem>>, %arg17: memref<2x1x64xf32, #tpu.memory_space<vmem>>, %arg18: memref<2x64x32xf32, #tpu.memory_space<vmem>>, %arg19: memref<2x1x32xf32, #tpu.memory_space<vmem>>, %arg20: memref<1x8x32xf32, #tpu.memory_space<vmem>>) attributes {dimension_semantics = [#tpu.dimension_semantics<parallel>], iteration_bounds = array<i64: 2>, scalar_prefetch = 0 : i64, scratch_operands = 0 : i64, tpu.core_type = #tpu.core_type<tc>, window_params = [{transform_indices = @transform_0, window_bounds = array<i64: 1, 8, 32>}, {pipeline_mode = #tpu.pipeline_mode<synchronous>, transform_indices = @transform_1, window_bounds = array<i64: 1, 32>}, {pipeline_mode = #tpu.pipeline_mode<synchronous>, transform_indices = @transform_2, window_bounds = array<i64: 1, 32>}, {pipeline_mode = #tpu.pipeline_mode<synchronous>, transform_indices = @transform_3, window_bounds = array<i64: 2, 1, 32>}, {pipeline_mode = #tpu.pipeline_mode<synchronous>, transform_indices = @transform_4, window_bounds = array<i64: 2, 1, 32>}, {pipeline_mode = #tpu.pipeline_mode<synchronous>, transform_indices = @transform_5, window_bounds = array<i64: 2, 4, 32, 8>}, {pipeline_mode = #tpu.pipeline_mode<synchronous>, transform_indices = @transform_6, window_bounds = array<i64: 2, 4, 1, 8>}, {pipeline_mode = #tpu.pipeline_mode<synchronous>, transform_indices = @transform_7, window_bounds = array<i64: 2, 4, 32, 8>}, {pipeline_mode = #tpu.pipeline_mode<synchronous>, transform_indices = @transform_8, window_bounds = array<i64: 2, 4, 1, 8>}, {pipeline_mode = #tpu.pipeline_mode<synchronous>, transform_indices = @transform_9, window_bounds = array<i64: 2, 4, 32, 8>}, {pipeline_mode = #tpu.pipeline_mode<synchronous>, transform_indices = @transform_10, window_bounds = array<i64: 2, 4, 1, 8>}, {pipeline_mode = #tpu.pipeline_mode<synchronous>, transform_indices = @transform_11, window_bounds = array<i64: 2, 4, 8, 32>}, {pipeline_mode = #tpu.pipeline_mode<synchronous>, transform_indices = @transform_12, window_bounds = array<i64: 2, 1, 32>}, {pipeline_mode = #tpu.pipeline_mode<synchronous>, transform_indices = @transform_13, window_bounds = array<i64: 2, 1, 32>}, {pipeline_mode = #tpu.pipeline_mode<synchronous>, transform_indices = @transform_14, window_bounds = array<i64: 2, 1, 32>}, {pipeline_mode = #tpu.pipeline_mode<synchronous>, transform_indices = @transform_15, window_bounds = array<i64: 2, 32, 64>}, {pipeline_mode = #tpu.pipeline_mode<synchronous>, transform_indices = @transform_16, window_bounds = array<i64: 2, 1, 64>}, {pipeline_mode = #tpu.pipeline_mode<synchronous>, transform_indices = @transform_17, window_bounds = array<i64: 2, 64, 32>}, {pipeline_mode = #tpu.pipeline_mode<synchronous>, transform_indices = @transform_18, window_bounds = array<i64: 2, 1, 32>}, {transform_indices = @transform_19, window_bounds = array<i64: 1, 8, 32>}]} {
    %c0 = arith.constant 0 : index
    %c0_0 = arith.constant 0 : index
    %c0_1 = arith.constant 0 : index
    %0 = vector.load %arg1[%c0, %c0_0, %c0_1] : memref<1x8x32xf32, #tpu.memory_space<vmem>>, vector<1x8x32xf32>
    %1 = vector.shape_cast %0 : vector<1x8x32xf32> to vector<8x32xf32>
    %c0_2 = arith.constant 0 : index
    %c0_3 = arith.constant 0 : index
    %2 = vector.load %arg2[%c0_2, %c0_3] : memref<1x32xf32, #tpu.memory_space<vmem>>, vector<1x32xf32>
    %c0_4 = arith.constant 0 : index
    %c0_5 = arith.constant 0 : index
    %3 = vector.load %arg3[%c0_4, %c0_5] : memref<1x32xf32, #tpu.memory_space<vmem>>, vector<1x32xf32>
    %cst = arith.constant dense<0.000000e+00> : vector<8xf32>
    %4 = vector.multi_reduction <add>, %1, %cst [1] : vector<8x32xf32> to vector<8xf32>
    %5 = vector.shape_cast %4 : vector<8xf32> to vector<8x1xf32>
    %cst_6 = arith.constant 3.200000e+01 : f32
    %6 = vector.broadcast %cst_6 : f32 to vector<8x1xf32>
    %7 = arith.divf %5, %6 : vector<8x1xf32>
    %8 = vector.broadcast %7 : vector<8x1xf32> to vector<8x32xf32>
    %9 = arith.subf %1, %8 : vector<8x32xf32>
    %10 = arith.mulf %9, %9 : vector<8x32xf32>
    %cst_7 = arith.constant dense<0.000000e+00> : vector<8xf32>
    %11 = vector.multi_reduction <add>, %10, %cst_7 [1] : vector<8x32xf32> to vector<8xf32>
    %12 = vector.shape_cast %11 : vector<8xf32> to vector<8x1xf32>
    %cst_8 = arith.constant 3.200000e+01 : f32
    %13 = vector.broadcast %cst_8 : f32 to vector<8x1xf32>
    %14 = arith.divf %12, %13 : vector<8x1xf32>
    %15 = vector.broadcast %7 : vector<8x1xf32> to vector<8x32xf32>
    %16 = arith.subf %1, %15 : vector<8x32xf32>
    %cst_9 = arith.constant 9.99999996E-13 : f32
    %17 = vector.broadcast %cst_9 : f32 to vector<8x1xf32>
    %18 = arith.addf %14, %17 : vector<8x1xf32>
    %19 = math.rsqrt %18 : vector<8x1xf32>
    %20 = vector.broadcast %19 : vector<8x1xf32> to vector<8x32xf32>
    %21 = arith.mulf %16, %20 : vector<8x32xf32>
    %22 = vector.broadcast %2 : vector<1x32xf32> to vector<8x32xf32>
    %23 = arith.mulf %21, %22 : vector<8x32xf32>
    %24 = vector.broadcast %3 : vector<1x32xf32> to vector<8x32xf32>
    %25 = arith.addf %23, %24 : vector<8x32xf32>
    %c0_10 = arith.constant 0 : index
    %c0_11 = arith.constant 0 : index
    %c0_12 = arith.constant 0 : index
    %26 = vector.load %arg4[%c0_10, %c0_11, %c0_12] : memref<2x1x32xf32, #tpu.memory_space<vmem>>, vector<1x1x32xf32>
    %27 = vector.shape_cast %26 : vector<1x1x32xf32> to vector<1x32xf32>
    %c0_13 = arith.constant 0 : index
    %c0_14 = arith.constant 0 : index
    %c0_15 = arith.constant 0 : index
    %28 = vector.load %arg5[%c0_13, %c0_14, %c0_15] : memref<2x1x32xf32, #tpu.memory_space<vmem>>, vector<1x1x32xf32>
    %29 = vector.shape_cast %28 : vector<1x1x32xf32> to vector<1x32xf32>
    %cst_16 = arith.constant dense<0.000000e+00> : vector<8xf32>
    %30 = vector.multi_reduction <add>, %25, %cst_16 [1] : vector<8x32xf32> to vector<8xf32>
    %31 = vector.shape_cast %30 : vector<8xf32> to vector<8x1xf32>
    %cst_17 = arith.constant 3.200000e+01 : f32
    %32 = vector.broadcast %cst_17 : f32 to vector<8x1xf32>
    %33 = arith.divf %31, %32 : vector<8x1xf32>
    %34 = vector.broadcast %33 : vector<8x1xf32> to vector<8x32xf32>
    %35 = arith.subf %25, %34 : vector<8x32xf32>
    %36 = arith.mulf %35, %35 : vector<8x32xf32>
    %cst_18 = arith.constant dense<0.000000e+00> : vector<8xf32>
    %37 = vector.multi_reduction <add>, %36, %cst_18 [1] : vector<8x32xf32> to vector<8xf32>
    %38 = vector.shape_cast %37 : vector<8xf32> to vector<8x1xf32>
    %cst_19 = arith.constant 3.200000e+01 : f32
    %39 = vector.broadcast %cst_19 : f32 to vector<8x1xf32>
    %40 = arith.divf %38, %39 : vector<8x1xf32>
    %41 = vector.broadcast %33 : vector<8x1xf32> to vector<8x32xf32>
    %42 = arith.subf %25, %41 : vector<8x32xf32>
    %cst_20 = arith.constant 9.99999974E-6 : f32
    %43 = vector.broadcast %cst_20 : f32 to vector<8x1xf32>
    %44 = arith.addf %40, %43 : vector<8x1xf32>
    %45 = math.rsqrt %44 : vector<8x1xf32>
    %46 = vector.broadcast %45 : vector<8x1xf32> to vector<8x32xf32>
    %47 = arith.mulf %42, %46 : vector<8x32xf32>
    %48 = vector.broadcast %27 : vector<1x32xf32> to vector<8x32xf32>
    %49 = arith.mulf %47, %48 : vector<8x32xf32>
    %50 = vector.broadcast %29 : vector<1x32xf32> to vector<8x32xf32>
    %51 = arith.addf %49, %50 : vector<8x32xf32>
    %c0_21 = arith.constant 0 : index
    %c0_22 = arith.constant 0 : index
    %c0_23 = arith.constant 0 : index
    %52 = vector.load %arg13[%c0_21, %c0_22, %c0_23] : memref<2x1x32xf32, #tpu.memory_space<vmem>>, vector<1x1x32xf32>
    %53 = vector.shape_cast %52 : vector<1x1x32xf32> to vector<1x32xf32>
    %c0_24 = arith.constant 0 : index
    %c0_25 = arith.constant 0 : index
    %c0_26 = arith.constant 0 : index
    %c0_27 = arith.constant 0 : index
    %54 = vector.load %arg6[%c0_24, %c0_25, %c0_26, %c0_27] : memref<2x4x32x8xf32, #tpu.memory_space<vmem>>, vector<1x1x32x8xf32>
    %55 = vector.shape_cast %54 : vector<1x1x32x8xf32> to vector<32x8xf32>
    %cst_28 = arith.constant dense<0.000000e+00> : vector<8x8xf32>
    %56 = tpu.matmul %51, %55, %cst_28 {dimension_numbers = #tpu.dot_dimension_numbers<[1], [0], [0], [1], [0, 0, 1, 1], [], []>} : vector<8x32xf32>, vector<32x8xf32>, vector<8x8xf32> -> vector<8x8xf32>
    %c0_29 = arith.constant 0 : index
    %c0_30 = arith.constant 0 : index
    %c0_31 = arith.constant 0 : index
    %c0_32 = arith.constant 0 : index
    %57 = vector.load %arg7[%c0_29, %c0_30, %c0_31, %c0_32] : memref<2x4x1x8xf32, #tpu.memory_space<vmem>>, vector<1x1x1x8xf32>
    %58 = vector.shape_cast %57 : vector<1x1x1x8xf32> to vector<1x8xf32>
    %59 = vector.broadcast %58 : vector<1x8xf32> to vector<8x8xf32>
    %60 = arith.addf %56, %59 : vector<8x8xf32>
    %c0_33 = arith.constant 0 : index
    %c0_34 = arith.constant 0 : index
    %c0_35 = arith.constant 0 : index
    %c0_36 = arith.constant 0 : index
    %61 = vector.load %arg8[%c0_33, %c0_34, %c0_35, %c0_36] : memref<2x4x32x8xf32, #tpu.memory_space<vmem>>, vector<1x1x32x8xf32>
    %62 = vector.shape_cast %61 : vector<1x1x32x8xf32> to vector<32x8xf32>
    %cst_37 = arith.constant dense<0.000000e+00> : vector<8x8xf32>
    %63 = tpu.matmul %51, %62, %cst_37 {dimension_numbers = #tpu.dot_dimension_numbers<[1], [0], [0], [1], [0, 0, 1, 1], [], []>} : vector<8x32xf32>, vector<32x8xf32>, vector<8x8xf32> -> vector<8x8xf32>
    %c0_38 = arith.constant 0 : index
    %c0_39 = arith.constant 0 : index
    %c0_40 = arith.constant 0 : index
    %c0_41 = arith.constant 0 : index
    %64 = vector.load %arg9[%c0_38, %c0_39, %c0_40, %c0_41] : memref<2x4x1x8xf32, #tpu.memory_space<vmem>>, vector<1x1x1x8xf32>
    %65 = vector.shape_cast %64 : vector<1x1x1x8xf32> to vector<1x8xf32>
    %66 = vector.broadcast %65 : vector<1x8xf32> to vector<8x8xf32>
    %67 = arith.addf %63, %66 : vector<8x8xf32>
    %c0_42 = arith.constant 0 : index
    %c0_43 = arith.constant 0 : index
    %c0_44 = arith.constant 0 : index
    %c0_45 = arith.constant 0 : index
    %68 = vector.load %arg10[%c0_42, %c0_43, %c0_44, %c0_45] : memref<2x4x32x8xf32, #tpu.memory_space<vmem>>, vector<1x1x32x8xf32>
    %69 = vector.shape_cast %68 : vector<1x1x32x8xf32> to vector<32x8xf32>
    %cst_46 = arith.constant dense<0.000000e+00> : vector<8x8xf32>
    %70 = tpu.matmul %51, %69, %cst_46 {dimension_numbers = #tpu.dot_dimension_numbers<[1], [0], [0], [1], [0, 0, 1, 1], [], []>} : vector<8x32xf32>, vector<32x8xf32>, vector<8x8xf32> -> vector<8x8xf32>
    %c0_47 = arith.constant 0 : index
    %c0_48 = arith.constant 0 : index
    %c0_49 = arith.constant 0 : index
    %c0_50 = arith.constant 0 : index
    %71 = vector.load %arg11[%c0_47, %c0_48, %c0_49, %c0_50] : memref<2x4x1x8xf32, #tpu.memory_space<vmem>>, vector<1x1x1x8xf32>
    %72 = vector.shape_cast %71 : vector<1x1x1x8xf32> to vector<1x8xf32>
    %73 = vector.broadcast %72 : vector<1x8xf32> to vector<8x8xf32>
    %74 = arith.addf %70, %73 : vector<8x8xf32>
    %cst_51 = arith.constant dense<0.000000e+00> : vector<8x8xf32>
    %75 = tpu.matmul %60, %67, %cst_51 {dimension_numbers = #tpu.dot_dimension_numbers<[1], [1], [0], [0], [0, 0, 1, 0], [], []>} : vector<8x8xf32>, vector<8x8xf32>, vector<8x8xf32> -> vector<8x8xf32>
    %cst_52 = arith.constant dense<0xFF800000> : vector<8xf32>
    %76 = vector.multi_reduction <maximumf>, %75, %cst_52 [1] : vector<8x8xf32> to vector<8xf32>
    %77 = vector.shape_cast %76 : vector<8xf32> to vector<8x1xf32>
    %78 = vector.broadcast %77 : vector<8x1xf32> to vector<8x8xf32>
    %79 = arith.subf %75, %78 : vector<8x8xf32>
    %80 = math.exp %79 : vector<8x8xf32>
    %cst_53 = arith.constant dense<0.000000e+00> : vector<8xf32>
    %81 = vector.multi_reduction <add>, %80, %cst_53 [1] : vector<8x8xf32> to vector<8xf32>
    %82 = vector.shape_cast %81 : vector<8xf32> to vector<8x1xf32>
    %83 = tpu.reciprocal %82 {approx = true} : vector<8x1xf32> -> vector<8x1xf32>
    %84 = vector.broadcast %83 : vector<8x1xf32> to vector<8x8xf32>
    %85 = arith.mulf %80, %84 : vector<8x8xf32>
    %cst_54 = arith.constant dense<0.000000e+00> : vector<8x8xf32>
    %86 = tpu.matmul %85, %74, %cst_54 {dimension_numbers = #tpu.dot_dimension_numbers<[1], [0], [0], [1], [0, 0, 1, 1], [], []>} : vector<8x8xf32>, vector<8x8xf32>, vector<8x8xf32> -> vector<8x8xf32>
    %c0_55 = arith.constant 0 : index
    %c0_56 = arith.constant 0 : index
    %c0_57 = arith.constant 0 : index
    %c0_58 = arith.constant 0 : index
    %87 = vector.load %arg12[%c0_55, %c0_56, %c0_57, %c0_58] : memref<2x4x8x32xf32, #tpu.memory_space<vmem>>, vector<1x1x8x32xf32>
    %88 = vector.shape_cast %87 : vector<1x1x8x32xf32> to vector<8x32xf32>
    %cst_59 = arith.constant dense<0.000000e+00> : vector<8x32xf32>
    %89 = tpu.matmul %86, %88, %cst_59 {dimension_numbers = #tpu.dot_dimension_numbers<[1], [0], [0], [1], [0, 0, 1, 1], [], []>} : vector<8x8xf32>, vector<8x32xf32>, vector<8x32xf32> -> vector<8x32xf32>
    %90 = vector.broadcast %53 : vector<1x32xf32> to vector<8x32xf32>
    %91 = arith.addf %90, %89 : vector<8x32xf32>
    %c0_60 = arith.constant 0 : index
    %c1 = arith.constant 1 : index
    %c0_61 = arith.constant 0 : index
    %c0_62 = arith.constant 0 : index
    %92 = vector.load %arg6[%c0_60, %c1, %c0_61, %c0_62] : memref<2x4x32x8xf32, #tpu.memory_space<vmem>>, vector<1x1x32x8xf32>
    %93 = vector.shape_cast %92 : vector<1x1x32x8xf32> to vector<32x8xf32>
    %cst_63 = arith.constant dense<0.000000e+00> : vector<8x8xf32>
    %94 = tpu.matmul %51, %93, %cst_63 {dimension_numbers = #tpu.dot_dimension_numbers<[1], [0], [0], [1], [0, 0, 1, 1], [], []>} : vector<8x32xf32>, vector<32x8xf32>, vector<8x8xf32> -> vector<8x8xf32>
    %c0_64 = arith.constant 0 : index
    %c1_65 = arith.constant 1 : index
    %c0_66 = arith.constant 0 : index
    %c0_67 = arith.constant 0 : index
    %95 = vector.load %arg7[%c0_64, %c1_65, %c0_66, %c0_67] : memref<2x4x1x8xf32, #tpu.memory_space<vmem>>, vector<1x1x1x8xf32>
    %96 = vector.shape_cast %95 : vector<1x1x1x8xf32> to vector<1x8xf32>
    %97 = vector.broadcast %96 : vector<1x8xf32> to vector<8x8xf32>
    %98 = arith.addf %94, %97 : vector<8x8xf32>
    %c0_68 = arith.constant 0 : index
    %c1_69 = arith.constant 1 : index
    %c0_70 = arith.constant 0 : index
    %c0_71 = arith.constant 0 : index
    %99 = vector.load %arg8[%c0_68, %c1_69, %c0_70, %c0_71] : memref<2x4x32x8xf32, #tpu.memory_space<vmem>>, vector<1x1x32x8xf32>
    %100 = vector.shape_cast %99 : vector<1x1x32x8xf32> to vector<32x8xf32>
    %cst_72 = arith.constant dense<0.000000e+00> : vector<8x8xf32>
    %101 = tpu.matmul %51, %100, %cst_72 {dimension_numbers = #tpu.dot_dimension_numbers<[1], [0], [0], [1], [0, 0, 1, 1], [], []>} : vector<8x32xf32>, vector<32x8xf32>, vector<8x8xf32> -> vector<8x8xf32>
    %c0_73 = arith.constant 0 : index
    %c1_74 = arith.constant 1 : index
    %c0_75 = arith.constant 0 : index
    %c0_76 = arith.constant 0 : index
    %102 = vector.load %arg9[%c0_73, %c1_74, %c0_75, %c0_76] : memref<2x4x1x8xf32, #tpu.memory_space<vmem>>, vector<1x1x1x8xf32>
    %103 = vector.shape_cast %102 : vector<1x1x1x8xf32> to vector<1x8xf32>
    %104 = vector.broadcast %103 : vector<1x8xf32> to vector<8x8xf32>
    %105 = arith.addf %101, %104 : vector<8x8xf32>
    %c0_77 = arith.constant 0 : index
    %c1_78 = arith.constant 1 : index
    %c0_79 = arith.constant 0 : index
    %c0_80 = arith.constant 0 : index
    %106 = vector.load %arg10[%c0_77, %c1_78, %c0_79, %c0_80] : memref<2x4x32x8xf32, #tpu.memory_space<vmem>>, vector<1x1x32x8xf32>
    %107 = vector.shape_cast %106 : vector<1x1x32x8xf32> to vector<32x8xf32>
    %cst_81 = arith.constant dense<0.000000e+00> : vector<8x8xf32>
    %108 = tpu.matmul %51, %107, %cst_81 {dimension_numbers = #tpu.dot_dimension_numbers<[1], [0], [0], [1], [0, 0, 1, 1], [], []>} : vector<8x32xf32>, vector<32x8xf32>, vector<8x8xf32> -> vector<8x8xf32>
    %c0_82 = arith.constant 0 : index
    %c1_83 = arith.constant 1 : index
    %c0_84 = arith.constant 0 : index
    %c0_85 = arith.constant 0 : index
    %109 = vector.load %arg11[%c0_82, %c1_83, %c0_84, %c0_85] : memref<2x4x1x8xf32, #tpu.memory_space<vmem>>, vector<1x1x1x8xf32>
    %110 = vector.shape_cast %109 : vector<1x1x1x8xf32> to vector<1x8xf32>
    %111 = vector.broadcast %110 : vector<1x8xf32> to vector<8x8xf32>
    %112 = arith.addf %108, %111 : vector<8x8xf32>
    %cst_86 = arith.constant dense<0.000000e+00> : vector<8x8xf32>
    %113 = tpu.matmul %98, %105, %cst_86 {dimension_numbers = #tpu.dot_dimension_numbers<[1], [1], [0], [0], [0, 0, 1, 0], [], []>} : vector<8x8xf32>, vector<8x8xf32>, vector<8x8xf32> -> vector<8x8xf32>
    %cst_87 = arith.constant dense<0xFF800000> : vector<8xf32>
    %114 = vector.multi_reduction <maximumf>, %113, %cst_87 [1] : vector<8x8xf32> to vector<8xf32>
    %115 = vector.shape_cast %114 : vector<8xf32> to vector<8x1xf32>
    %116 = vector.broadcast %115 : vector<8x1xf32> to vector<8x8xf32>
    %117 = arith.subf %113, %116 : vector<8x8xf32>
    %118 = math.exp %117 : vector<8x8xf32>
    %cst_88 = arith.constant dense<0.000000e+00> : vector<8xf32>
    %119 = vector.multi_reduction <add>, %118, %cst_88 [1] : vector<8x8xf32> to vector<8xf32>
    %120 = vector.shape_cast %119 : vector<8xf32> to vector<8x1xf32>
    %121 = tpu.reciprocal %120 {approx = true} : vector<8x1xf32> -> vector<8x1xf32>
    %122 = vector.broadcast %121 : vector<8x1xf32> to vector<8x8xf32>
    %123 = arith.mulf %118, %122 : vector<8x8xf32>
    %cst_89 = arith.constant dense<0.000000e+00> : vector<8x8xf32>
    %124 = tpu.matmul %123, %112, %cst_89 {dimension_numbers = #tpu.dot_dimension_numbers<[1], [0], [0], [1], [0, 0, 1, 1], [], []>} : vector<8x8xf32>, vector<8x8xf32>, vector<8x8xf32> -> vector<8x8xf32>
    %c0_90 = arith.constant 0 : index
    %c1_91 = arith.constant 1 : index
    %c0_92 = arith.constant 0 : index
    %c0_93 = arith.constant 0 : index
    %125 = vector.load %arg12[%c0_90, %c1_91, %c0_92, %c0_93] : memref<2x4x8x32xf32, #tpu.memory_space<vmem>>, vector<1x1x8x32xf32>
    %126 = vector.shape_cast %125 : vector<1x1x8x32xf32> to vector<8x32xf32>
    %cst_94 = arith.constant dense<0.000000e+00> : vector<8x32xf32>
    %127 = tpu.matmul %124, %126, %cst_94 {dimension_numbers = #tpu.dot_dimension_numbers<[1], [0], [0], [1], [0, 0, 1, 1], [], []>} : vector<8x8xf32>, vector<8x32xf32>, vector<8x32xf32> -> vector<8x32xf32>
    %128 = arith.addf %91, %127 : vector<8x32xf32>
    %c0_95 = arith.constant 0 : index
    %c2 = arith.constant 2 : index
    %c0_96 = arith.constant 0 : index
    %c0_97 = arith.constant 0 : index
    %129 = vector.load %arg6[%c0_95, %c2, %c0_96, %c0_97] : memref<2x4x32x8xf32, #tpu.memory_space<vmem>>, vector<1x1x32x8xf32>
    %130 = vector.shape_cast %129 : vector<1x1x32x8xf32> to vector<32x8xf32>
    %cst_98 = arith.constant dense<0.000000e+00> : vector<8x8xf32>
    %131 = tpu.matmul %51, %130, %cst_98 {dimension_numbers = #tpu.dot_dimension_numbers<[1], [0], [0], [1], [0, 0, 1, 1], [], []>} : vector<8x32xf32>, vector<32x8xf32>, vector<8x8xf32> -> vector<8x8xf32>
    %c0_99 = arith.constant 0 : index
    %c2_100 = arith.constant 2 : index
    %c0_101 = arith.constant 0 : index
    %c0_102 = arith.constant 0 : index
    %132 = vector.load %arg7[%c0_99, %c2_100, %c0_101, %c0_102] : memref<2x4x1x8xf32, #tpu.memory_space<vmem>>, vector<1x1x1x8xf32>
    %133 = vector.shape_cast %132 : vector<1x1x1x8xf32> to vector<1x8xf32>
    %134 = vector.broadcast %133 : vector<1x8xf32> to vector<8x8xf32>
    %135 = arith.addf %131, %134 : vector<8x8xf32>
    %c0_103 = arith.constant 0 : index
    %c2_104 = arith.constant 2 : index
    %c0_105 = arith.constant 0 : index
    %c0_106 = arith.constant 0 : index
    %136 = vector.load %arg8[%c0_103, %c2_104, %c0_105, %c0_106] : memref<2x4x32x8xf32, #tpu.memory_space<vmem>>, vector<1x1x32x8xf32>
    %137 = vector.shape_cast %136 : vector<1x1x32x8xf32> to vector<32x8xf32>
    %cst_107 = arith.constant dense<0.000000e+00> : vector<8x8xf32>
    %138 = tpu.matmul %51, %137, %cst_107 {dimension_numbers = #tpu.dot_dimension_numbers<[1], [0], [0], [1], [0, 0, 1, 1], [], []>} : vector<8x32xf32>, vector<32x8xf32>, vector<8x8xf32> -> vector<8x8xf32>
    %c0_108 = arith.constant 0 : index
    %c2_109 = arith.constant 2 : index
    %c0_110 = arith.constant 0 : index
    %c0_111 = arith.constant 0 : index
    %139 = vector.load %arg9[%c0_108, %c2_109, %c0_110, %c0_111] : memref<2x4x1x8xf32, #tpu.memory_space<vmem>>, vector<1x1x1x8xf32>
    %140 = vector.shape_cast %139 : vector<1x1x1x8xf32> to vector<1x8xf32>
    %141 = vector.broadcast %140 : vector<1x8xf32> to vector<8x8xf32>
    %142 = arith.addf %138, %141 : vector<8x8xf32>
    %c0_112 = arith.constant 0 : index
    %c2_113 = arith.constant 2 : index
    %c0_114 = arith.constant 0 : index
    %c0_115 = arith.constant 0 : index
    %143 = vector.load %arg10[%c0_112, %c2_113, %c0_114, %c0_115] : memref<2x4x32x8xf32, #tpu.memory_space<vmem>>, vector<1x1x32x8xf32>
    %144 = vector.shape_cast %143 : vector<1x1x32x8xf32> to vector<32x8xf32>
    %cst_116 = arith.constant dense<0.000000e+00> : vector<8x8xf32>
    %145 = tpu.matmul %51, %144, %cst_116 {dimension_numbers = #tpu.dot_dimension_numbers<[1], [0], [0], [1], [0, 0, 1, 1], [], []>} : vector<8x32xf32>, vector<32x8xf32>, vector<8x8xf32> -> vector<8x8xf32>
    %c0_117 = arith.constant 0 : index
    %c2_118 = arith.constant 2 : index
    %c0_119 = arith.constant 0 : index
    %c0_120 = arith.constant 0 : index
    %146 = vector.load %arg11[%c0_117, %c2_118, %c0_119, %c0_120] : memref<2x4x1x8xf32, #tpu.memory_space<vmem>>, vector<1x1x1x8xf32>
    %147 = vector.shape_cast %146 : vector<1x1x1x8xf32> to vector<1x8xf32>
    %148 = vector.broadcast %147 : vector<1x8xf32> to vector<8x8xf32>
    %149 = arith.addf %145, %148 : vector<8x8xf32>
    %cst_121 = arith.constant dense<0.000000e+00> : vector<8x8xf32>
    %150 = tpu.matmul %135, %142, %cst_121 {dimension_numbers = #tpu.dot_dimension_numbers<[1], [1], [0], [0], [0, 0, 1, 0], [], []>} : vector<8x8xf32>, vector<8x8xf32>, vector<8x8xf32> -> vector<8x8xf32>
    %cst_122 = arith.constant dense<0xFF800000> : vector<8xf32>
    %151 = vector.multi_reduction <maximumf>, %150, %cst_122 [1] : vector<8x8xf32> to vector<8xf32>
    %152 = vector.shape_cast %151 : vector<8xf32> to vector<8x1xf32>
    %153 = vector.broadcast %152 : vector<8x1xf32> to vector<8x8xf32>
    %154 = arith.subf %150, %153 : vector<8x8xf32>
    %155 = math.exp %154 : vector<8x8xf32>
    %cst_123 = arith.constant dense<0.000000e+00> : vector<8xf32>
    %156 = vector.multi_reduction <add>, %155, %cst_123 [1] : vector<8x8xf32> to vector<8xf32>
    %157 = vector.shape_cast %156 : vector<8xf32> to vector<8x1xf32>
    %158 = tpu.reciprocal %157 {approx = true} : vector<8x1xf32> -> vector<8x1xf32>
    %159 = vector.broadcast %158 : vector<8x1xf32> to vector<8x8xf32>
    %160 = arith.mulf %155, %159 : vector<8x8xf32>
    %cst_124 = arith.constant dense<0.000000e+00> : vector<8x8xf32>
    %161 = tpu.matmul %160, %149, %cst_124 {dimension_numbers = #tpu.dot_dimension_numbers<[1], [0], [0], [1], [0, 0, 1, 1], [], []>} : vector<8x8xf32>, vector<8x8xf32>, vector<8x8xf32> -> vector<8x8xf32>
    %c0_125 = arith.constant 0 : index
    %c2_126 = arith.constant 2 : index
    %c0_127 = arith.constant 0 : index
    %c0_128 = arith.constant 0 : index
    %162 = vector.load %arg12[%c0_125, %c2_126, %c0_127, %c0_128] : memref<2x4x8x32xf32, #tpu.memory_space<vmem>>, vector<1x1x8x32xf32>
    %163 = vector.shape_cast %162 : vector<1x1x8x32xf32> to vector<8x32xf32>
    %cst_129 = arith.constant dense<0.000000e+00> : vector<8x32xf32>
    %164 = tpu.matmul %161, %163, %cst_129 {dimension_numbers = #tpu.dot_dimension_numbers<[1], [0], [0], [1], [0, 0, 1, 1], [], []>} : vector<8x8xf32>, vector<8x32xf32>, vector<8x32xf32> -> vector<8x32xf32>
    %165 = arith.addf %128, %164 : vector<8x32xf32>
    %c0_130 = arith.constant 0 : index
    %c3 = arith.constant 3 : index
    %c0_131 = arith.constant 0 : index
    %c0_132 = arith.constant 0 : index
    %166 = vector.load %arg6[%c0_130, %c3, %c0_131, %c0_132] : memref<2x4x32x8xf32, #tpu.memory_space<vmem>>, vector<1x1x32x8xf32>
    %167 = vector.shape_cast %166 : vector<1x1x32x8xf32> to vector<32x8xf32>
    %cst_133 = arith.constant dense<0.000000e+00> : vector<8x8xf32>
    %168 = tpu.matmul %51, %167, %cst_133 {dimension_numbers = #tpu.dot_dimension_numbers<[1], [0], [0], [1], [0, 0, 1, 1], [], []>} : vector<8x32xf32>, vector<32x8xf32>, vector<8x8xf32> -> vector<8x8xf32>
    %c0_134 = arith.constant 0 : index
    %c3_135 = arith.constant 3 : index
    %c0_136 = arith.constant 0 : index
    %c0_137 = arith.constant 0 : index
    %169 = vector.load %arg7[%c0_134, %c3_135, %c0_136, %c0_137] : memref<2x4x1x8xf32, #tpu.memory_space<vmem>>, vector<1x1x1x8xf32>
    %170 = vector.shape_cast %169 : vector<1x1x1x8xf32> to vector<1x8xf32>
    %171 = vector.broadcast %170 : vector<1x8xf32> to vector<8x8xf32>
    %172 = arith.addf %168, %171 : vector<8x8xf32>
    %c0_138 = arith.constant 0 : index
    %c3_139 = arith.constant 3 : index
    %c0_140 = arith.constant 0 : index
    %c0_141 = arith.constant 0 : index
    %173 = vector.load %arg8[%c0_138, %c3_139, %c0_140, %c0_141] : memref<2x4x32x8xf32, #tpu.memory_space<vmem>>, vector<1x1x32x8xf32>
    %174 = vector.shape_cast %173 : vector<1x1x32x8xf32> to vector<32x8xf32>
    %cst_142 = arith.constant dense<0.000000e+00> : vector<8x8xf32>
    %175 = tpu.matmul %51, %174, %cst_142 {dimension_numbers = #tpu.dot_dimension_numbers<[1], [0], [0], [1], [0, 0, 1, 1], [], []>} : vector<8x32xf32>, vector<32x8xf32>, vector<8x8xf32> -> vector<8x8xf32>
    %c0_143 = arith.constant 0 : index
    %c3_144 = arith.constant 3 : index
    %c0_145 = arith.constant 0 : index
    %c0_146 = arith.constant 0 : index
    %176 = vector.load %arg9[%c0_143, %c3_144, %c0_145, %c0_146] : memref<2x4x1x8xf32, #tpu.memory_space<vmem>>, vector<1x1x1x8xf32>
    %177 = vector.shape_cast %176 : vector<1x1x1x8xf32> to vector<1x8xf32>
    %178 = vector.broadcast %177 : vector<1x8xf32> to vector<8x8xf32>
    %179 = arith.addf %175, %178 : vector<8x8xf32>
    %c0_147 = arith.constant 0 : index
    %c3_148 = arith.constant 3 : index
    %c0_149 = arith.constant 0 : index
    %c0_150 = arith.constant 0 : index
    %180 = vector.load %arg10[%c0_147, %c3_148, %c0_149, %c0_150] : memref<2x4x32x8xf32, #tpu.memory_space<vmem>>, vector<1x1x32x8xf32>
    %181 = vector.shape_cast %180 : vector<1x1x32x8xf32> to vector<32x8xf32>
    %cst_151 = arith.constant dense<0.000000e+00> : vector<8x8xf32>
    %182 = tpu.matmul %51, %181, %cst_151 {dimension_numbers = #tpu.dot_dimension_numbers<[1], [0], [0], [1], [0, 0, 1, 1], [], []>} : vector<8x32xf32>, vector<32x8xf32>, vector<8x8xf32> -> vector<8x8xf32>
    %c0_152 = arith.constant 0 : index
    %c3_153 = arith.constant 3 : index
    %c0_154 = arith.constant 0 : index
    %c0_155 = arith.constant 0 : index
    %183 = vector.load %arg11[%c0_152, %c3_153, %c0_154, %c0_155] : memref<2x4x1x8xf32, #tpu.memory_space<vmem>>, vector<1x1x1x8xf32>
    %184 = vector.shape_cast %183 : vector<1x1x1x8xf32> to vector<1x8xf32>
    %185 = vector.broadcast %184 : vector<1x8xf32> to vector<8x8xf32>
    %186 = arith.addf %182, %185 : vector<8x8xf32>
    %cst_156 = arith.constant dense<0.000000e+00> : vector<8x8xf32>
    %187 = tpu.matmul %172, %179, %cst_156 {dimension_numbers = #tpu.dot_dimension_numbers<[1], [1], [0], [0], [0, 0, 1, 0], [], []>} : vector<8x8xf32>, vector<8x8xf32>, vector<8x8xf32> -> vector<8x8xf32>
    %cst_157 = arith.constant dense<0xFF800000> : vector<8xf32>
    %188 = vector.multi_reduction <maximumf>, %187, %cst_157 [1] : vector<8x8xf32> to vector<8xf32>
    %189 = vector.shape_cast %188 : vector<8xf32> to vector<8x1xf32>
    %190 = vector.broadcast %189 : vector<8x1xf32> to vector<8x8xf32>
    %191 = arith.subf %187, %190 : vector<8x8xf32>
    %192 = math.exp %191 : vector<8x8xf32>
    %cst_158 = arith.constant dense<0.000000e+00> : vector<8xf32>
    %193 = vector.multi_reduction <add>, %192, %cst_158 [1] : vector<8x8xf32> to vector<8xf32>
    %194 = vector.shape_cast %193 : vector<8xf32> to vector<8x1xf32>
    %195 = tpu.reciprocal %194 {approx = true} : vector<8x1xf32> -> vector<8x1xf32>
    %196 = vector.broadcast %195 : vector<8x1xf32> to vector<8x8xf32>
    %197 = arith.mulf %192, %196 : vector<8x8xf32>
    %cst_159 = arith.constant dense<0.000000e+00> : vector<8x8xf32>
    %198 = tpu.matmul %197, %186, %cst_159 {dimension_numbers = #tpu.dot_dimension_numbers<[1], [0], [0], [1], [0, 0, 1, 1], [], []>} : vector<8x8xf32>, vector<8x8xf32>, vector<8x8xf32> -> vector<8x8xf32>
    %c0_160 = arith.constant 0 : index
    %c3_161 = arith.constant 3 : index
    %c0_162 = arith.constant 0 : index
    %c0_163 = arith.constant 0 : index
    %199 = vector.load %arg12[%c0_160, %c3_161, %c0_162, %c0_163] : memref<2x4x8x32xf32, #tpu.memory_space<vmem>>, vector<1x1x8x32xf32>
    %200 = vector.shape_cast %199 : vector<1x1x8x32xf32> to vector<8x32xf32>
    %cst_164 = arith.constant dense<0.000000e+00> : vector<8x32xf32>
    %201 = tpu.matmul %198, %200, %cst_164 {dimension_numbers = #tpu.dot_dimension_numbers<[1], [0], [0], [1], [0, 0, 1, 1], [], []>} : vector<8x8xf32>, vector<8x32xf32>, vector<8x32xf32> -> vector<8x32xf32>
    %202 = arith.addf %165, %201 : vector<8x32xf32>
    %203 = arith.addf %25, %202 : vector<8x32xf32>
    %c0_165 = arith.constant 0 : index
    %c0_166 = arith.constant 0 : index
    %c0_167 = arith.constant 0 : index
    %204 = vector.load %arg14[%c0_165, %c0_166, %c0_167] : memref<2x1x32xf32, #tpu.memory_space<vmem>>, vector<1x1x32xf32>
    %205 = vector.shape_cast %204 : vector<1x1x32xf32> to vector<1x32xf32>
    %c0_168 = arith.constant 0 : index
    %c0_169 = arith.constant 0 : index
    %c0_170 = arith.constant 0 : index
    %206 = vector.load %arg15[%c0_168, %c0_169, %c0_170] : memref<2x1x32xf32, #tpu.memory_space<vmem>>, vector<1x1x32xf32>
    %207 = vector.shape_cast %206 : vector<1x1x32xf32> to vector<1x32xf32>
    %cst_171 = arith.constant dense<0.000000e+00> : vector<8xf32>
    %208 = vector.multi_reduction <add>, %203, %cst_171 [1] : vector<8x32xf32> to vector<8xf32>
    %209 = vector.shape_cast %208 : vector<8xf32> to vector<8x1xf32>
    %cst_172 = arith.constant 3.200000e+01 : f32
    %210 = vector.broadcast %cst_172 : f32 to vector<8x1xf32>
    %211 = arith.divf %209, %210 : vector<8x1xf32>
    %212 = vector.broadcast %211 : vector<8x1xf32> to vector<8x32xf32>
    %213 = arith.subf %203, %212 : vector<8x32xf32>
    %214 = arith.mulf %213, %213 : vector<8x32xf32>
    %cst_173 = arith.constant dense<0.000000e+00> : vector<8xf32>
    %215 = vector.multi_reduction <add>, %214, %cst_173 [1] : vector<8x32xf32> to vector<8xf32>
    %216 = vector.shape_cast %215 : vector<8xf32> to vector<8x1xf32>
    %cst_174 = arith.constant 3.200000e+01 : f32
    %217 = vector.broadcast %cst_174 : f32 to vector<8x1xf32>
    %218 = arith.divf %216, %217 : vector<8x1xf32>
    %219 = vector.broadcast %211 : vector<8x1xf32> to vector<8x32xf32>
    %220 = arith.subf %203, %219 : vector<8x32xf32>
    %cst_175 = arith.constant 9.99999974E-6 : f32
    %221 = vector.broadcast %cst_175 : f32 to vector<8x1xf32>
    %222 = arith.addf %218, %221 : vector<8x1xf32>
    %223 = math.rsqrt %222 : vector<8x1xf32>
    %224 = vector.broadcast %223 : vector<8x1xf32> to vector<8x32xf32>
    %225 = arith.mulf %220, %224 : vector<8x32xf32>
    %226 = vector.broadcast %205 : vector<1x32xf32> to vector<8x32xf32>
    %227 = arith.mulf %225, %226 : vector<8x32xf32>
    %228 = vector.broadcast %207 : vector<1x32xf32> to vector<8x32xf32>
    %229 = arith.addf %227, %228 : vector<8x32xf32>
    %c0_176 = arith.constant 0 : index
    %c0_177 = arith.constant 0 : index
    %c0_178 = arith.constant 0 : index
    %230 = vector.load %arg16[%c0_176, %c0_177, %c0_178] : memref<2x32x64xf32, #tpu.memory_space<vmem>>, vector<1x32x64xf32>
    %231 = vector.shape_cast %230 : vector<1x32x64xf32> to vector<32x64xf32>
    %cst_179 = arith.constant dense<0.000000e+00> : vector<8x64xf32>
    %232 = tpu.matmul %229, %231, %cst_179 {dimension_numbers = #tpu.dot_dimension_numbers<[1], [0], [0], [1], [0, 0, 1, 1], [], []>} : vector<8x32xf32>, vector<32x64xf32>, vector<8x64xf32> -> vector<8x64xf32>
    %c0_180 = arith.constant 0 : index
    %c0_181 = arith.constant 0 : index
    %c0_182 = arith.constant 0 : index
    %233 = vector.load %arg17[%c0_180, %c0_181, %c0_182] : memref<2x1x64xf32, #tpu.memory_space<vmem>>, vector<1x1x64xf32>
    %234 = vector.shape_cast %233 : vector<1x1x64xf32> to vector<1x64xf32>
    %235 = vector.broadcast %234 : vector<1x64xf32> to vector<8x64xf32>
    %236 = arith.addf %232, %235 : vector<8x64xf32>
    %cst_183 = arith.constant 5.000000e-01 : f32
    %237 = vector.broadcast %cst_183 : f32 to vector<8x64xf32>
    %238 = arith.mulf %237, %236 : vector<8x64xf32>
    %cst_184 = arith.constant 0.707106769 : f32
    %239 = vector.broadcast %cst_184 : f32 to vector<8x64xf32>
    %240 = arith.mulf %236, %239 : vector<8x64xf32>
    %241 = math.erf %240 : vector<8x64xf32>
    %cst_185 = arith.constant 1.000000e+00 : f32
    %242 = vector.broadcast %cst_185 : f32 to vector<8x64xf32>
    %243 = arith.addf %242, %241 : vector<8x64xf32>
    %244 = arith.mulf %238, %243 : vector<8x64xf32>
    %c0_186 = arith.constant 0 : index
    %c0_187 = arith.constant 0 : index
    %c0_188 = arith.constant 0 : index
    %245 = vector.load %arg18[%c0_186, %c0_187, %c0_188] : memref<2x64x32xf32, #tpu.memory_space<vmem>>, vector<1x64x32xf32>
    %246 = vector.shape_cast %245 : vector<1x64x32xf32> to vector<64x32xf32>
    %cst_189 = arith.constant dense<0.000000e+00> : vector<8x32xf32>
    %247 = tpu.matmul %244, %246, %cst_189 {dimension_numbers = #tpu.dot_dimension_numbers<[1], [0], [0], [1], [0, 0, 1, 1], [], []>} : vector<8x64xf32>, vector<64x32xf32>, vector<8x32xf32> -> vector<8x32xf32>
    %c0_190 = arith.constant 0 : index
    %c0_191 = arith.constant 0 : index
    %c0_192 = arith.constant 0 : index
    %248 = vector.load %arg19[%c0_190, %c0_191, %c0_192] : memref<2x1x32xf32, #tpu.memory_space<vmem>>, vector<1x1x32xf32>
    %249 = vector.shape_cast %248 : vector<1x1x32xf32> to vector<1x32xf32>
    %250 = vector.broadcast %249 : vector<1x32xf32> to vector<8x32xf32>
    %251 = arith.addf %247, %250 : vector<8x32xf32>
    %252 = arith.addf %203, %251 : vector<8x32xf32>
    %c1_193 = arith.constant 1 : index
    %c0_194 = arith.constant 0 : index
    %c0_195 = arith.constant 0 : index
    %253 = vector.load %arg4[%c1_193, %c0_194, %c0_195] : memref<2x1x32xf32, #tpu.memory_space<vmem>>, vector<1x1x32xf32>
    %254 = vector.shape_cast %253 : vector<1x1x32xf32> to vector<1x32xf32>
    %c1_196 = arith.constant 1 : index
    %c0_197 = arith.constant 0 : index
    %c0_198 = arith.constant 0 : index
    %255 = vector.load %arg5[%c1_196, %c0_197, %c0_198] : memref<2x1x32xf32, #tpu.memory_space<vmem>>, vector<1x1x32xf32>
    %256 = vector.shape_cast %255 : vector<1x1x32xf32> to vector<1x32xf32>
    %cst_199 = arith.constant dense<0.000000e+00> : vector<8xf32>
    %257 = vector.multi_reduction <add>, %252, %cst_199 [1] : vector<8x32xf32> to vector<8xf32>
    %258 = vector.shape_cast %257 : vector<8xf32> to vector<8x1xf32>
    %cst_200 = arith.constant 3.200000e+01 : f32
    %259 = vector.broadcast %cst_200 : f32 to vector<8x1xf32>
    %260 = arith.divf %258, %259 : vector<8x1xf32>
    %261 = vector.broadcast %260 : vector<8x1xf32> to vector<8x32xf32>
    %262 = arith.subf %252, %261 : vector<8x32xf32>
    %263 = arith.mulf %262, %262 : vector<8x32xf32>
    %cst_201 = arith.constant dense<0.000000e+00> : vector<8xf32>
    %264 = vector.multi_reduction <add>, %263, %cst_201 [1] : vector<8x32xf32> to vector<8xf32>
    %265 = vector.shape_cast %264 : vector<8xf32> to vector<8x1xf32>
    %cst_202 = arith.constant 3.200000e+01 : f32
    %266 = vector.broadcast %cst_202 : f32 to vector<8x1xf32>
    %267 = arith.divf %265, %266 : vector<8x1xf32>
    %268 = vector.broadcast %260 : vector<8x1xf32> to vector<8x32xf32>
    %269 = arith.subf %252, %268 : vector<8x32xf32>
    %cst_203 = arith.constant 9.99999974E-6 : f32
    %270 = vector.broadcast %cst_203 : f32 to vector<8x1xf32>
    %271 = arith.addf %267, %270 : vector<8x1xf32>
    %272 = math.rsqrt %271 : vector<8x1xf32>
    %273 = vector.broadcast %272 : vector<8x1xf32> to vector<8x32xf32>
    %274 = arith.mulf %269, %273 : vector<8x32xf32>
    %275 = vector.broadcast %254 : vector<1x32xf32> to vector<8x32xf32>
    %276 = arith.mulf %274, %275 : vector<8x32xf32>
    %277 = vector.broadcast %256 : vector<1x32xf32> to vector<8x32xf32>
    %278 = arith.addf %276, %277 : vector<8x32xf32>
    %c1_204 = arith.constant 1 : index
    %c0_205 = arith.constant 0 : index
    %c0_206 = arith.constant 0 : index
    %279 = vector.load %arg13[%c1_204, %c0_205, %c0_206] : memref<2x1x32xf32, #tpu.memory_space<vmem>>, vector<1x1x32xf32>
    %280 = vector.shape_cast %279 : vector<1x1x32xf32> to vector<1x32xf32>
    %c1_207 = arith.constant 1 : index
    %c0_208 = arith.constant 0 : index
    %c0_209 = arith.constant 0 : index
    %c0_210 = arith.constant 0 : index
    %281 = vector.load %arg6[%c1_207, %c0_208, %c0_209, %c0_210] : memref<2x4x32x8xf32, #tpu.memory_space<vmem>>, vector<1x1x32x8xf32>
    %282 = vector.shape_cast %281 : vector<1x1x32x8xf32> to vector<32x8xf32>
    %cst_211 = arith.constant dense<0.000000e+00> : vector<8x8xf32>
    %283 = tpu.matmul %278, %282, %cst_211 {dimension_numbers = #tpu.dot_dimension_numbers<[1], [0], [0], [1], [0, 0, 1, 1], [], []>} : vector<8x32xf32>, vector<32x8xf32>, vector<8x8xf32> -> vector<8x8xf32>
    %c1_212 = arith.constant 1 : index
    %c0_213 = arith.constant 0 : index
    %c0_214 = arith.constant 0 : index
    %c0_215 = arith.constant 0 : index
    %284 = vector.load %arg7[%c1_212, %c0_213, %c0_214, %c0_215] : memref<2x4x1x8xf32, #tpu.memory_space<vmem>>, vector<1x1x1x8xf32>
    %285 = vector.shape_cast %284 : vector<1x1x1x8xf32> to vector<1x8xf32>
    %286 = vector.broadcast %285 : vector<1x8xf32> to vector<8x8xf32>
    %287 = arith.addf %283, %286 : vector<8x8xf32>
    %c1_216 = arith.constant 1 : index
    %c0_217 = arith.constant 0 : index
    %c0_218 = arith.constant 0 : index
    %c0_219 = arith.constant 0 : index
    %288 = vector.load %arg8[%c1_216, %c0_217, %c0_218, %c0_219] : memref<2x4x32x8xf32, #tpu.memory_space<vmem>>, vector<1x1x32x8xf32>
    %289 = vector.shape_cast %288 : vector<1x1x32x8xf32> to vector<32x8xf32>
    %cst_220 = arith.constant dense<0.000000e+00> : vector<8x8xf32>
    %290 = tpu.matmul %278, %289, %cst_220 {dimension_numbers = #tpu.dot_dimension_numbers<[1], [0], [0], [1], [0, 0, 1, 1], [], []>} : vector<8x32xf32>, vector<32x8xf32>, vector<8x8xf32> -> vector<8x8xf32>
    %c1_221 = arith.constant 1 : index
    %c0_222 = arith.constant 0 : index
    %c0_223 = arith.constant 0 : index
    %c0_224 = arith.constant 0 : index
    %291 = vector.load %arg9[%c1_221, %c0_222, %c0_223, %c0_224] : memref<2x4x1x8xf32, #tpu.memory_space<vmem>>, vector<1x1x1x8xf32>
    %292 = vector.shape_cast %291 : vector<1x1x1x8xf32> to vector<1x8xf32>
    %293 = vector.broadcast %292 : vector<1x8xf32> to vector<8x8xf32>
    %294 = arith.addf %290, %293 : vector<8x8xf32>
    %c1_225 = arith.constant 1 : index
    %c0_226 = arith.constant 0 : index
    %c0_227 = arith.constant 0 : index
    %c0_228 = arith.constant 0 : index
    %295 = vector.load %arg10[%c1_225, %c0_226, %c0_227, %c0_228] : memref<2x4x32x8xf32, #tpu.memory_space<vmem>>, vector<1x1x32x8xf32>
    %296 = vector.shape_cast %295 : vector<1x1x32x8xf32> to vector<32x8xf32>
    %cst_229 = arith.constant dense<0.000000e+00> : vector<8x8xf32>
    %297 = tpu.matmul %278, %296, %cst_229 {dimension_numbers = #tpu.dot_dimension_numbers<[1], [0], [0], [1], [0, 0, 1, 1], [], []>} : vector<8x32xf32>, vector<32x8xf32>, vector<8x8xf32> -> vector<8x8xf32>
    %c1_230 = arith.constant 1 : index
    %c0_231 = arith.constant 0 : index
    %c0_232 = arith.constant 0 : index
    %c0_233 = arith.constant 0 : index
    %298 = vector.load %arg11[%c1_230, %c0_231, %c0_232, %c0_233] : memref<2x4x1x8xf32, #tpu.memory_space<vmem>>, vector<1x1x1x8xf32>
    %299 = vector.shape_cast %298 : vector<1x1x1x8xf32> to vector<1x8xf32>
    %300 = vector.broadcast %299 : vector<1x8xf32> to vector<8x8xf32>
    %301 = arith.addf %297, %300 : vector<8x8xf32>
    %cst_234 = arith.constant dense<0.000000e+00> : vector<8x8xf32>
    %302 = tpu.matmul %287, %294, %cst_234 {dimension_numbers = #tpu.dot_dimension_numbers<[1], [1], [0], [0], [0, 0, 1, 0], [], []>} : vector<8x8xf32>, vector<8x8xf32>, vector<8x8xf32> -> vector<8x8xf32>
    %cst_235 = arith.constant dense<0xFF800000> : vector<8xf32>
    %303 = vector.multi_reduction <maximumf>, %302, %cst_235 [1] : vector<8x8xf32> to vector<8xf32>
    %304 = vector.shape_cast %303 : vector<8xf32> to vector<8x1xf32>
    %305 = vector.broadcast %304 : vector<8x1xf32> to vector<8x8xf32>
    %306 = arith.subf %302, %305 : vector<8x8xf32>
    %307 = math.exp %306 : vector<8x8xf32>
    %cst_236 = arith.constant dense<0.000000e+00> : vector<8xf32>
    %308 = vector.multi_reduction <add>, %307, %cst_236 [1] : vector<8x8xf32> to vector<8xf32>
    %309 = vector.shape_cast %308 : vector<8xf32> to vector<8x1xf32>
    %310 = tpu.reciprocal %309 {approx = true} : vector<8x1xf32> -> vector<8x1xf32>
    %311 = vector.broadcast %310 : vector<8x1xf32> to vector<8x8xf32>
    %312 = arith.mulf %307, %311 : vector<8x8xf32>
    %cst_237 = arith.constant dense<0.000000e+00> : vector<8x8xf32>
    %313 = tpu.matmul %312, %301, %cst_237 {dimension_numbers = #tpu.dot_dimension_numbers<[1], [0], [0], [1], [0, 0, 1, 1], [], []>} : vector<8x8xf32>, vector<8x8xf32>, vector<8x8xf32> -> vector<8x8xf32>
    %c1_238 = arith.constant 1 : index
    %c0_239 = arith.constant 0 : index
    %c0_240 = arith.constant 0 : index
    %c0_241 = arith.constant 0 : index
    %314 = vector.load %arg12[%c1_238, %c0_239, %c0_240, %c0_241] : memref<2x4x8x32xf32, #tpu.memory_space<vmem>>, vector<1x1x8x32xf32>
    %315 = vector.shape_cast %314 : vector<1x1x8x32xf32> to vector<8x32xf32>
    %cst_242 = arith.constant dense<0.000000e+00> : vector<8x32xf32>
    %316 = tpu.matmul %313, %315, %cst_242 {dimension_numbers = #tpu.dot_dimension_numbers<[1], [0], [0], [1], [0, 0, 1, 1], [], []>} : vector<8x8xf32>, vector<8x32xf32>, vector<8x32xf32> -> vector<8x32xf32>
    %317 = vector.broadcast %280 : vector<1x32xf32> to vector<8x32xf32>
    %318 = arith.addf %317, %316 : vector<8x32xf32>
    %c1_243 = arith.constant 1 : index
    %c1_244 = arith.constant 1 : index
    %c0_245 = arith.constant 0 : index
    %c0_246 = arith.constant 0 : index
    %319 = vector.load %arg6[%c1_243, %c1_244, %c0_245, %c0_246] : memref<2x4x32x8xf32, #tpu.memory_space<vmem>>, vector<1x1x32x8xf32>
    %320 = vector.shape_cast %319 : vector<1x1x32x8xf32> to vector<32x8xf32>
    %cst_247 = arith.constant dense<0.000000e+00> : vector<8x8xf32>
    %321 = tpu.matmul %278, %320, %cst_247 {dimension_numbers = #tpu.dot_dimension_numbers<[1], [0], [0], [1], [0, 0, 1, 1], [], []>} : vector<8x32xf32>, vector<32x8xf32>, vector<8x8xf32> -> vector<8x8xf32>
    %c1_248 = arith.constant 1 : index
    %c1_249 = arith.constant 1 : index
    %c0_250 = arith.constant 0 : index
    %c0_251 = arith.constant 0 : index
    %322 = vector.load %arg7[%c1_248, %c1_249, %c0_250, %c0_251] : memref<2x4x1x8xf32, #tpu.memory_space<vmem>>, vector<1x1x1x8xf32>
    %323 = vector.shape_cast %322 : vector<1x1x1x8xf32> to vector<1x8xf32>
    %324 = vector.broadcast %323 : vector<1x8xf32> to vector<8x8xf32>
    %325 = arith.addf %321, %324 : vector<8x8xf32>
    %c1_252 = arith.constant 1 : index
    %c1_253 = arith.constant 1 : index
    %c0_254 = arith.constant 0 : index
    %c0_255 = arith.constant 0 : index
    %326 = vector.load %arg8[%c1_252, %c1_253, %c0_254, %c0_255] : memref<2x4x32x8xf32, #tpu.memory_space<vmem>>, vector<1x1x32x8xf32>
    %327 = vector.shape_cast %326 : vector<1x1x32x8xf32> to vector<32x8xf32>
    %cst_256 = arith.constant dense<0.000000e+00> : vector<8x8xf32>
    %328 = tpu.matmul %278, %327, %cst_256 {dimension_numbers = #tpu.dot_dimension_numbers<[1], [0], [0], [1], [0, 0, 1, 1], [], []>} : vector<8x32xf32>, vector<32x8xf32>, vector<8x8xf32> -> vector<8x8xf32>
    %c1_257 = arith.constant 1 : index
    %c1_258 = arith.constant 1 : index
    %c0_259 = arith.constant 0 : index
    %c0_260 = arith.constant 0 : index
    %329 = vector.load %arg9[%c1_257, %c1_258, %c0_259, %c0_260] : memref<2x4x1x8xf32, #tpu.memory_space<vmem>>, vector<1x1x1x8xf32>
    %330 = vector.shape_cast %329 : vector<1x1x1x8xf32> to vector<1x8xf32>
    %331 = vector.broadcast %330 : vector<1x8xf32> to vector<8x8xf32>
    %332 = arith.addf %328, %331 : vector<8x8xf32>
    %c1_261 = arith.constant 1 : index
    %c1_262 = arith.constant 1 : index
    %c0_263 = arith.constant 0 : index
    %c0_264 = arith.constant 0 : index
    %333 = vector.load %arg10[%c1_261, %c1_262, %c0_263, %c0_264] : memref<2x4x32x8xf32, #tpu.memory_space<vmem>>, vector<1x1x32x8xf32>
    %334 = vector.shape_cast %333 : vector<1x1x32x8xf32> to vector<32x8xf32>
    %cst_265 = arith.constant dense<0.000000e+00> : vector<8x8xf32>
    %335 = tpu.matmul %278, %334, %cst_265 {dimension_numbers = #tpu.dot_dimension_numbers<[1], [0], [0], [1], [0, 0, 1, 1], [], []>} : vector<8x32xf32>, vector<32x8xf32>, vector<8x8xf32> -> vector<8x8xf32>
    %c1_266 = arith.constant 1 : index
    %c1_267 = arith.constant 1 : index
    %c0_268 = arith.constant 0 : index
    %c0_269 = arith.constant 0 : index
    %336 = vector.load %arg11[%c1_266, %c1_267, %c0_268, %c0_269] : memref<2x4x1x8xf32, #tpu.memory_space<vmem>>, vector<1x1x1x8xf32>
    %337 = vector.shape_cast %336 : vector<1x1x1x8xf32> to vector<1x8xf32>
    %338 = vector.broadcast %337 : vector<1x8xf32> to vector<8x8xf32>
    %339 = arith.addf %335, %338 : vector<8x8xf32>
    %cst_270 = arith.constant dense<0.000000e+00> : vector<8x8xf32>
    %340 = tpu.matmul %325, %332, %cst_270 {dimension_numbers = #tpu.dot_dimension_numbers<[1], [1], [0], [0], [0, 0, 1, 0], [], []>} : vector<8x8xf32>, vector<8x8xf32>, vector<8x8xf32> -> vector<8x8xf32>
    %cst_271 = arith.constant dense<0xFF800000> : vector<8xf32>
    %341 = vector.multi_reduction <maximumf>, %340, %cst_271 [1] : vector<8x8xf32> to vector<8xf32>
    %342 = vector.shape_cast %341 : vector<8xf32> to vector<8x1xf32>
    %343 = vector.broadcast %342 : vector<8x1xf32> to vector<8x8xf32>
    %344 = arith.subf %340, %343 : vector<8x8xf32>
    %345 = math.exp %344 : vector<8x8xf32>
    %cst_272 = arith.constant dense<0.000000e+00> : vector<8xf32>
    %346 = vector.multi_reduction <add>, %345, %cst_272 [1] : vector<8x8xf32> to vector<8xf32>
    %347 = vector.shape_cast %346 : vector<8xf32> to vector<8x1xf32>
    %348 = tpu.reciprocal %347 {approx = true} : vector<8x1xf32> -> vector<8x1xf32>
    %349 = vector.broadcast %348 : vector<8x1xf32> to vector<8x8xf32>
    %350 = arith.mulf %345, %349 : vector<8x8xf32>
    %cst_273 = arith.constant dense<0.000000e+00> : vector<8x8xf32>
    %351 = tpu.matmul %350, %339, %cst_273 {dimension_numbers = #tpu.dot_dimension_numbers<[1], [0], [0], [1], [0, 0, 1, 1], [], []>} : vector<8x8xf32>, vector<8x8xf32>, vector<8x8xf32> -> vector<8x8xf32>
    %c1_274 = arith.constant 1 : index
    %c1_275 = arith.constant 1 : index
    %c0_276 = arith.constant 0 : index
    %c0_277 = arith.constant 0 : index
    %352 = vector.load %arg12[%c1_274, %c1_275, %c0_276, %c0_277] : memref<2x4x8x32xf32, #tpu.memory_space<vmem>>, vector<1x1x8x32xf32>
    %353 = vector.shape_cast %352 : vector<1x1x8x32xf32> to vector<8x32xf32>
    %cst_278 = arith.constant dense<0.000000e+00> : vector<8x32xf32>
    %354 = tpu.matmul %351, %353, %cst_278 {dimension_numbers = #tpu.dot_dimension_numbers<[1], [0], [0], [1], [0, 0, 1, 1], [], []>} : vector<8x8xf32>, vector<8x32xf32>, vector<8x32xf32> -> vector<8x32xf32>
    %355 = arith.addf %318, %354 : vector<8x32xf32>
    %c1_279 = arith.constant 1 : index
    %c2_280 = arith.constant 2 : index
    %c0_281 = arith.constant 0 : index
    %c0_282 = arith.constant 0 : index
    %356 = vector.load %arg6[%c1_279, %c2_280, %c0_281, %c0_282] : memref<2x4x32x8xf32, #tpu.memory_space<vmem>>, vector<1x1x32x8xf32>
    %357 = vector.shape_cast %356 : vector<1x1x32x8xf32> to vector<32x8xf32>
    %cst_283 = arith.constant dense<0.000000e+00> : vector<8x8xf32>
    %358 = tpu.matmul %278, %357, %cst_283 {dimension_numbers = #tpu.dot_dimension_numbers<[1], [0], [0], [1], [0, 0, 1, 1], [], []>} : vector<8x32xf32>, vector<32x8xf32>, vector<8x8xf32> -> vector<8x8xf32>
    %c1_284 = arith.constant 1 : index
    %c2_285 = arith.constant 2 : index
    %c0_286 = arith.constant 0 : index
    %c0_287 = arith.constant 0 : index
    %359 = vector.load %arg7[%c1_284, %c2_285, %c0_286, %c0_287] : memref<2x4x1x8xf32, #tpu.memory_space<vmem>>, vector<1x1x1x8xf32>
    %360 = vector.shape_cast %359 : vector<1x1x1x8xf32> to vector<1x8xf32>
    %361 = vector.broadcast %360 : vector<1x8xf32> to vector<8x8xf32>
    %362 = arith.addf %358, %361 : vector<8x8xf32>
    %c1_288 = arith.constant 1 : index
    %c2_289 = arith.constant 2 : index
    %c0_290 = arith.constant 0 : index
    %c0_291 = arith.constant 0 : index
    %363 = vector.load %arg8[%c1_288, %c2_289, %c0_290, %c0_291] : memref<2x4x32x8xf32, #tpu.memory_space<vmem>>, vector<1x1x32x8xf32>
    %364 = vector.shape_cast %363 : vector<1x1x32x8xf32> to vector<32x8xf32>
    %cst_292 = arith.constant dense<0.000000e+00> : vector<8x8xf32>
    %365 = tpu.matmul %278, %364, %cst_292 {dimension_numbers = #tpu.dot_dimension_numbers<[1], [0], [0], [1], [0, 0, 1, 1], [], []>} : vector<8x32xf32>, vector<32x8xf32>, vector<8x8xf32> -> vector<8x8xf32>
    %c1_293 = arith.constant 1 : index
    %c2_294 = arith.constant 2 : index
    %c0_295 = arith.constant 0 : index
    %c0_296 = arith.constant 0 : index
    %366 = vector.load %arg9[%c1_293, %c2_294, %c0_295, %c0_296] : memref<2x4x1x8xf32, #tpu.memory_space<vmem>>, vector<1x1x1x8xf32>
    %367 = vector.shape_cast %366 : vector<1x1x1x8xf32> to vector<1x8xf32>
    %368 = vector.broadcast %367 : vector<1x8xf32> to vector<8x8xf32>
    %369 = arith.addf %365, %368 : vector<8x8xf32>
    %c1_297 = arith.constant 1 : index
    %c2_298 = arith.constant 2 : index
    %c0_299 = arith.constant 0 : index
    %c0_300 = arith.constant 0 : index
    %370 = vector.load %arg10[%c1_297, %c2_298, %c0_299, %c0_300] : memref<2x4x32x8xf32, #tpu.memory_space<vmem>>, vector<1x1x32x8xf32>
    %371 = vector.shape_cast %370 : vector<1x1x32x8xf32> to vector<32x8xf32>
    %cst_301 = arith.constant dense<0.000000e+00> : vector<8x8xf32>
    %372 = tpu.matmul %278, %371, %cst_301 {dimension_numbers = #tpu.dot_dimension_numbers<[1], [0], [0], [1], [0, 0, 1, 1], [], []>} : vector<8x32xf32>, vector<32x8xf32>, vector<8x8xf32> -> vector<8x8xf32>
    %c1_302 = arith.constant 1 : index
    %c2_303 = arith.constant 2 : index
    %c0_304 = arith.constant 0 : index
    %c0_305 = arith.constant 0 : index
    %373 = vector.load %arg11[%c1_302, %c2_303, %c0_304, %c0_305] : memref<2x4x1x8xf32, #tpu.memory_space<vmem>>, vector<1x1x1x8xf32>
    %374 = vector.shape_cast %373 : vector<1x1x1x8xf32> to vector<1x8xf32>
    %375 = vector.broadcast %374 : vector<1x8xf32> to vector<8x8xf32>
    %376 = arith.addf %372, %375 : vector<8x8xf32>
    %cst_306 = arith.constant dense<0.000000e+00> : vector<8x8xf32>
    %377 = tpu.matmul %362, %369, %cst_306 {dimension_numbers = #tpu.dot_dimension_numbers<[1], [1], [0], [0], [0, 0, 1, 0], [], []>} : vector<8x8xf32>, vector<8x8xf32>, vector<8x8xf32> -> vector<8x8xf32>
    %cst_307 = arith.constant dense<0xFF800000> : vector<8xf32>
    %378 = vector.multi_reduction <maximumf>, %377, %cst_307 [1] : vector<8x8xf32> to vector<8xf32>
    %379 = vector.shape_cast %378 : vector<8xf32> to vector<8x1xf32>
    %380 = vector.broadcast %379 : vector<8x1xf32> to vector<8x8xf32>
    %381 = arith.subf %377, %380 : vector<8x8xf32>
    %382 = math.exp %381 : vector<8x8xf32>
    %cst_308 = arith.constant dense<0.000000e+00> : vector<8xf32>
    %383 = vector.multi_reduction <add>, %382, %cst_308 [1] : vector<8x8xf32> to vector<8xf32>
    %384 = vector.shape_cast %383 : vector<8xf32> to vector<8x1xf32>
    %385 = tpu.reciprocal %384 {approx = true} : vector<8x1xf32> -> vector<8x1xf32>
    %386 = vector.broadcast %385 : vector<8x1xf32> to vector<8x8xf32>
    %387 = arith.mulf %382, %386 : vector<8x8xf32>
    %cst_309 = arith.constant dense<0.000000e+00> : vector<8x8xf32>
    %388 = tpu.matmul %387, %376, %cst_309 {dimension_numbers = #tpu.dot_dimension_numbers<[1], [0], [0], [1], [0, 0, 1, 1], [], []>} : vector<8x8xf32>, vector<8x8xf32>, vector<8x8xf32> -> vector<8x8xf32>
    %c1_310 = arith.constant 1 : index
    %c2_311 = arith.constant 2 : index
    %c0_312 = arith.constant 0 : index
    %c0_313 = arith.constant 0 : index
    %389 = vector.load %arg12[%c1_310, %c2_311, %c0_312, %c0_313] : memref<2x4x8x32xf32, #tpu.memory_space<vmem>>, vector<1x1x8x32xf32>
    %390 = vector.shape_cast %389 : vector<1x1x8x32xf32> to vector<8x32xf32>
    %cst_314 = arith.constant dense<0.000000e+00> : vector<8x32xf32>
    %391 = tpu.matmul %388, %390, %cst_314 {dimension_numbers = #tpu.dot_dimension_numbers<[1], [0], [0], [1], [0, 0, 1, 1], [], []>} : vector<8x8xf32>, vector<8x32xf32>, vector<8x32xf32> -> vector<8x32xf32>
    %392 = arith.addf %355, %391 : vector<8x32xf32>
    %c1_315 = arith.constant 1 : index
    %c3_316 = arith.constant 3 : index
    %c0_317 = arith.constant 0 : index
    %c0_318 = arith.constant 0 : index
    %393 = vector.load %arg6[%c1_315, %c3_316, %c0_317, %c0_318] : memref<2x4x32x8xf32, #tpu.memory_space<vmem>>, vector<1x1x32x8xf32>
    %394 = vector.shape_cast %393 : vector<1x1x32x8xf32> to vector<32x8xf32>
    %cst_319 = arith.constant dense<0.000000e+00> : vector<8x8xf32>
    %395 = tpu.matmul %278, %394, %cst_319 {dimension_numbers = #tpu.dot_dimension_numbers<[1], [0], [0], [1], [0, 0, 1, 1], [], []>} : vector<8x32xf32>, vector<32x8xf32>, vector<8x8xf32> -> vector<8x8xf32>
    %c1_320 = arith.constant 1 : index
    %c3_321 = arith.constant 3 : index
    %c0_322 = arith.constant 0 : index
    %c0_323 = arith.constant 0 : index
    %396 = vector.load %arg7[%c1_320, %c3_321, %c0_322, %c0_323] : memref<2x4x1x8xf32, #tpu.memory_space<vmem>>, vector<1x1x1x8xf32>
    %397 = vector.shape_cast %396 : vector<1x1x1x8xf32> to vector<1x8xf32>
    %398 = vector.broadcast %397 : vector<1x8xf32> to vector<8x8xf32>
    %399 = arith.addf %395, %398 : vector<8x8xf32>
    %c1_324 = arith.constant 1 : index
    %c3_325 = arith.constant 3 : index
    %c0_326 = arith.constant 0 : index
    %c0_327 = arith.constant 0 : index
    %400 = vector.load %arg8[%c1_324, %c3_325, %c0_326, %c0_327] : memref<2x4x32x8xf32, #tpu.memory_space<vmem>>, vector<1x1x32x8xf32>
    %401 = vector.shape_cast %400 : vector<1x1x32x8xf32> to vector<32x8xf32>
    %cst_328 = arith.constant dense<0.000000e+00> : vector<8x8xf32>
    %402 = tpu.matmul %278, %401, %cst_328 {dimension_numbers = #tpu.dot_dimension_numbers<[1], [0], [0], [1], [0, 0, 1, 1], [], []>} : vector<8x32xf32>, vector<32x8xf32>, vector<8x8xf32> -> vector<8x8xf32>
    %c1_329 = arith.constant 1 : index
    %c3_330 = arith.constant 3 : index
    %c0_331 = arith.constant 0 : index
    %c0_332 = arith.constant 0 : index
    %403 = vector.load %arg9[%c1_329, %c3_330, %c0_331, %c0_332] : memref<2x4x1x8xf32, #tpu.memory_space<vmem>>, vector<1x1x1x8xf32>
    %404 = vector.shape_cast %403 : vector<1x1x1x8xf32> to vector<1x8xf32>
    %405 = vector.broadcast %404 : vector<1x8xf32> to vector<8x8xf32>
    %406 = arith.addf %402, %405 : vector<8x8xf32>
    %c1_333 = arith.constant 1 : index
    %c3_334 = arith.constant 3 : index
    %c0_335 = arith.constant 0 : index
    %c0_336 = arith.constant 0 : index
    %407 = vector.load %arg10[%c1_333, %c3_334, %c0_335, %c0_336] : memref<2x4x32x8xf32, #tpu.memory_space<vmem>>, vector<1x1x32x8xf32>
    %408 = vector.shape_cast %407 : vector<1x1x32x8xf32> to vector<32x8xf32>
    %cst_337 = arith.constant dense<0.000000e+00> : vector<8x8xf32>
    %409 = tpu.matmul %278, %408, %cst_337 {dimension_numbers = #tpu.dot_dimension_numbers<[1], [0], [0], [1], [0, 0, 1, 1], [], []>} : vector<8x32xf32>, vector<32x8xf32>, vector<8x8xf32> -> vector<8x8xf32>
    %c1_338 = arith.constant 1 : index
    %c3_339 = arith.constant 3 : index
    %c0_340 = arith.constant 0 : index
    %c0_341 = arith.constant 0 : index
    %410 = vector.load %arg11[%c1_338, %c3_339, %c0_340, %c0_341] : memref<2x4x1x8xf32, #tpu.memory_space<vmem>>, vector<1x1x1x8xf32>
    %411 = vector.shape_cast %410 : vector<1x1x1x8xf32> to vector<1x8xf32>
    %412 = vector.broadcast %411 : vector<1x8xf32> to vector<8x8xf32>
    %413 = arith.addf %409, %412 : vector<8x8xf32>
    %cst_342 = arith.constant dense<0.000000e+00> : vector<8x8xf32>
    %414 = tpu.matmul %399, %406, %cst_342 {dimension_numbers = #tpu.dot_dimension_numbers<[1], [1], [0], [0], [0, 0, 1, 0], [], []>} : vector<8x8xf32>, vector<8x8xf32>, vector<8x8xf32> -> vector<8x8xf32>
    %cst_343 = arith.constant dense<0xFF800000> : vector<8xf32>
    %415 = vector.multi_reduction <maximumf>, %414, %cst_343 [1] : vector<8x8xf32> to vector<8xf32>
    %416 = vector.shape_cast %415 : vector<8xf32> to vector<8x1xf32>
    %417 = vector.broadcast %416 : vector<8x1xf32> to vector<8x8xf32>
    %418 = arith.subf %414, %417 : vector<8x8xf32>
    %419 = math.exp %418 : vector<8x8xf32>
    %cst_344 = arith.constant dense<0.000000e+00> : vector<8xf32>
    %420 = vector.multi_reduction <add>, %419, %cst_344 [1] : vector<8x8xf32> to vector<8xf32>
    %421 = vector.shape_cast %420 : vector<8xf32> to vector<8x1xf32>
    %422 = tpu.reciprocal %421 {approx = true} : vector<8x1xf32> -> vector<8x1xf32>
    %423 = vector.broadcast %422 : vector<8x1xf32> to vector<8x8xf32>
    %424 = arith.mulf %419, %423 : vector<8x8xf32>
    %cst_345 = arith.constant dense<0.000000e+00> : vector<8x8xf32>
    %425 = tpu.matmul %424, %413, %cst_345 {dimension_numbers = #tpu.dot_dimension_numbers<[1], [0], [0], [1], [0, 0, 1, 1], [], []>} : vector<8x8xf32>, vector<8x8xf32>, vector<8x8xf32> -> vector<8x8xf32>
    %c1_346 = arith.constant 1 : index
    %c3_347 = arith.constant 3 : index
    %c0_348 = arith.constant 0 : index
    %c0_349 = arith.constant 0 : index
    %426 = vector.load %arg12[%c1_346, %c3_347, %c0_348, %c0_349] : memref<2x4x8x32xf32, #tpu.memory_space<vmem>>, vector<1x1x8x32xf32>
    %427 = vector.shape_cast %426 : vector<1x1x8x32xf32> to vector<8x32xf32>
    %cst_350 = arith.constant dense<0.000000e+00> : vector<8x32xf32>
    %428 = tpu.matmul %425, %427, %cst_350 {dimension_numbers = #tpu.dot_dimension_numbers<[1], [0], [0], [1], [0, 0, 1, 1], [], []>} : vector<8x8xf32>, vector<8x32xf32>, vector<8x32xf32> -> vector<8x32xf32>
    %429 = arith.addf %392, %428 : vector<8x32xf32>
    %430 = arith.addf %252, %429 : vector<8x32xf32>
    %c1_351 = arith.constant 1 : index
    %c0_352 = arith.constant 0 : index
    %c0_353 = arith.constant 0 : index
    %431 = vector.load %arg14[%c1_351, %c0_352, %c0_353] : memref<2x1x32xf32, #tpu.memory_space<vmem>>, vector<1x1x32xf32>
    %432 = vector.shape_cast %431 : vector<1x1x32xf32> to vector<1x32xf32>
    %c1_354 = arith.constant 1 : index
    %c0_355 = arith.constant 0 : index
    %c0_356 = arith.constant 0 : index
    %433 = vector.load %arg15[%c1_354, %c0_355, %c0_356] : memref<2x1x32xf32, #tpu.memory_space<vmem>>, vector<1x1x32xf32>
    %434 = vector.shape_cast %433 : vector<1x1x32xf32> to vector<1x32xf32>
    %cst_357 = arith.constant dense<0.000000e+00> : vector<8xf32>
    %435 = vector.multi_reduction <add>, %430, %cst_357 [1] : vector<8x32xf32> to vector<8xf32>
    %436 = vector.shape_cast %435 : vector<8xf32> to vector<8x1xf32>
    %cst_358 = arith.constant 3.200000e+01 : f32
    %437 = vector.broadcast %cst_358 : f32 to vector<8x1xf32>
    %438 = arith.divf %436, %437 : vector<8x1xf32>
    %439 = vector.broadcast %438 : vector<8x1xf32> to vector<8x32xf32>
    %440 = arith.subf %430, %439 : vector<8x32xf32>
    %441 = arith.mulf %440, %440 : vector<8x32xf32>
    %cst_359 = arith.constant dense<0.000000e+00> : vector<8xf32>
    %442 = vector.multi_reduction <add>, %441, %cst_359 [1] : vector<8x32xf32> to vector<8xf32>
    %443 = vector.shape_cast %442 : vector<8xf32> to vector<8x1xf32>
    %cst_360 = arith.constant 3.200000e+01 : f32
    %444 = vector.broadcast %cst_360 : f32 to vector<8x1xf32>
    %445 = arith.divf %443, %444 : vector<8x1xf32>
    %446 = vector.broadcast %438 : vector<8x1xf32> to vector<8x32xf32>
    %447 = arith.subf %430, %446 : vector<8x32xf32>
    %cst_361 = arith.constant 9.99999974E-6 : f32
    %448 = vector.broadcast %cst_361 : f32 to vector<8x1xf32>
    %449 = arith.addf %445, %448 : vector<8x1xf32>
    %450 = math.rsqrt %449 : vector<8x1xf32>
    %451 = vector.broadcast %450 : vector<8x1xf32> to vector<8x32xf32>
    %452 = arith.mulf %447, %451 : vector<8x32xf32>
    %453 = vector.broadcast %432 : vector<1x32xf32> to vector<8x32xf32>
    %454 = arith.mulf %452, %453 : vector<8x32xf32>
    %455 = vector.broadcast %434 : vector<1x32xf32> to vector<8x32xf32>
    %456 = arith.addf %454, %455 : vector<8x32xf32>
    %c1_362 = arith.constant 1 : index
    %c0_363 = arith.constant 0 : index
    %c0_364 = arith.constant 0 : index
    %457 = vector.load %arg16[%c1_362, %c0_363, %c0_364] : memref<2x32x64xf32, #tpu.memory_space<vmem>>, vector<1x32x64xf32>
    %458 = vector.shape_cast %457 : vector<1x32x64xf32> to vector<32x64xf32>
    %cst_365 = arith.constant dense<0.000000e+00> : vector<8x64xf32>
    %459 = tpu.matmul %456, %458, %cst_365 {dimension_numbers = #tpu.dot_dimension_numbers<[1], [0], [0], [1], [0, 0, 1, 1], [], []>} : vector<8x32xf32>, vector<32x64xf32>, vector<8x64xf32> -> vector<8x64xf32>
    %c1_366 = arith.constant 1 : index
    %c0_367 = arith.constant 0 : index
    %c0_368 = arith.constant 0 : index
    %460 = vector.load %arg17[%c1_366, %c0_367, %c0_368] : memref<2x1x64xf32, #tpu.memory_space<vmem>>, vector<1x1x64xf32>
    %461 = vector.shape_cast %460 : vector<1x1x64xf32> to vector<1x64xf32>
    %462 = vector.broadcast %461 : vector<1x64xf32> to vector<8x64xf32>
    %463 = arith.addf %459, %462 : vector<8x64xf32>
    %cst_369 = arith.constant 5.000000e-01 : f32
    %464 = vector.broadcast %cst_369 : f32 to vector<8x64xf32>
    %465 = arith.mulf %464, %463 : vector<8x64xf32>
    %cst_370 = arith.constant 0.707106769 : f32
    %466 = vector.broadcast %cst_370 : f32 to vector<8x64xf32>
    %467 = arith.mulf %463, %466 : vector<8x64xf32>
    %468 = math.erf %467 : vector<8x64xf32>
    %cst_371 = arith.constant 1.000000e+00 : f32
    %469 = vector.broadcast %cst_371 : f32 to vector<8x64xf32>
    %470 = arith.addf %469, %468 : vector<8x64xf32>
    %471 = arith.mulf %465, %470 : vector<8x64xf32>
    %c1_372 = arith.constant 1 : index
    %c0_373 = arith.constant 0 : index
    %c0_374 = arith.constant 0 : index
    %472 = vector.load %arg18[%c1_372, %c0_373, %c0_374] : memref<2x64x32xf32, #tpu.memory_space<vmem>>, vector<1x64x32xf32>
    %473 = vector.shape_cast %472 : vector<1x64x32xf32> to vector<64x32xf32>
    %cst_375 = arith.constant dense<0.000000e+00> : vector<8x32xf32>
    %474 = tpu.matmul %471, %473, %cst_375 {dimension_numbers = #tpu.dot_dimension_numbers<[1], [0], [0], [1], [0, 0, 1, 1], [], []>} : vector<8x64xf32>, vector<64x32xf32>, vector<8x32xf32> -> vector<8x32xf32>
    %c1_376 = arith.constant 1 : index
    %c0_377 = arith.constant 0 : index
    %c0_378 = arith.constant 0 : index
    %475 = vector.load %arg19[%c1_376, %c0_377, %c0_378] : memref<2x1x32xf32, #tpu.memory_space<vmem>>, vector<1x1x32xf32>
    %476 = vector.shape_cast %475 : vector<1x1x32xf32> to vector<1x32xf32>
    %477 = vector.broadcast %476 : vector<1x32xf32> to vector<8x32xf32>
    %478 = arith.addf %474, %477 : vector<8x32xf32>
    %479 = arith.addf %430, %478 : vector<8x32xf32>
    %c0_379 = arith.constant 0 : index
    %c0_380 = arith.constant 0 : index
    %c0_381 = arith.constant 0 : index
    %480 = vector.load %arg20[%c0_379, %c0_380, %c0_381] : memref<1x8x32xf32, #tpu.memory_space<vmem>>, vector<1x8x32xf32>
    %481 = vector.shape_cast %480 : vector<1x8x32xf32> to vector<8x32xf32>
    %482 = vector.shape_cast %479 : vector<8x32xf32> to vector<1x8x32xf32>
    tpu.vector_store %arg20[%c0_379, %c0_380, %c0_381], %482 {strides = array<i32>} : memref<1x8x32xf32, #tpu.memory_space<vmem>>, vector<1x8x32xf32>,
    return
  }
  func.func @transform_0(%arg0: i32) -> (i32, i32, i32) {
    %c0_i32 = arith.constant 0 : i32
    %c0_i32_0 = arith.constant 0 : i32
    %c0_i32_1 = arith.constant 0 : i32
    return %arg0, %c0_i32, %c0_i32_0 : i32, i32, i32
  }
  func.func @transform_1(%arg0: i32) -> (i32, i32) {
    %c0_i32 = arith.constant 0 : i32
    %c0_i32_0 = arith.constant 0 : i32
    %c0_i32_1 = arith.constant 0 : i32
    return %c0_i32, %c0_i32_0 : i32, i32
  }
  func.func @transform_2(%arg0: i32) -> (i32, i32) {
    %c0_i32 = arith.constant 0 : i32
    %c0_i32_0 = arith.constant 0 : i32
    %c0_i32_1 = arith.constant 0 : i32
    return %c0_i32, %c0_i32_0 : i32, i32
  }
  func.func @transform_3(%arg0: i32) -> (i32, i32, i32) {
    %c0_i32 = arith.constant 0 : i32
    %c0_i32_0 = arith.constant 0 : i32
    %c0_i32_1 = arith.constant 0 : i32
    %c0_i32_2 = arith.constant 0 : i32
    return %c0_i32, %c0_i32_0, %c0_i32_1 : i32, i32, i32
  }
  func.func @transform_4(%arg0: i32) -> (i32, i32, i32) {
    %c0_i32 = arith.constant 0 : i32
    %c0_i32_0 = arith.constant 0 : i32
    %c0_i32_1 = arith.constant 0 : i32
    %c0_i32_2 = arith.constant 0 : i32
    return %c0_i32, %c0_i32_0, %c0_i32_1 : i32, i32, i32
  }
  func.func @transform_5(%arg0: i32) -> (i32, i32, i32, i32) {
    %c0_i32 = arith.constant 0 : i32
    %c0_i32_0 = arith.constant 0 : i32
    %c0_i32_1 = arith.constant 0 : i32
    %c0_i32_2 = arith.constant 0 : i32
    %c0_i32_3 = arith.constant 0 : i32
    return %c0_i32, %c0_i32_0, %c0_i32_1, %c0_i32_2 : i32, i32, i32, i32
  }
  func.func @transform_6(%arg0: i32) -> (i32, i32, i32, i32) {
    %c0_i32 = arith.constant 0 : i32
    %c0_i32_0 = arith.constant 0 : i32
    %c0_i32_1 = arith.constant 0 : i32
    %c0_i32_2 = arith.constant 0 : i32
    %c0_i32_3 = arith.constant 0 : i32
    return %c0_i32, %c0_i32_0, %c0_i32_1, %c0_i32_2 : i32, i32, i32, i32
  }
  func.func @transform_7(%arg0: i32) -> (i32, i32, i32, i32) {
    %c0_i32 = arith.constant 0 : i32
    %c0_i32_0 = arith.constant 0 : i32
    %c0_i32_1 = arith.constant 0 : i32
    %c0_i32_2 = arith.constant 0 : i32
    %c0_i32_3 = arith.constant 0 : i32
    return %c0_i32, %c0_i32_0, %c0_i32_1, %c0_i32_2 : i32, i32, i32, i32
  }
  func.func @transform_8(%arg0: i32) -> (i32, i32, i32, i32) {
    %c0_i32 = arith.constant 0 : i32
    %c0_i32_0 = arith.constant 0 : i32
    %c0_i32_1 = arith.constant 0 : i32
    %c0_i32_2 = arith.constant 0 : i32
    %c0_i32_3 = arith.constant 0 : i32
    return %c0_i32, %c0_i32_0, %c0_i32_1, %c0_i32_2 : i32, i32, i32, i32
  }
  func.func @transform_9(%arg0: i32) -> (i32, i32, i32, i32) {
    %c0_i32 = arith.constant 0 : i32
    %c0_i32_0 = arith.constant 0 : i32
    %c0_i32_1 = arith.constant 0 : i32
    %c0_i32_2 = arith.constant 0 : i32
    %c0_i32_3 = arith.constant 0 : i32
    return %c0_i32, %c0_i32_0, %c0_i32_1, %c0_i32_2 : i32, i32, i32, i32
  }
  func.func @transform_10(%arg0: i32) -> (i32, i32, i32, i32) {
    %c0_i32 = arith.constant 0 : i32
    %c0_i32_0 = arith.constant 0 : i32
    %c0_i32_1 = arith.constant 0 : i32
    %c0_i32_2 = arith.constant 0 : i32
    %c0_i32_3 = arith.constant 0 : i32
    return %c0_i32, %c0_i32_0, %c0_i32_1, %c0_i32_2 : i32, i32, i32, i32
  }
  func.func @transform_11(%arg0: i32) -> (i32, i32, i32, i32) {
    %c0_i32 = arith.constant 0 : i32
    %c0_i32_0 = arith.constant 0 : i32
    %c0_i32_1 = arith.constant 0 : i32
    %c0_i32_2 = arith.constant 0 : i32
    %c0_i32_3 = arith.constant 0 : i32
    return %c0_i32, %c0_i32_0, %c0_i32_1, %c0_i32_2 : i32, i32, i32, i32
  }
  func.func @transform_12(%arg0: i32) -> (i32, i32, i32) {
    %c0_i32 = arith.constant 0 : i32
    %c0_i32_0 = arith.constant 0 : i32
    %c0_i32_1 = arith.constant 0 : i32
    %c0_i32_2 = arith.constant 0 : i32
    return %c0_i32, %c0_i32_0, %c0_i32_1 : i32, i32, i32
  }
  func.func @transform_13(%arg0: i32) -> (i32, i32, i32) {
    %c0_i32 = arith.constant 0 : i32
    %c0_i32_0 = arith.constant 0 : i32
    %c0_i32_1 = arith.constant 0 : i32
    %c0_i32_2 = arith.constant 0 : i32
    return %c0_i32, %c0_i32_0, %c0_i32_1 : i32, i32, i32
  }
  func.func @transform_14(%arg0: i32) -> (i32, i32, i32) {
    %c0_i32 = arith.constant 0 : i32
    %c0_i32_0 = arith.constant 0 : i32
    %c0_i32_1 = arith.constant 0 : i32
    %c0_i32_2 = arith.constant 0 : i32
    return %c0_i32, %c0_i32_0, %c0_i32_1 : i32, i32, i32
  }
  func.func @transform_15(%arg0: i32) -> (i32, i32, i32) {
    %c0_i32 = arith.constant 0 : i32
    %c0_i32_0 = arith.constant 0 : i32
    %c0_i32_1 = arith.constant 0 : i32
    %c0_i32_2 = arith.constant 0 : i32
    return %c0_i32, %c0_i32_0, %c0_i32_1 : i32, i32, i32
  }
  func.func @transform_16(%arg0: i32) -> (i32, i32, i32) {
    %c0_i32 = arith.constant 0 : i32
    %c0_i32_0 = arith.constant 0 : i32
    %c0_i32_1 = arith.constant 0 : i32
    %c0_i32_2 = arith.constant 0 : i32
    return %c0_i32, %c0_i32_0, %c0_i32_1 : i32, i32, i32
  }
  func.func @transform_17(%arg0: i32) -> (i32, i32, i32) {
    %c0_i32 = arith.constant 0 : i32
    %c0_i32_0 = arith.constant 0 : i32
    %c0_i32_1 = arith.constant 0 : i32
    %c0_i32_2 = arith.constant 0 : i32
    return %c0_i32, %c0_i32_0, %c0_i32_1 : i32, i32, i32
  }
  func.func @transform_18(%arg0: i32) -> (i32, i32, i32) {
    %c0_i32 = arith.constant 0 : i32
    %c0_i32_0 = arith.constant 0 : i32
    %c0_i32_1 = arith.constant 0 : i32
    %c0_i32_2 = arith.constant 0 : i32
    return %c0_i32, %c0_i32_0, %c0_i32_1 : i32, i32, i32
  }
  func.func @transform_19(%arg0: i32) -> (i32, i32, i32) {
    %c0_i32 = arith.constant 0 : i32
    %c0_i32_0 = arith.constant 0 : i32
    %c0_i32_1 = arith.constant 0 : i32
    return %arg0, %c0_i32, %c0_i32_0 : i32, i32, i32
  }
}

</mosaic_0001>

<llo_original>
// kernel: tpu_custom_call.1
$region0: #{tpu_custom_call.1}
  #allocation0 [shape = 'u32[]', space=smem, size = 0x4, offset = 0x4, fixed_abs, tag = 'smem constant byte address 0x4 - core index']
  #allocation1 [shape = 'u32[72,128]{1,0:T(1,128)}', space=vmem, size = 0x9000, scoped, tag = 'internal scratch']
  %s0 = inlined_call_operand.vmem [shape: f32[2,8,32], index: 0, kind: input, shape index: {}]
  %s1 = inlined_call_operand.vmem [shape: f32[1,32], index: 1, kind: input, shape index: {}]
  %s2 = inlined_call_operand.vmem [shape: f32[1,32], index: 2, kind: input, shape index: {}]
  %s3 = inlined_call_operand.vmem [shape: f32[2,1,32], index: 3, kind: input, shape index: {}]
  %s4 = inlined_call_operand.vmem [shape: f32[2,1,32], index: 4, kind: input, shape index: {}]
  %s5 = inlined_call_operand.vmem [shape: f32[2,4,32,8], index: 5, kind: input, shape index: {}]
  %s6 = inlined_call_operand.vmem [shape: f32[2,4,1,8], index: 6, kind: input, shape index: {}]
  %s7 = inlined_call_operand.vmem [shape: f32[2,4,32,8], index: 7, kind: input, shape index: {}]
  %s8 = inlined_call_operand.vmem [shape: f32[2,4,1,8], index: 8, kind: input, shape index: {}]
  %s9 = inlined_call_operand.vmem [shape: f32[2,4,32,8], index: 9, kind: input, shape index: {}]
  %s10 = inlined_call_operand.vmem [shape: f32[2,4,1,8], index: 10, kind: input, shape index: {}]
  %s11 = inlined_call_operand.vmem [shape: f32[2,4,8,32], index: 11, kind: input, shape index: {}]
  %s12 = inlined_call_operand.vmem [shape: f32[2,1,32], index: 12, kind: input, shape index: {}]
  %s13 = inlined_call_operand.vmem [shape: f32[2,1,32], index: 13, kind: input, shape index: {}]
  %s14 = inlined_call_operand.vmem [shape: f32[2,1,32], index: 14, kind: input, shape index: {}]
  %s15 = inlined_call_operand.vmem [shape: f32[2,32,64], index: 15, kind: input, shape index: {}]
  %s16 = inlined_call_operand.vmem [shape: f32[2,1,64], index: 16, kind: input, shape index: {}]
  %s17 = inlined_call_operand.vmem [shape: f32[2,64,32], index: 17, kind: input, shape index: {}]
  %s18 = inlined_call_operand.vmem [shape: f32[2,1,32], index: 18, kind: input, shape index: {}]
  %s19 = inlined_call_operand.hbm [shape: f32[2,8,32], index: 19, kind: output, shape index: {}]
  %s20 = sld [smem:[#allocation0]]
  $region109: #{tpu_custom_call.1} parent=0
    _
  %s22 = ssub.s32 1, %s20
  %s23 = scalar_select 0, %s22, %s20
  $region1: #{tpu_custom_call.1} parent=0
    #allocation2 [shape = 'u8[8192]{0}', space=vmem, size = 0x2000, scoped, tag = 'output window, operand 0']
    #allocation3 [shape = 's32[2]{0}', space=sflag, size = 0x8, scoped, tag = 'scoped memory for tpu_custom_call.1']
    %24 = vsyncpa [#allocation3], 0
    %s25 = scalar_lea.sflag [#allocation3], 1
    %26 = vsyncpa %s25, 0
    loop: start=0, step=1, limit=4
    $region2: #{tpu_custom_call.1} parent=1 // loop_pre_header
      _
    $region3: #{tpu_custom_call.1} parent=1 // loop_header
      %s28 = sphi 0, %s32
      %p29 = scmp.ge.s32.totalorder %s28, 4
      %s38 = sphi 0, %s40
      %s41 = sphi 0, %s38
      %s42 = sphi 0, %s41
      %s58 = sphi 0, %s42
      %s62 = sphi 0, %s62
      %s64 = sphi 0, %s62
      %s65 = sphi 0, %s64
      %s79 = sphi 0, %s65
      %s83 = sphi 0, %s83
      %s85 = sphi 0, %s83
      %s86 = sphi 0, %s85
      %s100 = sphi 0, %s86
      %s104 = sphi 0, %s104
      %s106 = sphi 0, %s104
      %s107 = sphi 0, %s106
      %s121 = sphi 0, %s107
      %s125 = sphi 0, %s125
      %s127 = sphi 0, %s125
      %s128 = sphi 0, %s127
      %s142 = sphi 0, %s128
      %s146 = sphi 0, %s146
      %s148 = sphi 0, %s146
      %s149 = sphi 0, %s148
      %s163 = sphi 0, %s149
      %s167 = sphi 0, %s167
      %s169 = sphi 0, %s167
      %s170 = sphi 0, %s169
      %s184 = sphi 0, %s170
      %s188 = sphi 0, %s188
      %s190 = sphi 0, %s188
      %s191 = sphi 0, %s190
      %s205 = sphi 0, %s191
      %s209 = sphi 0, %s209
      %s211 = sphi 0, %s209
      %s212 = sphi 0, %s211
      %s226 = sphi 0, %s212
      %s230 = sphi 0, %s230
      %s232 = sphi 0, %s230
      %s233 = sphi 0, %s232
      %s247 = sphi 0, %s233
      %s251 = sphi 0, %s251
      %s253 = sphi 0, %s251
      %s254 = sphi 0, %s253
      %s268 = sphi 0, %s254
      %s272 = sphi 0, %s272
      %s274 = sphi 0, %s272
      %s275 = sphi 0, %s274
      %s289 = sphi 0, %s275
      %s293 = sphi 0, %s293
      %s295 = sphi 0, %s293
      %s296 = sphi 0, %s295
      %s310 = sphi 0, %s296
      %s314 = sphi 0, %s314
      %s316 = sphi 0, %s314
      %s317 = sphi 0, %s316
      %s331 = sphi 0, %s317
      %s335 = sphi 0, %s335
      %s337 = sphi 0, %s335
      %s338 = sphi 0, %s337
      %s352 = sphi 0, %s338
      %s356 = sphi 0, %s356
      %s358 = sphi 0, %s356
      %s359 = sphi 0, %s358
      %s373 = sphi 0, %s359
      %s377 = sphi 0, %s377
      %s379 = sphi 0, %s377
      %s380 = sphi 0, %s379
      %s394 = sphi 0, %s380
      %s398 = sphi 0, %s398
      %s400 = sphi 0, %s398
      %s401 = sphi 0, %s400
      %s415 = sphi 0, %s401
      %s419 = sphi 0, %s419
      %s421 = sphi 0, %s419
      %s422 = sphi 0, %s421
      %s436 = sphi 0, %s422
      %s442 = sphi 0, %s444
      %s445 = sphi 0, %s442
      %s446 = sphi 0, %s445
      %s462 = sphi 0, %s446
    $region4: #{tpu_custom_call.1} parent=1 // loop_header_branch
      %31 = sbr.rel (%p29) target = $region8
    $region5: #{tpu_custom_call.1} parent=1 // loop_body
      %s33 = ssub.s32 %s28, 1
      %s34 = ssub.s32 %s28, 2
      %s35 = sadd.s32 %s28, 1
      %s36 = ssub.s32 %s28, %s35
      %p37 = scmp.eq.s32.totalorder %s36, 0
      %s39 = sadd.s32 %s38, 1
      %s40 = scalar_select %p37, %s38, %s39
      %p43 = pneg %p37
      %p44 = scmp.eq.s32.totalorder %s28, 1
      %p45 = por %p43, %p44
      %p46 = scmp.ne.s32.totalorder %s38, %s41
      %p47 = scmp.eq.s32.totalorder %s28, 0
      %p48 = por %p46, %p47
      %p49 = scmp.ne.s32.totalorder %s38, %s41
      %p50 = scmp.eq.s32.totalorder %s33, 1
      %p51 = por %p49, %p50
      %p52 = scmp.ne.s32.totalorder %s41, %s42
      %p53 = scmp.eq.s32.totalorder %s33, 0
      %p54 = por %p52, %p53
      %p55 = scmp.ne.s32.totalorder %s41, %s42
      %p56 = scmp.eq.s32.totalorder %s34, 1
      %p57 = por %p55, %p56
      %p59 = scmp.ne.s32.totalorder %s42, %s58
      %p60 = scmp.eq.s32.totalorder %s34, 0
      %p61 = por %p59, %p60
      %s63 = sadd.s32 %s62, 1
      %p66 = scmp.eq.s32.totalorder %s28, 1
      %p67 = scmp.ne.s32.totalorder %s62, %s64
      %p68 = scmp.eq.s32.totalorder %s28, 0
      %p69 = por %p67, %p68
      %p70 = scmp.ne.s32.totalorder %s62, %s64
      %p71 = scmp.eq.s32.totalorder %s33, 1
      %p72 = por %p70, %p71
      %p73 = scmp.ne.s32.totalorder %s64, %s65
      %p74 = scmp.eq.s32.totalorder %s33, 0
      %p75 = por %p73, %p74
      %p76 = scmp.ne.s32.totalorder %s64, %s65
      %p77 = scmp.eq.s32.totalorder %s34, 1
      %p78 = por %p76, %p77
      %p80 = scmp.ne.s32.totalorder %s65, %s79
      %p81 = scmp.eq.s32.totalorder %s34, 0
      %p82 = por %p80, %p81
      %s84 = sadd.s32 %s83, 1
      %p87 = scmp.eq.s32.totalorder %s28, 1
      %p88 = scmp.ne.s32.totalorder %s83, %s85
      %p89 = scmp.eq.s32.totalorder %s28, 0
      %p90 = por %p88, %p89
      %p91 = scmp.ne.s32.totalorder %s83, %s85
      %p92 = scmp.eq.s32.totalorder %s33, 1
      %p93 = por %p91, %p92
      %p94 = scmp.ne.s32.totalorder %s85, %s86
      %p95 = scmp.eq.s32.totalorder %s33, 0
      %p96 = por %p94, %p95
      %p97 = scmp.ne.s32.totalorder %s85, %s86
      %p98 = scmp.eq.s32.totalorder %s34, 1
      %p99 = por %p97, %p98
      %p101 = scmp.ne.s32.totalorder %s86, %s100
      %p102 = scmp.eq.s32.totalorder %s34, 0
      %p103 = por %p101, %p102
      %s105 = sadd.s32 %s104, 1
      %p108 = scmp.eq.s32.totalorder %s28, 1
      %p109 = scmp.ne.s32.totalorder %s104, %s106
      %p110 = scmp.eq.s32.totalorder %s28, 0
      %p111 = por %p109, %p110
      %p112 = scmp.ne.s32.totalorder %s104, %s106
      %p113 = scmp.eq.s32.totalorder %s33, 1
      %p114 = por %p112, %p113
      %p115 = scmp.ne.s32.totalorder %s106, %s107
      %p116 = scmp.eq.s32.totalorder %s33, 0
      %p117 = por %p115, %p116
      %p118 = scmp.ne.s32.totalorder %s106, %s107
      %p119 = scmp.eq.s32.totalorder %s34, 1
      %p120 = por %p118, %p119
      %p122 = scmp.ne.s32.totalorder %s107, %s121
      %p123 = scmp.eq.s32.totalorder %s34, 0
      %p124 = por %p122, %p123
      %s126 = sadd.s32 %s125, 1
      %p129 = scmp.eq.s32.totalorder %s28, 1
      %p130 = scmp.ne.s32.totalorder %s125, %s127
      %p131 = scmp.eq.s32.totalorder %s28, 0
      %p132 = por %p130, %p131
      %p133 = scmp.ne.s32.totalorder %s125, %s127
      %p134 = scmp.eq.s32.totalorder %s33, 1
      %p135 = por %p133, %p134
      %p136 = scmp.ne.s32.totalorder %s127, %s128
      %p137 = scmp.eq.s32.totalorder %s33, 0
      %p138 = por %p136, %p137
      %p139 = scmp.ne.s32.totalorder %s127, %s128
      %p140 = scmp.eq.s32.totalorder %s34, 1
      %p141 = por %p139, %p140
      %p143 = scmp.ne.s32.totalorder %s128, %s142
      %p144 = scmp.eq.s32.totalorder %s34, 0
      %p145 = por %p143, %p144
      %s147 = sadd.s32 %s146, 1
      %p150 = scmp.eq.s32.totalorder %s28, 1
      %p151 = scmp.ne.s32.totalorder %s146, %s148
      %p152 = scmp.eq.s32.totalorder %s28, 0
      %p153 = por %p151, %p152
      %p154 = scmp.ne.s32.totalorder %s146, %s148
      %p155 = scmp.eq.s32.totalorder %s33, 1
      %p156 = por %p154, %p155
      %p157 = scmp.ne.s32.totalorder %s148, %s149
      %p158 = scmp.eq.s32.totalorder %s33, 0
      %p159 = por %p157, %p158
      %p160 = scmp.ne.s32.totalorder %s148, %s149
      %p161 = scmp.eq.s32.totalorder %s34, 1
      %p162 = por %p160, %p161
      %p164 = scmp.ne.s32.totalorder %s149, %s163
      %p165 = scmp.eq.s32.totalorder %s34, 0
      %p166 = por %p164, %p165
      %s168 = sadd.s32 %s167, 1
      %p171 = scmp.eq.s32.totalorder %s28, 1
      %p172 = scmp.ne.s32.totalorder %s167, %s169
      %p173 = scmp.eq.s32.totalorder %s28, 0
      %p174 = por %p172, %p173
      %p175 = scmp.ne.s32.totalorder %s167, %s169
      %p176 = scmp.eq.s32.totalorder %s33, 1
      %p177 = por %p175, %p176
      %p178 = scmp.ne.s32.totalorder %s169, %s170
      %p179 = scmp.eq.s32.totalorder %s33, 0
      %p180 = por %p178, %p179
      %p181 = scmp.ne.s32.totalorder %s169, %s170
      %p182 = scmp.eq.s32.totalorder %s34, 1
      %p183 = por %p181, %p182
      %p185 = scmp.ne.s32.totalorder %s170, %s184
      %p186 = scmp.eq.s32.totalorder %s34, 0
      %p187 = por %p185, %p186
      %s189 = sadd.s32 %s188, 1
      %p192 = scmp.eq.s32.totalorder %s28, 1
      %p193 = scmp.ne.s32.totalorder %s188, %s190
      %p194 = scmp.eq.s32.totalorder %s28, 0
      %p195 = por %p193, %p194
      %p196 = scmp.ne.s32.totalorder %s188, %s190
      %p197 = scmp.eq.s32.totalorder %s33, 1
      %p198 = por %p196, %p197
      %p199 = scmp.ne.s32.totalorder %s190, %s191
      %p200 = scmp.eq.s32.totalorder %s33, 0
      %p201 = por %p199, %p200
      %p202 = scmp.ne.s32.totalorder %s190, %s191
      %p203 = scmp.eq.s32.totalorder %s34, 1
      %p204 = por %p202, %p203
      %p206 = scmp.ne.s32.totalorder %s191, %s205
      %p207 = scmp.eq.s32.totalorder %s34, 0
      %p208 = por %p206, %p207
      %s210 = sadd.s32 %s209, 1
      %p213 = scmp.eq.s32.totalorder %s28, 1
      %p214 = scmp.ne.s32.totalorder %s209, %s211
      %p215 = scmp.eq.s32.totalorder %s28, 0
      %p216 = por %p214, %p215
      %p217 = scmp.ne.s32.totalorder %s209, %s211
      %p218 = scmp.eq.s32.totalorder %s33, 1
      %p219 = por %p217, %p218
      %p220 = scmp.ne.s32.totalorder %s211, %s212
      %p221 = scmp.eq.s32.totalorder %s33, 0
      %p222 = por %p220, %p221
      %p223 = scmp.ne.s32.totalorder %s211, %s212
      %p224 = scmp.eq.s32.totalorder %s34, 1
      %p225 = por %p223, %p224
      %p227 = scmp.ne.s32.totalorder %s212, %s226
      %p228 = scmp.eq.s32.totalorder %s34, 0
      %p229 = por %p227, %p228
      %s231 = sadd.s32 %s230, 1
      %p234 = scmp.eq.s32.totalorder %s28, 1
      %p235 = scmp.ne.s32.totalorder %s230, %s232
      %p236 = scmp.eq.s32.totalorder %s28, 0
      %p237 = por %p235, %p236
      %p238 = scmp.ne.s32.totalorder %s230, %s232
      %p239 = scmp.eq.s32.totalorder %s33, 1
      %p240 = por %p238, %p239
      %p241 = scmp.ne.s32.totalorder %s232, %s233
      %p242 = scmp.eq.s32.totalorder %s33, 0
      %p243 = por %p241, %p242
      %p244 = scmp.ne.s32.totalorder %s232, %s233
      %p245 = scmp.eq.s32.totalorder %s34, 1
      %p246 = por %p244, %p245
      %p248 = scmp.ne.s32.totalorder %s233, %s247
      %p249 = scmp.eq.s32.totalorder %s34, 0
      %p250 = por %p248, %p249
      %s252 = sadd.s32 %s251, 1
      %p255 = scmp.eq.s32.totalorder %s28, 1
      %p256 = scmp.ne.s32.totalorder %s251, %s253
      %p257 = scmp.eq.s32.totalorder %s28, 0
      %p258 = por %p256, %p257
      %p259 = scmp.ne.s32.totalorder %s251, %s253
      %p260 = scmp.eq.s32.totalorder %s33, 1
      %p261 = por %p259, %p260
      %p262 = scmp.ne.s32.totalorder %s253, %s254
      %p263 = scmp.eq.s32.totalorder %s33, 0
      %p264 = por %p262, %p263
      %p265 = scmp.ne.s32.totalorder %s253, %s254
      %p266 = scmp.eq.s32.totalorder %s34, 1
      %p267 = por %p265, %p266
      %p269 = scmp.ne.s32.totalorder %s254, %s268
      %p270 = scmp.eq.s32.totalorder %s34, 0
      %p271 = por %p269, %p270
      %s273 = sadd.s32 %s272, 1
      %p276 = scmp.eq.s32.totalorder %s28, 1
      %p277 = scmp.ne.s32.totalorder %s272, %s274
      %p278 = scmp.eq.s32.totalorder %s28, 0
      %p279 = por %p277, %p278
      %p280 = scmp.ne.s32.totalorder %s272, %s274
      %p281 = scmp.eq.s32.totalorder %s33, 1
      %p282 = por %p280, %p281
      %p283 = scmp.ne.s32.totalorder %s274, %s275
      %p284 = scmp.eq.s32.totalorder %s33, 0
      %p285 = por %p283, %p284
      %p286 = scmp.ne.s32.totalorder %s274, %s275
      %p287 = scmp.eq.s32.totalorder %s34, 1
      %p288 = por %p286, %p287
      %p290 = scmp.ne.s32.totalorder %s275, %s289
      %p291 = scmp.eq.s32.totalorder %s34, 0
      %p292 = por %p290, %p291
      %s294 = sadd.s32 %s293, 1
      %p297 = scmp.eq.s32.totalorder %s28, 1
      %p298 = scmp.ne.s32.totalorder %s293, %s295
      %p299 = scmp.eq.s32.totalorder %s28, 0
      %p300 = por %p298, %p299
      %p301 = scmp.ne.s32.totalorder %s293, %s295
      %p302 = scmp.eq.s32.totalorder %s33, 1
      %p303 = por %p301, %p302
      %p304 = scmp.ne.s32.totalorder %s295, %s296
      %p305 = scmp.eq.s32.totalorder %s33, 0
      %p306 = por %p304, %p305
      %p307 = scmp.ne.s32.totalorder %s295, %s296
      %p308 = scmp.eq.s32.totalorder %s34, 1
      %p309 = por %p307, %p308
      %p311 = scmp.ne.s32.totalorder %s296, %s310
      %p312 = scmp.eq.s32.totalorder %s34, 0
      %p313 = por %p311, %p312
      %s315 = sadd.s32 %s314, 1
      %p318 = scmp.eq.s32.totalorder %s28, 1
      %p319 = scmp.ne.s32.totalorder %s314, %s316
      %p320 = scmp.eq.s32.totalorder %s28, 0
      %p321 = por %p319, %p320
      %p322 = scmp.ne.s32.totalorder %s314, %s316
      %p323 = scmp.eq.s32.totalorder %s33, 1
      %p324 = por %p322, %p323
      %p325 = scmp.ne.s32.totalorder %s316, %s317
      %p326 = scmp.eq.s32.totalorder %s33, 0
      %p327 = por %p325, %p326
      %p328 = scmp.ne.s32.totalorder %s316, %s317
      %p329 = scmp.eq.s32.totalorder %s34, 1
      %p330 = por %p328, %p329
      %p332 = scmp.ne.s32.totalorder %s317, %s331
      %p333 = scmp.eq.s32.totalorder %s34, 0
      %p334 = por %p332, %p333
      %s336 = sadd.s32 %s335, 1
      %p339 = scmp.eq.s32.totalorder %s28, 1
      %p340 = scmp.ne.s32.totalorder %s335, %s337
      %p341 = scmp.eq.s32.totalorder %s28, 0
      %p342 = por %p340, %p341
      %p343 = scmp.ne.s32.totalorder %s335, %s337
      %p344 = scmp.eq.s32.totalorder %s33, 1
      %p345 = por %p343, %p344
      %p346 = scmp.ne.s32.totalorder %s337, %s338
      %p347 = scmp.eq.s32.totalorder %s33, 0
      %p348 = por %p346, %p347
      %p349 = scmp.ne.s32.totalorder %s337, %s338
      %p350 = scmp.eq.s32.totalorder %s34, 1
      %p351 = por %p349, %p350
      %p353 = scmp.ne.s32.totalorder %s338, %s352
      %p354 = scmp.eq.s32.totalorder %s34, 0
      %p355 = por %p353, %p354
      %s357 = sadd.s32 %s356, 1
      %p360 = scmp.eq.s32.totalorder %s28, 1
      %p361 = scmp.ne.s32.totalorder %s356, %s358
      %p362 = scmp.eq.s32.totalorder %s28, 0
      %p363 = por %p361, %p362
      %p364 = scmp.ne.s32.totalorder %s356, %s358
      %p365 = scmp.eq.s32.totalorder %s33, 1
      %p366 = por %p364, %p365
      %p367 = scmp.ne.s32.totalorder %s358, %s359
      %p368 = scmp.eq.s32.totalorder %s33, 0
      %p369 = por %p367, %p368
      %p370 = scmp.ne.s32.totalorder %s358, %s359
      %p371 = scmp.eq.s32.totalorder %s34, 1
      %p372 = por %p370, %p371
      %p374 = scmp.ne.s32.totalorder %s359, %s373
      %p375 = scmp.eq.s32.totalorder %s34, 0
      %p376 = por %p374, %p375
      %s378 = sadd.s32 %s377, 1
      %p381 = scmp.eq.s32.totalorder %s28, 1
      %p382 = scmp.ne.s32.totalorder %s377, %s379
      %p383 = scmp.eq.s32.totalorder %s28, 0
      %p384 = por %p382, %p383
      %p385 = scmp.ne.s32.totalorder %s377, %s379
      %p386 = scmp.eq.s32.totalorder %s33, 1
      %p387 = por %p385, %p386
      %p388 = scmp.ne.s32.totalorder %s379, %s380
      %p389 = scmp.eq.s32.totalorder %s33, 0
      %p390 = por %p388, %p389
      %p391 = scmp.ne.s32.totalorder %s379, %s380
      %p392 = scmp.eq.s32.totalorder %s34, 1
      %p393 = por %p391, %p392
      %p395 = scmp.ne.s32.totalorder %s380, %s394
      %p396 = scmp.eq.s32.totalorder %s34, 0
      %p397 = por %p395, %p396
      %s399 = sadd.s32 %s398, 1
      %p402 = scmp.eq.s32.totalorder %s28, 1
      %p403 = scmp.ne.s32.totalorder %s398, %s400
      %p404 = scmp.eq.s32.totalorder %s28, 0
      %p405 = por %p403, %p404
      %p406 = scmp.ne.s32.totalorder %s398, %s400
      %p407 = scmp.eq.s32.totalorder %s33, 1
      %p408 = por %p406, %p407
      %p409 = scmp.ne.s32.totalorder %s400, %s401
      %p410 = scmp.eq.s32.totalorder %s33, 0
      %p411 = por %p409, %p410
      %p412 = scmp.ne.s32.totalorder %s400, %s401
      %p413 = scmp.eq.s32.totalorder %s34, 1
      %p414 = por %p412, %p413
      %p416 = scmp.ne.s32.totalorder %s401, %s415
      %p417 = scmp.eq.s32.totalorder %s34, 0
      %p418 = por %p416, %p417
      %s420 = sadd.s32 %s419, 1
      %p423 = scmp.eq.s32.totalorder %s28, 1
      %p424 = scmp.ne.s32.totalorder %s419, %s421
      %p425 = scmp.eq.s32.totalorder %s28, 0
      %p426 = por %p424, %p425
      %p427 = scmp.ne.s32.totalorder %s419, %s421
      %p428 = scmp.eq.s32.totalorder %s33, 1
      %p429 = por %p427, %p428
      %p430 = scmp.ne.s32.totalorder %s421, %s422
      %p431 = scmp.eq.s32.totalorder %s33, 0
      %p432 = por %p430, %p431
      %p433 = scmp.ne.s32.totalorder %s421, %s422
      %p434 = scmp.eq.s32.totalorder %s34, 1
      %p435 = por %p433, %p434
      %p437 = scmp.ne.s32.totalorder %s422, %s436
      %p438 = scmp.eq.s32.totalorder %s34, 0
      %p439 = por %p437, %p438
      %s440 = ssub.s32 %s28, %s35
      %p441 = scmp.eq.s32.totalorder %s440, 0
      %s443 = sadd.s32 %s442, 1
      %s444 = scalar_select %p441, %s442, %s443
      %p447 = pneg %p441
      %p448 = scmp.eq.s32.totalorder %s28, 1
      %p449 = por %p447, %p448
      %p450 = scmp.ne.s32.totalorder %s442, %s445
      %p451 = scmp.eq.s32.totalorder %s28, 0
      %p452 = por %p450, %p451
      %p453 = scmp.ne.s32.totalorder %s442, %s445
      %p454 = scmp.eq.s32.totalorder %s33, 1
      %p455 = por %p453, %p454
      %p456 = scmp.ne.s32.totalorder %s445, %s446
      %p457 = scmp.eq.s32.totalorder %s33, 0
      %p458 = por %p456, %p457
      %p459 = scmp.ne.s32.totalorder %s445, %s446
      %p460 = scmp.eq.s32.totalorder %s34, 1
      %p461 = por %p459, %p460
      %p463 = scmp.ne.s32.totalorder %s446, %s462
      %p464 = scmp.eq.s32.totalorder %s34, 0
      %p465 = por %p463, %p464
      %p466 = scmp.le.s32.totalorder 1, %s28
      %p467 = scmp.lt.s32.totalorder %s28, 3
      %p468 = pnand %p466, %p467
      %p469 = pneg %p468
      // Predicated region
      $region9: #{tpu_custom_call.1} parent=5 // pred_check
        _
      $region10: #{tpu_custom_call.1} parent=5 // pred_check_branch
        %471 = sbr.rel (%p468) target = $region12
      $region11: #{tpu_custom_call.1} parent=5 // pred_region
        %s472 = ssub.s32 %s28, 1
        // Predicated region
        $region13: #{tpu_custom_call.1} parent=11 // pred_check
          %p473 = pneg %p75
        $region14: #{tpu_custom_call.1} parent=11 // pred_check_branch
          %475 = sbr.rel (%p473) target = $region16
        $region15: #{tpu_custom_call.1} parent=11 // pred_region
          _
        $region16: #{tpu_custom_call.1} parent=11 // pred_fallthru
          _
        // Predicated region
        $region17: #{tpu_custom_call.1} parent=11 // pred_check
          %p476 = pneg %p96
        $region18: #{tpu_custom_call.1} parent=11 // pred_check_branch
          %478 = sbr.rel (%p476) target = $region20
        $region19: #{tpu_custom_call.1} parent=11 // pred_region
          _
        $region20: #{tpu_custom_call.1} parent=11 // pred_fallthru
          _
        // Predicated region
        $region21: #{tpu_custom_call.1} parent=11 // pred_check
          %p479 = pneg %p117
        $region22: #{tpu_custom_call.1} parent=11 // pred_check_branch
          %481 = sbr.rel (%p479) target = $region24
        $region23: #{tpu_custom_call.1} parent=11 // pred_region
          _
        $region24: #{tpu_custom_call.1} parent=11 // pred_fallthru
          _
        // Predicated region
        $region25: #{tpu_custom_call.1} parent=11 // pred_check
          %p482 = pneg %p138
        $region26: #{tpu_custom_call.1} parent=11 // pred_check_branch
          %484 = sbr.rel (%p482) target = $region28
        $region27: #{tpu_custom_call.1} parent=11 // pred_region
          _
        $region28: #{tpu_custom_call.1} parent=11 // pred_fallthru
          _
        // Predicated region
        $region29: #{tpu_custom_call.1} parent=11 // pred_check
          %p485 = pneg %p159
        $region30: #{tpu_custom_call.1} parent=11 // pred_check_branch
          %487 = sbr.rel (%p485) target = $region32
        $region31: #{tpu_custom_call.1} parent=11 // pred_region
          _
        $region32: #{tpu_custom_call.1} parent=11 // pred_fallthru
          _
        // Predicated region
        $region33: #{tpu_custom_call.1} parent=11 // pred_check
          %p488 = pneg %p180
        $region34: #{tpu_custom_call.1} parent=11 // pred_check_branch
          %490 = sbr.rel (%p488) target = $region36
        $region35: #{tpu_custom_call.1} parent=11 // pred_region
          _
        $region36: #{tpu_custom_call.1} parent=11 // pred_fallthru
          _
        // Predicated region
        $region37: #{tpu_custom_call.1} parent=11 // pred_check
          %p491 = pneg %p201
        $region38: #{tpu_custom_call.1} parent=11 // pred_check_branch
          %493 = sbr.rel (%p491) target = $region40
        $region39: #{tpu_custom_call.1} parent=11 // pred_region
          _
        $region40: #{tpu_custom_call.1} parent=11 // pred_fallthru
          _
        // Predicated region
        $region41: #{tpu_custom_call.1} parent=11 // pred_check
          %p494 = pneg %p222
        $region42: #{tpu_custom_call.1} parent=11 // pred_check_branch
          %496 = sbr.rel (%p494) target = $region44
        $region43: #{tpu_custom_call.1} parent=11 // pred_region
          _
        $region44: #{tpu_custom_call.1} parent=11 // pred_fallthru
          _
        // Predicated region
        $region45: #{tpu_custom_call.1} parent=11 // pred_check
          %p497 = pneg %p243
        $region46: #{tpu_custom_call.1} parent=11 // pred_check_branch
          %499 = sbr.rel (%p497) target = $region48
        $region47: #{tpu_custom_call.1} parent=11 // pred_region
          _
        $region48: #{tpu_custom_call.1} parent=11 // pred_fallthru
          _
        // Predicated region
        $region49: #{tpu_custom_call.1} parent=11 // pred_check
          %p500 = pneg %p264
        $region50: #{tpu_custom_call.1} parent=11 // pred_check_branch
          %502 = sbr.rel (%p500) target = $region52
        $region51: #{tpu_custom_call.1} parent=11 // pred_region
          _
        $region52: #{tpu_custom_call.1} parent=11 // pred_fallthru
          _
        // Predicated region
        $region53: #{tpu_custom_call.1} parent=11 // pred_check
          %p503 = pneg %p285
        $region54: #{tpu_custom_call.1} parent=11 // pred_check_branch
          %505 = sbr.rel (%p503) target = $region56
        $region55: #{tpu_custom_call.1} parent=11 // pred_region
          _
        $region56: #{tpu_custom_call.1} parent=11 // pred_fallthru
          _
        // Predicated region
        $region57: #{tpu_custom_call.1} parent=11 // pred_check
          %p506 = pneg %p306
        $region58: #{tpu_custom_call.1} parent=11 // pred_check_branch
          %508 = sbr.rel (%p506) target = $region60
        $region59: #{tpu_custom_call.1} parent=11 // pred_region
          _
        $region60: #{tpu_custom_call.1} parent=11 // pred_fallthru
          _
        // Predicated region
        $region61: #{tpu_custom_call.1} parent=11 // pred_check
          %p509 = pneg %p327
        $region62: #{tpu_custom_call.1} parent=11 // pred_check_branch
          %511 = sbr.rel (%p509) target = $region64
        $region63: #{tpu_custom_call.1} parent=11 // pred_region
          _
        $region64: #{tpu_custom_call.1} parent=11 // pred_fallthru
          _
        // Predicated region
        $region65: #{tpu_custom_call.1} parent=11 // pred_check
          %p512 = pneg %p348
        $region66: #{tpu_custom_call.1} parent=11 // pred_check_branch
          %514 = sbr.rel (%p512) target = $region68
        $region67: #{tpu_custom_call.1} parent=11 // pred_region
          _
        $region68: #{tpu_custom_call.1} parent=11 // pred_fallthru
          _
        // Predicated region
        $region69: #{tpu_custom_call.1} parent=11 // pred_check
          %p515 = pneg %p369
        $region70: #{tpu_custom_call.1} parent=11 // pred_check_branch
          %517 = sbr.rel (%p515) target = $region72
        $region71: #{tpu_custom_call.1} parent=11 // pred_region
          _
        $region72: #{tpu_custom_call.1} parent=11 // pred_fallthru
          _
        // Predicated region
        $region73: #{tpu_custom_call.1} parent=11 // pred_check
          %p518 = pneg %p390
        $region74: #{tpu_custom_call.1} parent=11 // pred_check_branch
          %520 = sbr.rel (%p518) target = $region76
        $region75: #{tpu_custom_call.1} parent=11 // pred_region
          _
        $region76: #{tpu_custom_call.1} parent=11 // pred_fallthru
          _
        // Predicated region
        $region77: #{tpu_custom_call.1} parent=11 // pred_check
          %p521 = pneg %p411
        $region78: #{tpu_custom_call.1} parent=11 // pred_check_branch
          %523 = sbr.rel (%p521) target = $region80
        $region79: #{tpu_custom_call.1} parent=11 // pred_region
          _
        $region80: #{tpu_custom_call.1} parent=11 // pred_fallthru
          _
        // Predicated region
        $region81: #{tpu_custom_call.1} parent=11 // pred_check
          %p524 = pneg %p432
        $region82: #{tpu_custom_call.1} parent=11 // pred_check_branch
          %526 = sbr.rel (%p524) target = $region84
        $region83: #{tpu_custom_call.1} parent=11 // pred_region
          _
        $region84: #{tpu_custom_call.1} parent=11 // pred_fallthru
          _
      $region12: #{tpu_custom_call.1} parent=5 // pred_fallthru
        _
      %p527 = scmp.lt.s32.totalorder %s28, 2
      // Predicated region
      $region85: #{tpu_custom_call.1} parent=5 // pred_check
        %p528 = pneg %p527
      $region86: #{tpu_custom_call.1} parent=5 // pred_check_branch
        %530 = sbr.rel (%p528) target = $region88
      $region87: #{tpu_custom_call.1} parent=5 // pred_region
        // Predicated region
        $region89: #{tpu_custom_call.1} parent=87 // pred_check
          %p531 = pneg %p48
        $region90: #{tpu_custom_call.1} parent=87 // pred_check_branch
          %533 = sbr.rel (%p531) target = $region92
        $region91: #{tpu_custom_call.1} parent=87 // pred_region
          %p534 = scmp.lt.s32.totalorder %s28, 1
          %s535 = scalar_select %p534, %s28, 1
          %s536 = smul.addr %s535, 8
          %s537 = scalar_lea.vmem %s0, %s536
        $region92: #{tpu_custom_call.1} parent=87 // pred_fallthru
          _
      $region88: #{tpu_custom_call.1} parent=5 // pred_fallthru
        _
      %p538 = scmp.le.s32.totalorder 1, %s28
      %p539 = scmp.lt.s32.totalorder %s28, 3
      %p540 = pnand %p538, %p539
      %p541 = pneg %p540
      // Predicated region
      $region93: #{tpu_custom_call.1} parent=5 // pred_check
        _
      $region94: #{tpu_custom_call.1} parent=5 // pred_check_branch
        %543 = sbr.rel (%p540) target = $region96
      $region95: #{tpu_custom_call.1} parent=5 // pred_region
        %s544 = ssub.s32 %s28, 1
        %p545 = scmp.lt.s32.totalorder %s33, 1
        %s546 = scalar_select %p545, %s33, 1
        %s547 = smul.addr %s546, 8
        %s548 = scalar_lea.vmem %s0, %s547
        %p549 = pneg %p54
        %p550 = pneg %p51
        %p551 = pneg %p75
        %p552 = pneg %p72
        %p553 = pneg %p96
        %p554 = pneg %p93
        %p555 = pneg %p117
        %p556 = pneg %p114
        %p557 = pneg %p138
        %p558 = pneg %p135
        %p559 = pneg %p159
        %p560 = pneg %p156
        %p561 = pneg %p180
        %p562 = pneg %p177
        %p563 = pneg %p201
        %p564 = pneg %p198
        %p565 = pneg %p222
        %p566 = pneg %p219
        %p567 = pneg %p243
        %p568 = pneg %p240
        %p569 = pneg %p264
        %p570 = pneg %p261
        %p571 = pneg %p285
        %p572 = pneg %p282
        %p573 = pneg %p306
        %p574 = pneg %p303
        %p575 = pneg %p327
        %p576 = pneg %p324
        %p577 = pneg %p348
        %p578 = pneg %p345
        %p579 = pneg %p369
        %p580 = pneg %p366
        %p581 = pneg %p390
        %p582 = pneg %p387
        %p583 = pneg %p411
        %p584 = pneg %p408
        %p585 = pneg %p432
        %p586 = pneg %p429
        %p587 = pneg %p458
        %p588 = pneg %p455
        %s589 = sand.u32 %s445, 1
        %s590 = scalar_lea.sflag [#allocation3], %s589
        %s591 = sand.u32 %s445, 1
        %s592 = smul.addr %s591, 8
        %s593 = scalar_lea.vmem [#allocation2], %s592
        %p594 = scmp.lt.s32.totalorder %s33, 1
        %s595 = scalar_select %p594, %s33, 1
        %s596 = smul.addr %s595, 8
        %s597 = scalar_lea.vmem %s0, %s596
        %v598 = vld [vmem:[%s597] sm:$0xff]
        %v599 = vld [vmem:[%s1] sm:$0x1]
        %v600 = vld [vmem:[%s2] sm:$0x1]
        %vm601 = vcmask 261120
        %v602 = vsel %vm601, %v598, 0.0
        %603 = vadd.xlane.f32.xlu0 %v602
        %v604 = vpop.xlane.xlu0 %603
        %v605 = vrcp.pop 32.0
        %v606 = vmul.f32 32.0, %v605
        %v607 = vsub.f32 1.0, %v606
        %v608 = vmul.f32 %v605, %v607
        %v609 = vadd.f32 %v605, %v608
        %vm610 = vweird.f32 %v605
        %v611 = vsel %vm610, %v605, %v609
        %v612 = vmul.f32 %v604, %v611
        %v613 = vsub.f32 %v598, %v612
        %v614 = vmul.f32 %v613, %v613
        %v615 = vsel %vm601, %v614, 0.0
        %616 = vadd.xlane.f32.xlu0 %v615
        %v617 = vpop.xlane.xlu0 %616
        %v618 = vmul.f32 %v617, %v611
        %v619 = vadd.f32 %v618, 1e-12
        %v620 = vrsqrt.pop %v619
        %v621 = vmul.f32 %v620, %v619
        %v622 = vmul.f32 %v621, %v620
        %v623 = vmul.f32 0.5, %v622
        %v624 = vsub.f32 1.5, %v623
        %v625 = vmul.f32 %v620, %v624
        %vm626 = vweird.f32 %v619
        %vm627 = vweird.f32 %v620
        %vm628 = vmor %vm626, %vm627
        %v629 = vsel %vm628, %v620, %v625
        %v630 = vmul.f32 %v613, %v629
        %v632 = vperm.slane %v599, 0
        %v634 = vmul.f32 %v630, %v632
        %v636 = vperm.slane %v600, 0
        %v638 = vadd.f32 %v634, %v636
        %v639 = vld [vmem:[%s3] sm:$0x1]
        %v640 = vld [vmem:[%s4] sm:$0x1]
        %v641 = vsel %vm601, %v638, 0.0
        %642 = vadd.xlane.f32.xlu0 %v641
        %v643 = vpop.xlane.xlu0 %642
        %v644 = vmul.f32 %v643, %v611
        %v645 = vsub.f32 %v638, %v644
        %v646 = vmul.f32 %v645, %v645
        %v647 = vsel %vm601, %v646, 0.0
        %648 = vadd.xlane.f32.xlu0 %v647
        %v649 = vpop.xlane.xlu0 %648
        %v650 = vmul.f32 %v649, %v611
        %v651 = vadd.f32 %v650, 1e-05
        %v652 = vrsqrt.pop %v651
        %v653 = vmul.f32 %v652, %v651
        %v654 = vmul.f32 %v653, %v652
        %v655 = vmul.f32 0.5, %v654
        %v656 = vsub.f32 1.5, %v655
        %v657 = vmul.f32 %v652, %v656
        %vm658 = vweird.f32 %v651
        %vm659 = vweird.f32 %v652
        %vm660 = vmor %vm658, %vm659
        %v661 = vsel %vm660, %v652, %v657
        %v662 = vmul.f32 %v645, %v661
        %v664 = vperm.slane %v639, 0
        %v666 = vmul.f32 %v662, %v664
        %v668 = vperm.slane %v640, 0
        %v670 = vadd.f32 %v666, %v668
        %v671 = vld [vmem:[%s12] sm:$0x1]
        %v672 = vld [vmem:[%s5] sm:$0xff]
        %v673 = vld [vmem:[%s5 + $0x8] sm:$0xff]
        %v674 = vld [vmem:[%s5 + $0x10] sm:$0xff]
        %v675 = vld [vmem:[%s5 + $0x18] sm:$0xff]
        %v676 = vld [vmem:[%s6] sm:$0x1]
        %v678 = vperm.slane %v676, 0
        %v681 = vsel %vm601, %v670, 0
        %683 = vmatpush.msra.mxu0 0.0
        %684 = vmatpush.msra.mxu0 0.0
        %685 = vmatpush.msra.mxu0 0.0
        %686 = vmatpush.msra.mxu0 0.0
        %687 = vmatpush.msra.mxu0 0.0
        %688 = vmatpush.msra.mxu0 0.0
        %689 = vmatpush.msra.mxu0 0.0
        %690 = vmatpush.msra.mxu0 0.0
        %691 = vmatpush.msra.mxu0 0.0
        %692 = vmatpush.msra.mxu0 0.0
        %693 = vmatpush.msra.mxu0 0.0
        %694 = vmatpush.msra.mxu0 0.0
        %695 = vmatpush.msra.mxu0 %v675
        %696 = vmatpush.msra.mxu0 %v674
        %697 = vmatpush.msra.mxu0 %v673
        %698 = vmatpush.msra.mxu0 %v672
        %699 = vmatmul.f32.gmra.mxu0 %v681
        %v700 = vpop.f32.mrf.mxu0
        %v701 = vadd.f32 %v678, %v700
        %702 = vdwg.mxu0
        %v703 = vld [vmem:[%s7] sm:$0xff]
        %v704 = vld [vmem:[%s7 + $0x8] sm:$0xff]
        %v705 = vld [vmem:[%s7 + $0x10] sm:$0xff]
        %v706 = vld [vmem:[%s7 + $0x18] sm:$0xff]
        %v707 = vld [vmem:[%s8] sm:$0x1]
        %v709 = vperm.slane %v707, 0
        %711 = vmatpush.msra.mxu0 0.0
        %712 = vmatpush.msra.mxu0 0.0
        %713 = vmatpush.msra.mxu0 0.0
        %714 = vmatpush.msra.mxu0 0.0
        %715 = vmatpush.msra.mxu0 0.0
        %716 = vmatpush.msra.mxu0 0.0
        %717 = vmatpush.msra.mxu0 0.0
        %718 = vmatpush.msra.mxu0 0.0
        %719 = vmatpush.msra.mxu0 0.0
        %720 = vmatpush.msra.mxu0 0.0
        %721 = vmatpush.msra.mxu0 0.0
        %722 = vmatpush.msra.mxu0 0.0
        %723 = vmatpush.msra.mxu0 %v706
        %724 = vmatpush.msra.mxu0 %v705
        %725 = vmatpush.msra.mxu0 %v704
        %726 = vmatpush.msra.mxu0 %v703
        %727 = vmatmul.f32.gmra.mxu0 %v681
        %v728 = vpop.f32.mrf.mxu0
        %v729 = vadd.f32 %v709, %v728
        %730 = vdwg.mxu0
        %v731 = vld [vmem:[%s9] sm:$0xff]
        %v732 = vld [vmem:[%s9 + $0x8] sm:$0xff]
        %v733 = vld [vmem:[%s9 + $0x10] sm:$0xff]
        %v734 = vld [vmem:[%s9 + $0x18] sm:$0xff]
        %v735 = vld [vmem:[%s10] sm:$0x1]
        %v737 = vperm.slane %v735, 0
        %739 = vmatpush.msra.mxu0 0.0
        %740 = vmatpush.msra.mxu0 0.0
        %741 = vmatpush.msra.mxu0 0.0
        %742 = vmatpush.msra.mxu0 0.0
        %743 = vmatpush.msra.mxu0 0.0
        %744 = vmatpush.msra.mxu0 0.0
        %745 = vmatpush.msra.mxu0 0.0
        %746 = vmatpush.msra.mxu0 0.0
        %747 = vmatpush.msra.mxu0 0.0
        %748 = vmatpush.msra.mxu0 0.0
        %749 = vmatpush.msra.mxu0 0.0
        %750 = vmatpush.msra.mxu0 0.0
        %751 = vmatpush.msra.mxu0 %v734
        %752 = vmatpush.msra.mxu0 %v733
        %753 = vmatpush.msra.mxu0 %v732
        %754 = vmatpush.msra.mxu0 %v731
        %755 = vmatmul.f32.gmra.mxu0 %v681
        %v756 = vpop.f32.mrf.mxu0
        %v757 = vadd.f32 %v737, %v756
        %758 = vdwg.mxu0
        %vm759 = vcmask 64512
        %v761 = vsel %vm759, %v701, 0
        %v764 = vsel %vm759, %v729, 0
        %766 = vmatpush.xpose.msra.mxu0 0.0
        %767 = vmatpush.xpose.msra.mxu0 0.0
        %768 = vmatpush.xpose.msra.mxu0 0.0
        %769 = vmatpush.xpose.msra.mxu0 0.0
        %770 = vmatpush.xpose.msra.mxu0 0.0
        %771 = vmatpush.xpose.msra.mxu0 0.0
        %772 = vmatpush.xpose.msra.mxu0 0.0
        %773 = vmatpush.xpose.msra.mxu0 0.0
        %774 = vmatpush.xpose.msra.mxu0 0.0
        %775 = vmatpush.xpose.msra.mxu0 0.0
        %776 = vmatpush.xpose.msra.mxu0 0.0
        %777 = vmatpush.xpose.msra.mxu0 0.0
        %778 = vmatpush.xpose.msra.mxu0 0.0
        %779 = vmatpush.xpose.msra.mxu0 0.0
        %780 = vmatpush.xpose.msra.mxu0 0.0
        %781 = vmatpush.xpose.msra.mxu0 %v764
        %782 = vmatmul.f32.gmra.mxu0 %v761
        %v783 = vpop.f32.mrf.mxu0
        %v784 = vadd.f32 0.0, %v783
        %785 = vdwg.mxu0
        %v786 = vsel %vm759, %v784, -inf
        %787 = vmax.xlane.f32.xlu0 %v786
        %v788 = vpop.xlane.xlu0 %787
        %v789 = vsub.f32 %v784, %v788
        %v790 = vmul.f32 %v789, 1.442695
        %v791 = vpow.pop %v790
        %v792 = vsel %vm759, %v791, 0.0
        %793 = vadd.xlane.f32.xlu0 %v792
        %v794 = vpop.xlane.xlu0 %793
        %v795 = vrcp.pop %v794
        %v796 = vmul.f32 %v791, %v795
        %v798 = vsel %vm759, %v796, 0
        %800 = vmatpush.msra.mxu0 0.0
        %801 = vmatpush.msra.mxu0 0.0
        %802 = vmatpush.msra.mxu0 0.0
        %803 = vmatpush.msra.mxu0 0.0
        %804 = vmatpush.msra.mxu0 0.0
        %805 = vmatpush.msra.mxu0 0.0
        %806 = vmatpush.msra.mxu0 0.0
        %807 = vmatpush.msra.mxu0 0.0
        %808 = vmatpush.msra.mxu0 0.0
        %809 = vmatpush.msra.mxu0 0.0
        %810 = vmatpush.msra.mxu0 0.0
        %811 = vmatpush.msra.mxu0 0.0
        %812 = vmatpush.msra.mxu0 0.0
        %813 = vmatpush.msra.mxu0 0.0
        %814 = vmatpush.msra.mxu0 0.0
        %815 = vmatpush.msra.mxu0 %v757
        %816 = vmatmul.f32.gmra.mxu0 %v798
        %v817 = vpop.f32.mrf.mxu0
        %v818 = vadd.f32 0.0, %v817
        %819 = vdwg.mxu0
        %v820 = vld [vmem:[%s11] sm:$0xff]
        %v822 = vsel %vm759, %v818, 0
        %824 = vmatpush.msra.mxu0 0.0
        %825 = vmatpush.msra.mxu0 0.0
        %826 = vmatpush.msra.mxu0 0.0
        %827 = vmatpush.msra.mxu0 0.0
        %828 = vmatpush.msra.mxu0 0.0
        %829 = vmatpush.msra.mxu0 0.0
        %830 = vmatpush.msra.mxu0 0.0
        %831 = vmatpush.msra.mxu0 0.0
        %832 = vmatpush.msra.mxu0 0.0
        %833 = vmatpush.msra.mxu0 0.0
        %834 = vmatpush.msra.mxu0 0.0
        %835 = vmatpush.msra.mxu0 0.0
        %836 = vmatpush.msra.mxu0 0.0
        %837 = vmatpush.msra.mxu0 0.0
        %838 = vmatpush.msra.mxu0 0.0
        %839 = vmatpush.msra.mxu0 %v820
        %840 = vmatmul.f32.gmra.mxu0 %v822
        %v841 = vpop.f32.mrf.mxu0
        %v842 = vadd.f32 0.0, %v841
        %843 = vdwg.mxu0
        %v845 = vperm.slane %v671, 0
        %v847 = vadd.f32 %v845, %v842
        %s848 = scalar_lea.vmem %s5, 32
        %v849 = vld [vmem:[%s848] sm:$0xff]
        %v850 = vld [vmem:[%s848 + $0x8] sm:$0xff]
        %v851 = vld [vmem:[%s848 + $0x10] sm:$0xff]
        %v852 = vld [vmem:[%s848 + $0x18] sm:$0xff]
        %s853 = scalar_lea.vmem %s6, 1
        %v854 = vld [vmem:[%s853] sm:$0x1]
        %v856 = vperm.slane %v854, 0
        %858 = vmatpush.msra.mxu0 0.0
        %859 = vmatpush.msra.mxu0 0.0
        %860 = vmatpush.msra.mxu0 0.0
        %861 = vmatpush.msra.mxu0 0.0
        %862 = vmatpush.msra.mxu0 0.0
        %863 = vmatpush.msra.mxu0 0.0
        %864 = vmatpush.msra.mxu0 0.0
        %865 = vmatpush.msra.mxu0 0.0
        %866 = vmatpush.msra.mxu0 0.0
        %867 = vmatpush.msra.mxu0 0.0
        %868 = vmatpush.msra.mxu0 0.0
        %869 = vmatpush.msra.mxu0 0.0
        %870 = vmatpush.msra.mxu0 %v852
        %871 = vmatpush.msra.mxu0 %v851
        %872 = vmatpush.msra.mxu0 %v850
        %873 = vmatpush.msra.mxu0 %v849
        %874 = vmatmul.f32.gmra.mxu0 %v681
        %v875 = vpop.f32.mrf.mxu0
        %v876 = vadd.f32 %v856, %v875
        %877 = vdwg.mxu0
        %s878 = scalar_lea.vmem %s7, 32
        %v879 = vld [vmem:[%s878] sm:$0xff]
        %v880 = vld [vmem:[%s878 + $0x8] sm:$0xff]
        %v881 = vld [vmem:[%s878 + $0x10] sm:$0xff]
        %v882 = vld [vmem:[%s878 + $0x18] sm:$0xff]
        %s883 = scalar_lea.vmem %s8, 1
        %v884 = vld [vmem:[%s883] sm:$0x1]
        %v886 = vperm.slane %v884, 0
        %888 = vmatpush.msra.mxu0 0.0
        %889 = vmatpush.msra.mxu0 0.0
        %890 = vmatpush.msra.mxu0 0.0
        %891 = vmatpush.msra.mxu0 0.0
        %892 = vmatpush.msra.mxu0 0.0
        %893 = vmatpush.msra.mxu0 0.0
        %894 = vmatpush.msra.mxu0 0.0
        %895 = vmatpush.msra.mxu0 0.0
        %896 = vmatpush.msra.mxu0 0.0
        %897 = vmatpush.msra.mxu0 0.0
        %898 = vmatpush.msra.mxu0 0.0
        %899 = vmatpush.msra.mxu0 0.0
        %900 = vmatpush.msra.mxu0 %v882
        %901 = vmatpush.msra.mxu0 %v881
        %902 = vmatpush.msra.mxu0 %v880
        %903 = vmatpush.msra.mxu0 %v879
        %904 = vmatmul.f32.gmra.mxu0 %v681
        %v905 = vpop.f32.mrf.mxu0
        %v906 = vadd.f32 %v886, %v905
        %907 = vdwg.mxu0
        %s908 = scalar_lea.vmem %s9, 32
        %v909 = vld [vmem:[%s908] sm:$0xff]
        %v910 = vld [vmem:[%s908 + $0x8] sm:$0xff]
        %v911 = vld [vmem:[%s908 + $0x10] sm:$0xff]
        %v912 = vld [vmem:[%s908 + $0x18] sm:$0xff]
        %s913 = scalar_lea.vmem %s10, 1
        %v914 = vld [vmem:[%s913] sm:$0x1]
        %v916 = vperm.slane %v914, 0
        %918 = vmatpush.msra.mxu0 0.0
        %919 = vmatpush.msra.mxu0 0.0
        %920 = vmatpush.msra.mxu0 0.0
        %921 = vmatpush.msra.mxu0 0.0
        %922 = vmatpush.msra.mxu0 0.0
        %923 = vmatpush.msra.mxu0 0.0
        %924 = vmatpush.msra.mxu0 0.0
        %925 = vmatpush.msra.mxu0 0.0
        %926 = vmatpush.msra.mxu0 0.0
        %927 = vmatpush.msra.mxu0 0.0
        %928 = vmatpush.msra.mxu0 0.0
        %929 = vmatpush.msra.mxu0 0.0
        %930 = vmatpush.msra.mxu0 %v912
        %931 = vmatpush.msra.mxu0 %v911
        %932 = vmatpush.msra.mxu0 %v910
        %933 = vmatpush.msra.mxu0 %v909
        %934 = vmatmul.f32.gmra.mxu0 %v681
        %v935 = vpop.f32.mrf.mxu0
        %v936 = vadd.f32 %v916, %v935
        %937 = vdwg.mxu0
        %v939 = vsel %vm759, %v876, 0
        %v942 = vsel %vm759, %v906, 0
        %944 = vmatpush.xpose.msra.mxu0 0.0
        %945 = vmatpush.xpose.msra.mxu0 0.0
        %946 = vmatpush.xpose.msra.mxu0 0.0
        %947 = vmatpush.xpose.msra.mxu0 0.0
        %948 = vmatpush.xpose.msra.mxu0 0.0
        %949 = vmatpush.xpose.msra.mxu0 0.0
        %950 = vmatpush.xpose.msra.mxu0 0.0
        %951 = vmatpush.xpose.msra.mxu0 0.0
        %952 = vmatpush.xpose.msra.mxu0 0.0
        %953 = vmatpush.xpose.msra.mxu0 0.0
        %954 = vmatpush.xpose.msra.mxu0 0.0
        %955 = vmatpush.xpose.msra.mxu0 0.0
        %956 = vmatpush.xpose.msra.mxu0 0.0
        %957 = vmatpush.xpose.msra.mxu0 0.0
        %958 = vmatpush.xpose.msra.mxu0 0.0
        %959 = vmatpush.xpose.msra.mxu0 %v942
        %960 = vmatmul.f32.gmra.mxu0 %v939
        %v961 = vpop.f32.mrf.mxu0
        %v962 = vadd.f32 0.0, %v961
        %963 = vdwg.mxu0
        %v964 = vsel %vm759, %v962, -inf
        %965 = vmax.xlane.f32.xlu0 %v964
        %v966 = vpop.xlane.xlu0 %965
        %v967 = vsub.f32 %v962, %v966
        %v968 = vmul.f32 %v967, 1.442695
        %v969 = vpow.pop %v968
        %v970 = vsel %vm759, %v969, 0.0
        %971 = vadd.xlane.f32.xlu0 %v970
        %v972 = vpop.xlane.xlu0 %971
        %v973 = vrcp.pop %v972
        %v974 = vmul.f32 %v969, %v973
        %v976 = vsel %vm759, %v974, 0
        %978 = vmatpush.msra.mxu0 0.0
        %979 = vmatpush.msra.mxu0 0.0
        %980 = vmatpush.msra.mxu0 0.0
        %981 = vmatpush.msra.mxu0 0.0
        %982 = vmatpush.msra.mxu0 0.0
        %983 = vmatpush.msra.mxu0 0.0
        %984 = vmatpush.msra.mxu0 0.0
        %985 = vmatpush.msra.mxu0 0.0
        %986 = vmatpush.msra.mxu0 0.0
        %987 = vmatpush.msra.mxu0 0.0
        %988 = vmatpush.msra.mxu0 0.0
        %989 = vmatpush.msra.mxu0 0.0
        %990 = vmatpush.msra.mxu0 0.0
        %991 = vmatpush.msra.mxu0 0.0
        %992 = vmatpush.msra.mxu0 0.0
        %993 = vmatpush.msra.mxu0 %v936
        %994 = vmatmul.f32.gmra.mxu0 %v976
        %v995 = vpop.f32.mrf.mxu0
        %v996 = vadd.f32 0.0, %v995
        %997 = vdwg.mxu0
        %s998 = scalar_lea.vmem %s11, 8
        %v999 = vld [vmem:[%s998] sm:$0xff]
        %v1001 = vsel %vm759, %v996, 0
        %1003 = vmatpush.msra.mxu0 0.0
        %1004 = vmatpush.msra.mxu0 0.0
        %1005 = vmatpush.msra.mxu0 0.0
        %1006 = vmatpush.msra.mxu0 0.0
        %1007 = vmatpush.msra.mxu0 0.0
        %1008 = vmatpush.msra.mxu0 0.0
        %1009 = vmatpush.msra.mxu0 0.0
        %1010 = vmatpush.msra.mxu0 0.0
        %1011 = vmatpush.msra.mxu0 0.0
        %1012 = vmatpush.msra.mxu0 0.0
        %1013 = vmatpush.msra.mxu0 0.0
        %1014 = vmatpush.msra.mxu0 0.0
        %1015 = vmatpush.msra.mxu0 0.0
        %1016 = vmatpush.msra.mxu0 0.0
        %1017 = vmatpush.msra.mxu0 0.0
        %1018 = vmatpush.msra.mxu0 %v999
        %1019 = vmatmul.f32.gmra.mxu0 %v1001
        %v1020 = vpop.f32.mrf.mxu0
        %v1021 = vadd.f32 0.0, %v1020
        %1022 = vdwg.mxu0
        %v1023 = vadd.f32 %v847, %v1021
        %s1024 = scalar_lea.vmem %s5, 64
        %v1025 = vld [vmem:[%s1024] sm:$0xff]
        %v1026 = vld [vmem:[%s1024 + $0x8] sm:$0xff]
        %v1027 = vld [vmem:[%s1024 + $0x10] sm:$0xff]
        %v1028 = vld [vmem:[%s1024 + $0x18] sm:$0xff]
        %s1029 = scalar_lea.vmem %s6, 2
        %v1030 = vld [vmem:[%s1029] sm:$0x1]
        %v1032 = vperm.slane %v1030, 0
        %1034 = vmatpush.msra.mxu0 0.0
        %1035 = vmatpush.msra.mxu0 0.0
        %1036 = vmatpush.msra.mxu0 0.0
        %1037 = vmatpush.msra.mxu0 0.0
        %1038 = vmatpush.msra.mxu0 0.0
        %1039 = vmatpush.msra.mxu0 0.0
        %1040 = vmatpush.msra.mxu0 0.0
        %1041 = vmatpush.msra.mxu0 0.0
        %1042 = vmatpush.msra.mxu0 0.0
        %1043 = vmatpush.msra.mxu0 0.0
        %1044 = vmatpush.msra.mxu0 0.0
        %1045 = vmatpush.msra.mxu0 0.0
        %1046 = vmatpush.msra.mxu0 %v1028
        %1047 = vmatpush.msra.mxu0 %v1027
        %1048 = vmatpush.msra.mxu0 %v1026
        %1049 = vmatpush.msra.mxu0 %v1025
        %1050 = vmatmul.f32.gmra.mxu0 %v681
        %v1051 = vpop.f32.mrf.mxu0
        %v1052 = vadd.f32 %v1032, %v1051
        %1053 = vdwg.mxu0
        %s1054 = scalar_lea.vmem %s7, 64
        %v1055 = vld [vmem:[%s1054] sm:$0xff]
        %v1056 = vld [vmem:[%s1054 + $0x8] sm:$0xff]
        %v1057 = vld [vmem:[%s1054 + $0x10] sm:$0xff]
        %v1058 = vld [vmem:[%s1054 + $0x18] sm:$0xff]
        %s1059 = scalar_lea.vmem %s8, 2
        %v1060 = vld [vmem:[%s1059] sm:$0x1]
        %v1062 = vperm.slane %v1060, 0
        %1064 = vmatpush.msra.mxu0 0.0
        %1065 = vmatpush.msra.mxu0 0.0
        %1066 = vmatpush.msra.mxu0 0.0
        %1067 = vmatpush.msra.mxu0 0.0
        %1068 = vmatpush.msra.mxu0 0.0
        %1069 = vmatpush.msra.mxu0 0.0
        %1070 = vmatpush.msra.mxu0 0.0
        %1071 = vmatpush.msra.mxu0 0.0
        %1072 = vmatpush.msra.mxu0 0.0
        %1073 = vmatpush.msra.mxu0 0.0
        %1074 = vmatpush.msra.mxu0 0.0
        %1075 = vmatpush.msra.mxu0 0.0
        %1076 = vmatpush.msra.mxu0 %v1058
        %1077 = vmatpush.msra.mxu0 %v1057
        %1078 = vmatpush.msra.mxu0 %v1056
        %1079 = vmatpush.msra.mxu0 %v1055
        %1080 = vmatmul.f32.gmra.mxu0 %v681
        %v1081 = vpop.f32.mrf.mxu0
        %v1082 = vadd.f32 %v1062, %v1081
        %1083 = vdwg.mxu0
        %s1084 = scalar_lea.vmem %s9, 64
        %v1085 = vld [vmem:[%s1084] sm:$0xff]
        %v1086 = vld [vmem:[%s1084 + $0x8] sm:$0xff]
        %v1087 = vld [vmem:[%s1084 + $0x10] sm:$0xff]
        %v1088 = vld [vmem:[%s1084 + $0x18] sm:$0xff]
        %s1089 = scalar_lea.vmem %s10, 2
        %v1090 = vld [vmem:[%s1089] sm:$0x1]
        %v1092 = vperm.slane %v1090, 0
        %1094 = vmatpush.msra.mxu0 0.0
        %1095 = vmatpush.msra.mxu0 0.0
        %1096 = vmatpush.msra.mxu0 0.0
        %1097 = vmatpush.msra.mxu0 0.0
        %1098 = vmatpush.msra.mxu0 0.0
        %1099 = vmatpush.msra.mxu0 0.0
        %1100 = vmatpush.msra.mxu0 0.0
        %1101 = vmatpush.msra.mxu0 0.0
        %1102 = vmatpush.msra.mxu0 0.0
        %1103 = vmatpush.msra.mxu0 0.0
        %1104 = vmatpush.msra.mxu0 0.0
        %1105 = vmatpush.msra.mxu0 0.0
        %1106 = vmatpush.msra.mxu0 %v1088
        %1107 = vmatpush.msra.mxu0 %v1087
        %1108 = vmatpush.msra.mxu0 %v1086
        %1109 = vmatpush.msra.mxu0 %v1085
        %1110 = vmatmul.f32.gmra.mxu0 %v681
        %v1111 = vpop.f32.mrf.mxu0
        %v1112 = vadd.f32 %v1092, %v1111
        %1113 = vdwg.mxu0
        %v1115 = vsel %vm759, %v1052, 0
        %v1118 = vsel %vm759, %v1082, 0
        %1120 = vmatpush.xpose.msra.mxu0 0.0
        %1121 = vmatpush.xpose.msra.mxu0 0.0
        %1122 = vmatpush.xpose.msra.mxu0 0.0
        %1123 = vmatpush.xpose.msra.mxu0 0.0
        %1124 = vmatpush.xpose.msra.mxu0 0.0
        %1125 = vmatpush.xpose.msra.mxu0 0.0
        %1126 = vmatpush.xpose.msra.mxu0 0.0
        %1127 = vmatpush.xpose.msra.mxu0 0.0
        %1128 = vmatpush.xpose.msra.mxu0 0.0
        %1129 = vmatpush.xpose.msra.mxu0 0.0
        %1130 = vmatpush.xpose.msra.mxu0 0.0
        %1131 = vmatpush.xpose.msra.mxu0 0.0
        %1132 = vmatpush.xpose.msra.mxu0 0.0
        %1133 = vmatpush.xpose.msra.mxu0 0.0
        %1134 = vmatpush.xpose.msra.mxu0 0.0
        %1135 = vmatpush.xpose.msra.mxu0 %v1118
        %1136 = vmatmul.f32.gmra.mxu0 %v1115
        %v1137 = vpop.f32.mrf.mxu0
        %v1138 = vadd.f32 0.0, %v1137
        %1139 = vdwg.mxu0
        %v1140 = vsel %vm759, %v1138, -inf
        %1141 = vmax.xlane.f32.xlu0 %v1140
        %v1142 = vpop.xlane.xlu0 %1141
        %v1143 = vsub.f32 %v1138, %v1142
        %v1144 = vmul.f32 %v1143, 1.442695
        %v1145 = vpow.pop %v1144
        %v1146 = vsel %vm759, %v1145, 0.0
        %1147 = vadd.xlane.f32.xlu0 %v1146
        %v1148 = vpop.xlane.xlu0 %1147
        %v1149 = vrcp.pop %v1148
        %v1150 = vmul.f32 %v1145, %v1149
        %v1152 = vsel %vm759, %v1150, 0
        %1154 = vmatpush.msra.mxu0 0.0
        %1155 = vmatpush.msra.mxu0 0.0
        %1156 = vmatpush.msra.mxu0 0.0
        %1157 = vmatpush.msra.mxu0 0.0
        %1158 = vmatpush.msra.mxu0 0.0
        %1159 = vmatpush.msra.mxu0 0.0
        %1160 = vmatpush.msra.mxu0 0.0
        %1161 = vmatpush.msra.mxu0 0.0
        %1162 = vmatpush.msra.mxu0 0.0
        %1163 = vmatpush.msra.mxu0 0.0
        %1164 = vmatpush.msra.mxu0 0.0
        %1165 = vmatpush.msra.mxu0 0.0
        %1166 = vmatpush.msra.mxu0 0.0
        %1167 = vmatpush.msra.mxu0 0.0
        %1168 = vmatpush.msra.mxu0 0.0
        %1169 = vmatpush.msra.mxu0 %v1112
        %1170 = vmatmul.f32.gmra.mxu0 %v1152
        %v1171 = vpop.f32.mrf.mxu0
        %v1172 = vadd.f32 0.0, %v1171
        %1173 = vdwg.mxu0
        %s1174 = scalar_lea.vmem %s11, 16
        %v1175 = vld [vmem:[%s1174] sm:$0xff]
        %v1177 = vsel %vm759, %v1172, 0
        %1179 = vmatpush.msra.mxu0 0.0
        %1180 = vmatpush.msra.mxu0 0.0
        %1181 = vmatpush.msra.mxu0 0.0
        %1182 = vmatpush.msra.mxu0 0.0
        %1183 = vmatpush.msra.mxu0 0.0
        %1184 = vmatpush.msra.mxu0 0.0
        %1185 = vmatpush.msra.mxu0 0.0
        %1186 = vmatpush.msra.mxu0 0.0
        %1187 = vmatpush.msra.mxu0 0.0
        %1188 = vmatpush.msra.mxu0 0.0
        %1189 = vmatpush.msra.mxu0 0.0
        %1190 = vmatpush.msra.mxu0 0.0
        %1191 = vmatpush.msra.mxu0 0.0
        %1192 = vmatpush.msra.mxu0 0.0
        %1193 = vmatpush.msra.mxu0 0.0
        %1194 = vmatpush.msra.mxu0 %v1175
        %1195 = vmatmul.f32.gmra.mxu0 %v1177
        %v1196 = vpop.f32.mrf.mxu0
        %v1197 = vadd.f32 0.0, %v1196
        %1198 = vdwg.mxu0
        %v1199 = vadd.f32 %v1023, %v1197
        %s1200 = scalar_lea.vmem %s5, 96
        %v1201 = vld [vmem:[%s1200] sm:$0xff]
        %v1202 = vld [vmem:[%s1200 + $0x8] sm:$0xff]
        %v1203 = vld [vmem:[%s1200 + $0x10] sm:$0xff]
        %v1204 = vld [vmem:[%s1200 + $0x18] sm:$0xff]
        %s1205 = scalar_lea.vmem %s6, 3
        %v1206 = vld [vmem:[%s1205] sm:$0x1]
        %v1208 = vperm.slane %v1206, 0
        %1210 = vmatpush.msra.mxu0 0.0
        %1211 = vmatpush.msra.mxu0 0.0
        %1212 = vmatpush.msra.mxu0 0.0
        %1213 = vmatpush.msra.mxu0 0.0
        %1214 = vmatpush.msra.mxu0 0.0
        %1215 = vmatpush.msra.mxu0 0.0
        %1216 = vmatpush.msra.mxu0 0.0
        %1217 = vmatpush.msra.mxu0 0.0
        %1218 = vmatpush.msra.mxu0 0.0
        %1219 = vmatpush.msra.mxu0 0.0
        %1220 = vmatpush.msra.mxu0 0.0
        %1221 = vmatpush.msra.mxu0 0.0
        %1222 = vmatpush.msra.mxu0 %v1204
        %1223 = vmatpush.msra.mxu0 %v1203
        %1224 = vmatpush.msra.mxu0 %v1202
        %1225 = vmatpush.msra.mxu0 %v1201
        %1226 = vmatmul.f32.gmra.mxu0 %v681
        %v1227 = vpop.f32.mrf.mxu0
        %v1228 = vadd.f32 %v1208, %v1227
        %1229 = vdwg.mxu0
        %s1230 = scalar_lea.vmem %s7, 96
        %v1231 = vld [vmem:[%s1230] sm:$0xff]
        %v1232 = vld [vmem:[%s1230 + $0x8] sm:$0xff]
        %v1233 = vld [vmem:[%s1230 + $0x10] sm:$0xff]
        %v1234 = vld [vmem:[%s1230 + $0x18] sm:$0xff]
        %s1235 = scalar_lea.vmem %s8, 3
        %v1236 = vld [vmem:[%s1235] sm:$0x1]
        %v1238 = vperm.slane %v1236, 0
        %1240 = vmatpush.msra.mxu0 0.0
        %1241 = vmatpush.msra.mxu0 0.0
        %1242 = vmatpush.msra.mxu0 0.0
        %1243 = vmatpush.msra.mxu0 0.0
        %1244 = vmatpush.msra.mxu0 0.0
        %1245 = vmatpush.msra.mxu0 0.0
        %1246 = vmatpush.msra.mxu0 0.0
        %1247 = vmatpush.msra.mxu0 0.0
        %1248 = vmatpush.msra.mxu0 0.0
        %1249 = vmatpush.msra.mxu0 0.0
        %1250 = vmatpush.msra.mxu0 0.0
        %1251 = vmatpush.msra.mxu0 0.0
        %1252 = vmatpush.msra.mxu0 %v1234
        %1253 = vmatpush.msra.mxu0 %v1233
        %1254 = vmatpush.msra.mxu0 %v1232
        %1255 = vmatpush.msra.mxu0 %v1231
        %1256 = vmatmul.f32.gmra.mxu0 %v681
        %v1257 = vpop.f32.mrf.mxu0
        %v1258 = vadd.f32 %v1238, %v1257
        %1259 = vdwg.mxu0
        %s1260 = scalar_lea.vmem %s9, 96
        %v1261 = vld [vmem:[%s1260] sm:$0xff]
        %v1262 = vld [vmem:[%s1260 + $0x8] sm:$0xff]
        %v1263 = vld [vmem:[%s1260 + $0x10] sm:$0xff]
        %v1264 = vld [vmem:[%s1260 + $0x18] sm:$0xff]
        %s1265 = scalar_lea.vmem %s10, 3
        %v1266 = vld [vmem:[%s1265] sm:$0x1]
        %v1268 = vperm.slane %v1266, 0
        %1270 = vmatpush.msra.mxu0 0.0
        %1271 = vmatpush.msra.mxu0 0.0
        %1272 = vmatpush.msra.mxu0 0.0
        %1273 = vmatpush.msra.mxu0 0.0
        %1274 = vmatpush.msra.mxu0 0.0
        %1275 = vmatpush.msra.mxu0 0.0
        %1276 = vmatpush.msra.mxu0 0.0
        %1277 = vmatpush.msra.mxu0 0.0
        %1278 = vmatpush.msra.mxu0 0.0
        %1279 = vmatpush.msra.mxu0 0.0
        %1280 = vmatpush.msra.mxu0 0.0
        %1281 = vmatpush.msra.mxu0 0.0
        %1282 = vmatpush.msra.mxu0 %v1264
        %1283 = vmatpush.msra.mxu0 %v1263
        %1284 = vmatpush.msra.mxu0 %v1262
        %1285 = vmatpush.msra.mxu0 %v1261
        %1286 = vmatmul.f32.gmra.mxu0 %v681
        %v1287 = vpop.f32.mrf.mxu0
        %v1288 = vadd.f32 %v1268, %v1287
        %1289 = vdwg.mxu0
        %v1291 = vsel %vm759, %v1228, 0
        %v1294 = vsel %vm759, %v1258, 0
        %1296 = vmatpush.xpose.msra.mxu0 0.0
        %1297 = vmatpush.xpose.msra.mxu0 0.0
        %1298 = vmatpush.xpose.msra.mxu0 0.0
        %1299 = vmatpush.xpose.msra.mxu0 0.0
        %1300 = vmatpush.xpose.msra.mxu0 0.0
        %1301 = vmatpush.xpose.msra.mxu0 0.0
        %1302 = vmatpush.xpose.msra.mxu0 0.0
        %1303 = vmatpush.xpose.msra.mxu0 0.0
        %1304 = vmatpush.xpose.msra.mxu0 0.0
        %1305 = vmatpush.xpose.msra.mxu0 0.0
        %1306 = vmatpush.xpose.msra.mxu0 0.0
        %1307 = vmatpush.xpose.msra.mxu0 0.0
        %1308 = vmatpush.xpose.msra.mxu0 0.0
        %1309 = vmatpush.xpose.msra.mxu0 0.0
        %1310 = vmatpush.xpose.msra.mxu0 0.0
        %1311 = vmatpush.xpose.msra.mxu0 %v1294
        %1312 = vmatmul.f32.gmra.mxu0 %v1291
        %v1313 = vpop.f32.mrf.mxu0
        %v1314 = vadd.f32 0.0, %v1313
        %1315 = vdwg.mxu0
        %v1316 = vsel %vm759, %v1314, -inf
        %1317 = vmax.xlane.f32.xlu0 %v1316
        %v1318 = vpop.xlane.xlu0 %1317
        %v1319 = vsub.f32 %v1314, %v1318
        %v1320 = vmul.f32 %v1319, 1.442695
        %v1321 = vpow.pop %v1320
        %v1322 = vsel %vm759, %v1321, 0.0
        %1323 = vadd.xlane.f32.xlu0 %v1322
        %v1324 = vpop.xlane.xlu0 %1323
        %v1325 = vrcp.pop %v1324
        %v1326 = vmul.f32 %v1321, %v1325
        %v1328 = vsel %vm759, %v1326, 0
        %1330 = vmatpush.msra.mxu0 0.0
        %1331 = vmatpush.msra.mxu0 0.0
        %1332 = vmatpush.msra.mxu0 0.0
        %1333 = vmatpush.msra.mxu0 0.0
        %1334 = vmatpush.msra.mxu0 0.0
        %1335 = vmatpush.msra.mxu0 0.0
        %1336 = vmatpush.msra.mxu0 0.0
        %1337 = vmatpush.msra.mxu0 0.0
        %1338 = vmatpush.msra.mxu0 0.0
        %1339 = vmatpush.msra.mxu0 0.0
        %1340 = vmatpush.msra.mxu0 0.0
        %1341 = vmatpush.msra.mxu0 0.0
        %1342 = vmatpush.msra.mxu0 0.0
        %1343 = vmatpush.msra.mxu0 0.0
        %1344 = vmatpush.msra.mxu0 0.0
        %1345 = vmatpush.msra.mxu0 %v1288
        %1346 = vmatmul.f32.gmra.mxu0 %v1328
        %v1347 = vpop.f32.mrf.mxu0
        %v1348 = vadd.f32 0.0, %v1347
        %1349 = vdwg.mxu0
        %s1350 = scalar_lea.vmem %s11, 24
        %v1351 = vld [vmem:[%s1350] sm:$0xff]
        %v1353 = vsel %vm759, %v1348, 0
        %1355 = vmatpush.msra.mxu0 0.0
        %1356 = vmatpush.msra.mxu0 0.0
        %1357 = vmatpush.msra.mxu0 0.0
        %1358 = vmatpush.msra.mxu0 0.0
        %1359 = vmatpush.msra.mxu0 0.0
        %1360 = vmatpush.msra.mxu0 0.0
        %1361 = vmatpush.msra.mxu0 0.0
        %1362 = vmatpush.msra.mxu0 0.0
        %1363 = vmatpush.msra.mxu0 0.0
        %1364 = vmatpush.msra.mxu0 0.0
        %1365 = vmatpush.msra.mxu0 0.0
        %1366 = vmatpush.msra.mxu0 0.0
        %1367 = vmatpush.msra.mxu0 0.0
        %1368 = vmatpush.msra.mxu0 0.0
        %1369 = vmatpush.msra.mxu0 0.0
        %1370 = vmatpush.msra.mxu0 %v1351
        %1371 = vmatmul.f32.gmra.mxu0 %v1353
        %v1372 = vpop.f32.mrf.mxu0
        %v1373 = vadd.f32 0.0, %v1372
        %1374 = vdwg.mxu0
        %v1375 = vadd.f32 %v1199, %v1373
        %v1376 = vadd.f32 %v638, %v1375
        %v1377 = vld [vmem:[%s13] sm:$0x1]
        %v1378 = vld [vmem:[%s14] sm:$0x1]
        %v1379 = vsel %vm601, %v1376, 0.0
        %1380 = vadd.xlane.f32.xlu0 %v1379
        %v1381 = vpop.xlane.xlu0 %1380
        %v1382 = vmul.f32 %v1381, %v611
        %v1383 = vsub.f32 %v1376, %v1382
        %v1384 = vmul.f32 %v1383, %v1383
        %v1385 = vsel %vm601, %v1384, 0.0
        %1386 = vadd.xlane.f32.xlu0 %v1385
        %v1387 = vpop.xlane.xlu0 %1386
        %v1388 = vmul.f32 %v1387, %v611
        %v1389 = vadd.f32 %v1388, 1e-05
        %v1390 = vrsqrt.pop %v1389
        %v1391 = vmul.f32 %v1390, %v1389
        %v1392 = vmul.f32 %v1391, %v1390
        %v1393 = vmul.f32 0.5, %v1392
        %v1394 = vsub.f32 1.5, %v1393
        %v1395 = vmul.f32 %v1390, %v1394
        %vm1396 = vweird.f32 %v1389
        %vm1397 = vweird.f32 %v1390
        %vm1398 = vmor %vm1396, %vm1397
        %v1399 = vsel %vm1398, %v1390, %v1395
        %v1400 = vmul.f32 %v1383, %v1399
        %v1402 = vperm.slane %v1377, 0
        %v1404 = vmul.f32 %v1400, %v1402
        %v1406 = vperm.slane %v1378, 0
        %v1408 = vadd.f32 %v1404, %v1406
        %v1409 = vld [vmem:[%s15] sm:$0xff]
        %v1410 = vld [vmem:[%s15 + $0x8] sm:$0xff]
        %v1411 = vld [vmem:[%s15 + $0x10] sm:$0xff]
        %v1412 = vld [vmem:[%s15 + $0x18] sm:$0xff]
        %v1413 = vld [vmem:[%s16] sm:$0x1]
        %v1415 = vperm.slane %v1413, 0
        %v1418 = vsel %vm601, %v1408, 0
        %1420 = vmatpush.msra.mxu0 0.0
        %1421 = vmatpush.msra.mxu0 0.0
        %1422 = vmatpush.msra.mxu0 0.0
        %1423 = vmatpush.msra.mxu0 0.0
        %1424 = vmatpush.msra.mxu0 0.0
        %1425 = vmatpush.msra.mxu0 0.0
        %1426 = vmatpush.msra.mxu0 0.0
        %1427 = vmatpush.msra.mxu0 0.0
        %1428 = vmatpush.msra.mxu0 0.0
        %1429 = vmatpush.msra.mxu0 0.0
        %1430 = vmatpush.msra.mxu0 0.0
        %1431 = vmatpush.msra.mxu0 0.0
        %1432 = vmatpush.msra.mxu0 %v1412
        %1433 = vmatpush.msra.mxu0 %v1411
        %1434 = vmatpush.msra.mxu0 %v1410
        %1435 = vmatpush.msra.mxu0 %v1409
        %1436 = vmatmul.f32.gmra.mxu0 %v1418
        %v1437 = vpop.f32.mrf.mxu0
        %v1438 = vadd.f32 %v1415, %v1437
        %1439 = vdwg.mxu0
        %v1440 = vmul.f32 %v1438, 0.5
        %v1441 = vmul.f32 %v1438, 0.70710677
        %v1442 = vmul.f32 %v1441, %v1441
        %v1443 = vmin.f32 16.0, %v1442
        %v1444 = vmul.f32 %v1443, 2.1237322e-06
        %v1445 = vadd.f32 %v1444, 0.00028619796
        %v1446 = vmul.f32 %v1443, %v1445
        %v1447 = vadd.f32 %v1446, 0.0036580483
        %v1448 = vmul.f32 %v1443, %v1447
        %v1449 = vadd.f32 %v1448, 0.05243302
        %v1450 = vmul.f32 %v1443, %v1449
        %v1451 = vadd.f32 %v1450, 0.18741608
        %v1452 = vmul.f32 %v1443, %v1451
        %v1453 = vadd.f32 %v1452, 1.1283791
        %v1454 = vmul.f32 %v1441, %v1453
        %v1455 = vmul.f32 %v1443, 3.8918573e-05
        %v1456 = vadd.f32 %v1455, 0.001143296
        %v1457 = vmul.f32 %v1443, %v1456
        %v1458 = vadd.f32 %v1457, 0.014752088
        %v1459 = vmul.f32 %v1443, %v1458
        %v1460 = vadd.f32 %v1459, 0.112945676
        %v1461 = vmul.f32 %v1443, %v1460
        %v1462 = vadd.f32 %v1461, 0.4994258
        %v1463 = vmul.f32 %v1443, %v1462
        %v1464 = vadd.f32 %v1463, 1.0
        %v1465 = vrcp.pop %v1464
        %v1466 = vmul.f32 %v1464, %v1465
        %v1467 = vsub.f32 1.0, %v1466
        %v1468 = vmul.f32 %v1465, %v1467
        %v1469 = vadd.f32 %v1465, %v1468
        %vm1470 = vweird.f32 %v1464
        %vm1471 = vweird.f32 %v1465
        %vm1472 = vmor %vm1470, %vm1471
        %v1473 = vsel %vm1472, %v1465, %v1469
        %v1474 = vand.u32 2147483647, %v1464
        %vm1475 = vcmp.eq.f32.partialorder %v1474, 8.507059e+37
        %v1476 = vand.u32 %v1464, 2147483648
        %v1477 = vor.u32 1.1754944e-38, %v1476
        %v1478 = vsel %vm1475, %v1477, %v1473
        %v1479 = vmul.f32 %v1454, %v1478
        %v1480 = vmin.f32 %v1479, 1.0
        %v1481 = vmax.f32 %v1480, -1.0
        %v1482 = vadd.f32 %v1481, 1.0
        %v1483 = vmul.f32 %v1440, %v1482
        %v1484 = vld [vmem:[%s17] sm:$0xff]
        %v1485 = vld [vmem:[%s17 + $0x8] sm:$0xff]
        %v1486 = vld [vmem:[%s17 + $0x10] sm:$0xff]
        %v1487 = vld [vmem:[%s17 + $0x18] sm:$0xff]
        %v1488 = vld [vmem:[%s17 + $0x20] sm:$0xff]
        %v1489 = vld [vmem:[%s17 + $0x28] sm:$0xff]
        %v1490 = vld [vmem:[%s17 + $0x30] sm:$0xff]
        %v1491 = vld [vmem:[%s17 + $0x38] sm:$0xff]
        %v1492 = vld [vmem:[%s18] sm:$0x1]
        %v1494 = vperm.slane %v1492, 0
        %vm1496 = vcmask 523264
        %v1498 = vsel %vm1496, %v1483, 0
        %1500 = vmatpush.msra.mxu0 0.0
        %1501 = vmatpush.msra.mxu0 0.0
        %1502 = vmatpush.msra.mxu0 0.0
        %1503 = vmatpush.msra.mxu0 0.0
        %1504 = vmatpush.msra.mxu0 0.0
        %1505 = vmatpush.msra.mxu0 0.0
        %1506 = vmatpush.msra.mxu0 0.0
        %1507 = vmatpush.msra.mxu0 0.0
        %1508 = vmatpush.msra.mxu0 %v1491
        %1509 = vmatpush.msra.mxu0 %v1490
        %1510 = vmatpush.msra.mxu0 %v1489
        %1511 = vmatpush.msra.mxu0 %v1488
        %1512 = vmatpush.msra.mxu0 %v1487
        %1513 = vmatpush.msra.mxu0 %v1486
        %1514 = vmatpush.msra.mxu0 %v1485
        %1515 = vmatpush.msra.mxu0 %v1484
        %1516 = vmatmul.f32.gmra.mxu0 %v1498
        %v1517 = vpop.f32.mrf.mxu0
        %v1518 = vadd.f32 %v1494, %v1517
        %1519 = vdwg.mxu0
        %v1520 = vadd.f32 %v1376, %v1518
        %s1521 = scalar_lea.vmem %s3, 1
        %v1522 = vld [vmem:[%s1521] sm:$0x1]
        %s1523 = scalar_lea.vmem %s4, 1
        %v1524 = vld [vmem:[%s1523] sm:$0x1]
        %v1525 = vsel %vm601, %v1520, 0.0
        %1526 = vadd.xlane.f32.xlu0 %v1525
        %v1527 = vpop.xlane.xlu0 %1526
        %v1528 = vmul.f32 %v1527, %v611
        %v1529 = vsub.f32 %v1520, %v1528
        %v1530 = vmul.f32 %v1529, %v1529
        %v1531 = vsel %vm601, %v1530, 0.0
        %1532 = vadd.xlane.f32.xlu0 %v1531
        %v1533 = vpop.xlane.xlu0 %1532
        %v1534 = vmul.f32 %v1533, %v611
        %v1535 = vadd.f32 %v1534, 1e-05
        %v1536 = vrsqrt.pop %v1535
        %v1537 = vmul.f32 %v1536, %v1535
        %v1538 = vmul.f32 %v1537, %v1536
        %v1539 = vmul.f32 0.5, %v1538
        %v1540 = vsub.f32 1.5, %v1539
        %v1541 = vmul.f32 %v1536, %v1540
        %vm1542 = vweird.f32 %v1535
        %vm1543 = vweird.f32 %v1536
        %vm1544 = vmor %vm1542, %vm1543
        %v1545 = vsel %vm1544, %v1536, %v1541
        %v1546 = vmul.f32 %v1529, %v1545
        %v1548 = vperm.slane %v1522, 0
        %v1550 = vmul.f32 %v1546, %v1548
        %v1552 = vperm.slane %v1524, 0
        %v1554 = vadd.f32 %v1550, %v1552
        %s1555 = scalar_lea.vmem %s12, 1
        %v1556 = vld [vmem:[%s1555] sm:$0x1]
        %s1557 = scalar_lea.vmem %s5, 128
        %v1558 = vld [vmem:[%s1557] sm:$0xff]
        %v1559 = vld [vmem:[%s1557 + $0x8] sm:$0xff]
        %v1560 = vld [vmem:[%s1557 + $0x10] sm:$0xff]
        %v1561 = vld [vmem:[%s1557 + $0x18] sm:$0xff]
        %s1562 = scalar_lea.vmem %s6, 4
        %v1563 = vld [vmem:[%s1562] sm:$0x1]
        %v1565 = vperm.slane %v1563, 0
        %v1568 = vsel %vm601, %v1554, 0
        %1570 = vmatpush.msra.mxu0 0.0
        %1571 = vmatpush.msra.mxu0 0.0
        %1572 = vmatpush.msra.mxu0 0.0
        %1573 = vmatpush.msra.mxu0 0.0
        %1574 = vmatpush.msra.mxu0 0.0
        %1575 = vmatpush.msra.mxu0 0.0
        %1576 = vmatpush.msra.mxu0 0.0
        %1577 = vmatpush.msra.mxu0 0.0
        %1578 = vmatpush.msra.mxu0 0.0
        %1579 = vmatpush.msra.mxu0 0.0
        %1580 = vmatpush.msra.mxu0 0.0
        %1581 = vmatpush.msra.mxu0 0.0
        %1582 = vmatpush.msra.mxu0 %v1561
        %1583 = vmatpush.msra.mxu0 %v1560
        %1584 = vmatpush.msra.mxu0 %v1559
        %1585 = vmatpush.msra.mxu0 %v1558
        %1586 = vmatmul.f32.gmra.mxu0 %v1568
        %v1587 = vpop.f32.mrf.mxu0
        %v1588 = vadd.f32 %v1565, %v1587
        %1589 = vdwg.mxu0
        %s1590 = scalar_lea.vmem %s7, 128
        %v1591 = vld [vmem:[%s1590] sm:$0xff]
        %v1592 = vld [vmem:[%s1590 + $0x8] sm:$0xff]
        %v1593 = vld [vmem:[%s1590 + $0x10] sm:$0xff]
        %v1594 = vld [vmem:[%s1590 + $0x18] sm:$0xff]
        %s1595 = scalar_lea.vmem %s8, 4
        %v1596 = vld [vmem:[%s1595] sm:$0x1]
        %v1598 = vperm.slane %v1596, 0
        %1600 = vmatpush.msra.mxu0 0.0
        %1601 = vmatpush.msra.mxu0 0.0
        %1602 = vmatpush.msra.mxu0 0.0
        %1603 = vmatpush.msra.mxu0 0.0
        %1604 = vmatpush.msra.mxu0 0.0
        %1605 = vmatpush.msra.mxu0 0.0
        %1606 = vmatpush.msra.mxu0 0.0
        %1607 = vmatpush.msra.mxu0 0.0
        %1608 = vmatpush.msra.mxu0 0.0
        %1609 = vmatpush.msra.mxu0 0.0
        %1610 = vmatpush.msra.mxu0 0.0
        %1611 = vmatpush.msra.mxu0 0.0
        %1612 = vmatpush.msra.mxu0 %v1594
        %1613 = vmatpush.msra.mxu0 %v1593
        %1614 = vmatpush.msra.mxu0 %v1592
        %1615 = vmatpush.msra.mxu0 %v1591
        %1616 = vmatmul.f32.gmra.mxu0 %v1568
        %v1617 = vpop.f32.mrf.mxu0
        %v1618 = vadd.f32 %v1598, %v1617
        %1619 = vdwg.mxu0
        %s1620 = scalar_lea.vmem %s9, 128
        %v1621 = vld [vmem:[%s1620] sm:$0xff]
        %v1622 = vld [vmem:[%s1620 + $0x8] sm:$0xff]
        %v1623 = vld [vmem:[%s1620 + $0x10] sm:$0xff]
        %v1624 = vld [vmem:[%s1620 + $0x18] sm:$0xff]
        %s1625 = scalar_lea.vmem %s10, 4
        %v1626 = vld [vmem:[%s1625] sm:$0x1]
        %v1628 = vperm.slane %v1626, 0
        %1630 = vmatpush.msra.mxu0 0.0
        %1631 = vmatpush.msra.mxu0 0.0
        %1632 = vmatpush.msra.mxu0 0.0
        %1633 = vmatpush.msra.mxu0 0.0
        %1634 = vmatpush.msra.mxu0 0.0
        %1635 = vmatpush.msra.mxu0 0.0
        %1636 = vmatpush.msra.mxu0 0.0
        %1637 = vmatpush.msra.mxu0 0.0
        %1638 = vmatpush.msra.mxu0 0.0
        %1639 = vmatpush.msra.mxu0 0.0
        %1640 = vmatpush.msra.mxu0 0.0
        %1641 = vmatpush.msra.mxu0 0.0
        %1642 = vmatpush.msra.mxu0 %v1624
        %1643 = vmatpush.msra.mxu0 %v1623
        %1644 = vmatpush.msra.mxu0 %v1622
        %1645 = vmatpush.msra.mxu0 %v1621
        %1646 = vmatmul.f32.gmra.mxu0 %v1568
        %v1647 = vpop.f32.mrf.mxu0
        %v1648 = vadd.f32 %v1628, %v1647
        %1649 = vdwg.mxu0
        %v1651 = vsel %vm759, %v1588, 0
        %v1654 = vsel %vm759, %v1618, 0
        %1656 = vmatpush.xpose.msra.mxu0 0.0
        %1657 = vmatpush.xpose.msra.mxu0 0.0
        %1658 = vmatpush.xpose.msra.mxu0 0.0
        %1659 = vmatpush.xpose.msra.mxu0 0.0
        %1660 = vmatpush.xpose.msra.mxu0 0.0
        %1661 = vmatpush.xpose.msra.mxu0 0.0
        %1662 = vmatpush.xpose.msra.mxu0 0.0
        %1663 = vmatpush.xpose.msra.mxu0 0.0
        %1664 = vmatpush.xpose.msra.mxu0 0.0
        %1665 = vmatpush.xpose.msra.mxu0 0.0
        %1666 = vmatpush.xpose.msra.mxu0 0.0
        %1667 = vmatpush.xpose.msra.mxu0 0.0
        %1668 = vmatpush.xpose.msra.mxu0 0.0
        %1669 = vmatpush.xpose.msra.mxu0 0.0
        %1670 = vmatpush.xpose.msra.mxu0 0.0
        %1671 = vmatpush.xpose.msra.mxu0 %v1654
        %1672 = vmatmul.f32.gmra.mxu0 %v1651
        %v1673 = vpop.f32.mrf.mxu0
        %v1674 = vadd.f32 0.0, %v1673
        %1675 = vdwg.mxu0
        %v1676 = vsel %vm759, %v1674, -inf
        %1677 = vmax.xlane.f32.xlu0 %v1676
        %v1678 = vpop.xlane.xlu0 %1677
        %v1679 = vsub.f32 %v1674, %v1678
        %v1680 = vmul.f32 %v1679, 1.442695
        %v1681 = vpow.pop %v1680
        %v1682 = vsel %vm759, %v1681, 0.0
        %1683 = vadd.xlane.f32.xlu0 %v1682
        %v1684 = vpop.xlane.xlu0 %1683
        %v1685 = vrcp.pop %v1684
        %v1686 = vmul.f32 %v1681, %v1685
        %v1688 = vsel %vm759, %v1686, 0
        %1690 = vmatpush.msra.mxu0 0.0
        %1691 = vmatpush.msra.mxu0 0.0
        %1692 = vmatpush.msra.mxu0 0.0
        %1693 = vmatpush.msra.mxu0 0.0
        %1694 = vmatpush.msra.mxu0 0.0
        %1695 = vmatpush.msra.mxu0 0.0
        %1696 = vmatpush.msra.mxu0 0.0
        %1697 = vmatpush.msra.mxu0 0.0
        %1698 = vmatpush.msra.mxu0 0.0
        %1699 = vmatpush.msra.mxu0 0.0
        %1700 = vmatpush.msra.mxu0 0.0
        %1701 = vmatpush.msra.mxu0 0.0
        %1702 = vmatpush.msra.mxu0 0.0
        %1703 = vmatpush.msra.mxu0 0.0
        %1704 = vmatpush.msra.mxu0 0.0
        %1705 = vmatpush.msra.mxu0 %v1648
        %1706 = vmatmul.f32.gmra.mxu0 %v1688
        %v1707 = vpop.f32.mrf.mxu0
        %v1708 = vadd.f32 0.0, %v1707
        %1709 = vdwg.mxu0
        %s1710 = scalar_lea.vmem %s11, 32
        %v1711 = vld [vmem:[%s1710] sm:$0xff]
        %v1713 = vsel %vm759, %v1708, 0
        %1715 = vmatpush.msra.mxu0 0.0
        %1716 = vmatpush.msra.mxu0 0.0
        %1717 = vmatpush.msra.mxu0 0.0
        %1718 = vmatpush.msra.mxu0 0.0
        %1719 = vmatpush.msra.mxu0 0.0
        %1720 = vmatpush.msra.mxu0 0.0
        %1721 = vmatpush.msra.mxu0 0.0
        %1722 = vmatpush.msra.mxu0 0.0
        %1723 = vmatpush.msra.mxu0 0.0
        %1724 = vmatpush.msra.mxu0 0.0
        %1725 = vmatpush.msra.mxu0 0.0
        %1726 = vmatpush.msra.mxu0 0.0
        %1727 = vmatpush.msra.mxu0 0.0
        %1728 = vmatpush.msra.mxu0 0.0
        %1729 = vmatpush.msra.mxu0 0.0
        %1730 = vmatpush.msra.mxu0 %v1711
        %1731 = vmatmul.f32.gmra.mxu0 %v1713
        %v1732 = vpop.f32.mrf.mxu0
        %v1733 = vadd.f32 0.0, %v1732
        %1734 = vdwg.mxu0
        %v1736 = vperm.slane %v1556, 0
        %v1738 = vadd.f32 %v1736, %v1733
        %s1739 = scalar_lea.vmem %s5, 160
        %v1740 = vld [vmem:[%s1739] sm:$0xff]
        %v1741 = vld [vmem:[%s1739 + $0x8] sm:$0xff]
        %v1742 = vld [vmem:[%s1739 + $0x10] sm:$0xff]
        %v1743 = vld [vmem:[%s1739 + $0x18] sm:$0xff]
        %s1744 = scalar_lea.vmem %s6, 5
        %v1745 = vld [vmem:[%s1744] sm:$0x1]
        %v1747 = vperm.slane %v1745, 0
        %1749 = vmatpush.msra.mxu0 0.0
        %1750 = vmatpush.msra.mxu0 0.0
        %1751 = vmatpush.msra.mxu0 0.0
        %1752 = vmatpush.msra.mxu0 0.0
        %1753 = vmatpush.msra.mxu0 0.0
        %1754 = vmatpush.msra.mxu0 0.0
        %1755 = vmatpush.msra.mxu0 0.0
        %1756 = vmatpush.msra.mxu0 0.0
        %1757 = vmatpush.msra.mxu0 0.0
        %1758 = vmatpush.msra.mxu0 0.0
        %1759 = vmatpush.msra.mxu0 0.0
        %1760 = vmatpush.msra.mxu0 0.0
        %1761 = vmatpush.msra.mxu0 %v1743
        %1762 = vmatpush.msra.mxu0 %v1742
        %1763 = vmatpush.msra.mxu0 %v1741
        %1764 = vmatpush.msra.mxu0 %v1740
        %1765 = vmatmul.f32.gmra.mxu0 %v1568
        %v1766 = vpop.f32.mrf.mxu0
        %v1767 = vadd.f32 %v1747, %v1766
        %1768 = vdwg.mxu0
        %s1769 = scalar_lea.vmem %s7, 160
        %v1770 = vld [vmem:[%s1769] sm:$0xff]
        %v1771 = vld [vmem:[%s1769 + $0x8] sm:$0xff]
        %v1772 = vld [vmem:[%s1769 + $0x10] sm:$0xff]
        %v1773 = vld [vmem:[%s1769 + $0x18] sm:$0xff]
        %s1774 = scalar_lea.vmem %s8, 5
        %v1775 = vld [vmem:[%s1774] sm:$0x1]
        %v1777 = vperm.slane %v1775, 0
        %1779 = vmatpush.msra.mxu0 0.0
        %1780 = vmatpush.msra.mxu0 0.0
        %1781 = vmatpush.msra.mxu0 0.0
        %1782 = vmatpush.msra.mxu0 0.0
        %1783 = vmatpush.msra.mxu0 0.0
        %1784 = vmatpush.msra.mxu0 0.0
        %1785 = vmatpush.msra.mxu0 0.0
        %1786 = vmatpush.msra.mxu0 0.0
        %1787 = vmatpush.msra.mxu0 0.0
        %1788 = vmatpush.msra.mxu0 0.0
        %1789 = vmatpush.msra.mxu0 0.0
        %1790 = vmatpush.msra.mxu0 0.0
        %1791 = vmatpush.msra.mxu0 %v1773
        %1792 = vmatpush.msra.mxu0 %v1772
        %1793 = vmatpush.msra.mxu0 %v1771
        %1794 = vmatpush.msra.mxu0 %v1770
        %1795 = vmatmul.f32.gmra.mxu0 %v1568
        %v1796 = vpop.f32.mrf.mxu0
        %v1797 = vadd.f32 %v1777, %v1796
        %1798 = vdwg.mxu0
        %s1799 = scalar_lea.vmem %s9, 160
        %v1800 = vld [vmem:[%s1799] sm:$0xff]
        %v1801 = vld [vmem:[%s1799 + $0x8] sm:$0xff]
        %v1802 = vld [vmem:[%s1799 + $0x10] sm:$0xff]
        %v1803 = vld [vmem:[%s1799 + $0x18] sm:$0xff]
        %s1804 = scalar_lea.vmem %s10, 5
        %v1805 = vld [vmem:[%s1804] sm:$0x1]
        %v1807 = vperm.slane %v1805, 0
        %1809 = vmatpush.msra.mxu0 0.0
        %1810 = vmatpush.msra.mxu0 0.0
        %1811 = vmatpush.msra.mxu0 0.0
        %1812 = vmatpush.msra.mxu0 0.0
        %1813 = vmatpush.msra.mxu0 0.0
        %1814 = vmatpush.msra.mxu0 0.0
        %1815 = vmatpush.msra.mxu0 0.0
        %1816 = vmatpush.msra.mxu0 0.0
        %1817 = vmatpush.msra.mxu0 0.0
        %1818 = vmatpush.msra.mxu0 0.0
        %1819 = vmatpush.msra.mxu0 0.0
        %1820 = vmatpush.msra.mxu0 0.0
        %1821 = vmatpush.msra.mxu0 %v1803
        %1822 = vmatpush.msra.mxu0 %v1802
        %1823 = vmatpush.msra.mxu0 %v1801
        %1824 = vmatpush.msra.mxu0 %v1800
        %1825 = vmatmul.f32.gmra.mxu0 %v1568
        %v1826 = vpop.f32.mrf.mxu0
        %v1827 = vadd.f32 %v1807, %v1826
        %1828 = vdwg.mxu0
        %v1830 = vsel %vm759, %v1767, 0
        %v1833 = vsel %vm759, %v1797, 0
        %1835 = vmatpush.xpose.msra.mxu0 0.0
        %1836 = vmatpush.xpose.msra.mxu0 0.0
        %1837 = vmatpush.xpose.msra.mxu0 0.0
        %1838 = vmatpush.xpose.msra.mxu0 0.0
        %1839 = vmatpush.xpose.msra.mxu0 0.0
        %1840 = vmatpush.xpose.msra.mxu0 0.0
        %1841 = vmatpush.xpose.msra.mxu0 0.0
        %1842 = vmatpush.xpose.msra.mxu0 0.0
        %1843 = vmatpush.xpose.msra.mxu0 0.0
        %1844 = vmatpush.xpose.msra.mxu0 0.0
        %1845 = vmatpush.xpose.msra.mxu0 0.0
        %1846 = vmatpush.xpose.msra.mxu0 0.0
        %1847 = vmatpush.xpose.msra.mxu0 0.0
        %1848 = vmatpush.xpose.msra.mxu0 0.0
        %1849 = vmatpush.xpose.msra.mxu0 0.0
        %1850 = vmatpush.xpose.msra.mxu0 %v1833
        %1851 = vmatmul.f32.gmra.mxu0 %v1830
        %v1852 = vpop.f32.mrf.mxu0
        %v1853 = vadd.f32 0.0, %v1852
        %1854 = vdwg.mxu0
        %v1855 = vsel %vm759, %v1853, -inf
        %1856 = vmax.xlane.f32.xlu0 %v1855
        %v1857 = vpop.xlane.xlu0 %1856
        %v1858 = vsub.f32 %v1853, %v1857
        %v1859 = vmul.f32 %v1858, 1.442695
        %v1860 = vpow.pop %v1859
        %v1861 = vsel %vm759, %v1860, 0.0
        %1862 = vadd.xlane.f32.xlu0 %v1861
        %v1863 = vpop.xlane.xlu0 %1862
        %v1864 = vrcp.pop %v1863
        %v1865 = vmul.f32 %v1860, %v1864
        %v1867 = vsel %vm759, %v1865, 0
        %1869 = vmatpush.msra.mxu0 0.0
        %1870 = vmatpush.msra.mxu0 0.0
        %1871 = vmatpush.msra.mxu0 0.0
        %1872 = vmatpush.msra.mxu0 0.0
        %1873 = vmatpush.msra.mxu0 0.0
        %1874 = vmatpush.msra.mxu0 0.0
        %1875 = vmatpush.msra.mxu0 0.0
        %1876 = vmatpush.msra.mxu0 0.0
        %1877 = vmatpush.msra.mxu0 0.0
        %1878 = vmatpush.msra.mxu0 0.0
        %1879 = vmatpush.msra.mxu0 0.0
        %1880 = vmatpush.msra.mxu0 0.0
        %1881 = vmatpush.msra.mxu0 0.0
        %1882 = vmatpush.msra.mxu0 0.0
        %1883 = vmatpush.msra.mxu0 0.0
        %1884 = vmatpush.msra.mxu0 %v1827
        %1885 = vmatmul.f32.gmra.mxu0 %v1867
        %v1886 = vpop.f32.mrf.mxu0
        %v1887 = vadd.f32 0.0, %v1886
        %1888 = vdwg.mxu0
        %s1889 = scalar_lea.vmem %s11, 40
        %v1890 = vld [vmem:[%s1889] sm:$0xff]
        %v1892 = vsel %vm759, %v1887, 0
        %1894 = vmatpush.msra.mxu0 0.0
        %1895 = vmatpush.msra.mxu0 0.0
        %1896 = vmatpush.msra.mxu0 0.0
        %1897 = vmatpush.msra.mxu0 0.0
        %1898 = vmatpush.msra.mxu0 0.0
        %1899 = vmatpush.msra.mxu0 0.0
        %1900 = vmatpush.msra.mxu0 0.0
        %1901 = vmatpush.msra.mxu0 0.0
        %1902 = vmatpush.msra.mxu0 0.0
        %1903 = vmatpush.msra.mxu0 0.0
        %1904 = vmatpush.msra.mxu0 0.0
        %1905 = vmatpush.msra.mxu0 0.0
        %1906 = vmatpush.msra.mxu0 0.0
        %1907 = vmatpush.msra.mxu0 0.0
        %1908 = vmatpush.msra.mxu0 0.0
        %1909 = vmatpush.msra.mxu0 %v1890
        %1910 = vmatmul.f32.gmra.mxu0 %v1892
        %v1911 = vpop.f32.mrf.mxu0
        %v1912 = vadd.f32 0.0, %v1911
        %1913 = vdwg.mxu0
        %v1914 = vadd.f32 %v1738, %v1912
        %s1915 = scalar_lea.vmem %s5, 192
        %v1916 = vld [vmem:[%s1915] sm:$0xff]
        %v1917 = vld [vmem:[%s1915 + $0x8] sm:$0xff]
        %v1918 = vld [vmem:[%s1915 + $0x10] sm:$0xff]
        %v1919 = vld [vmem:[%s1915 + $0x18] sm:$0xff]
        %s1920 = scalar_lea.vmem %s6, 6
        %v1921 = vld [vmem:[%s1920] sm:$0x1]
        %v1923 = vperm.slane %v1921, 0
        %1925 = vmatpush.msra.mxu0 0.0
        %1926 = vmatpush.msra.mxu0 0.0
        %1927 = vmatpush.msra.mxu0 0.0
        %1928 = vmatpush.msra.mxu0 0.0
        %1929 = vmatpush.msra.mxu0 0.0
        %1930 = vmatpush.msra.mxu0 0.0
        %1931 = vmatpush.msra.mxu0 0.0
        %1932 = vmatpush.msra.mxu0 0.0
        %1933 = vmatpush.msra.mxu0 0.0
        %1934 = vmatpush.msra.mxu0 0.0
        %1935 = vmatpush.msra.mxu0 0.0
        %1936 = vmatpush.msra.mxu0 0.0
        %1937 = vmatpush.msra.mxu0 %v1919
        %1938 = vmatpush.msra.mxu0 %v1918
        %1939 = vmatpush.msra.mxu0 %v1917
        %1940 = vmatpush.msra.mxu0 %v1916
        %1941 = vmatmul.f32.gmra.mxu0 %v1568
        %v1942 = vpop.f32.mrf.mxu0
        %v1943 = vadd.f32 %v1923, %v1942
        %1944 = vdwg.mxu0
        %s1945 = scalar_lea.vmem %s7, 192
        %v1946 = vld [vmem:[%s1945] sm:$0xff]
        %v1947 = vld [vmem:[%s1945 + $0x8] sm:$0xff]
        %v1948 = vld [vmem:[%s1945 + $0x10] sm:$0xff]
        %v1949 = vld [vmem:[%s1945 + $0x18] sm:$0xff]
        %s1950 = scalar_lea.vmem %s8, 6
        %v1951 = vld [vmem:[%s1950] sm:$0x1]
        %v1953 = vperm.slane %v1951, 0
        %1955 = vmatpush.msra.mxu0 0.0
        %1956 = vmatpush.msra.mxu0 0.0
        %1957 = vmatpush.msra.mxu0 0.0
        %1958 = vmatpush.msra.mxu0 0.0
        %1959 = vmatpush.msra.mxu0 0.0
        %1960 = vmatpush.msra.mxu0 0.0
        %1961 = vmatpush.msra.mxu0 0.0
        %1962 = vmatpush.msra.mxu0 0.0
        %1963 = vmatpush.msra.mxu0 0.0
        %1964 = vmatpush.msra.mxu0 0.0
        %1965 = vmatpush.msra.mxu0 0.0
        %1966 = vmatpush.msra.mxu0 0.0
        %1967 = vmatpush.msra.mxu0 %v1949
        %1968 = vmatpush.msra.mxu0 %v1948
        %1969 = vmatpush.msra.mxu0 %v1947
        %1970 = vmatpush.msra.mxu0 %v1946
        %1971 = vmatmul.f32.gmra.mxu0 %v1568
        %v1972 = vpop.f32.mrf.mxu0
        %v1973 = vadd.f32 %v1953, %v1972
        %1974 = vdwg.mxu0
        %s1975 = scalar_lea.vmem %s9, 192
        %v1976 = vld [vmem:[%s1975] sm:$0xff]
        %v1977 = vld [vmem:[%s1975 + $0x8] sm:$0xff]
        %v1978 = vld [vmem:[%s1975 + $0x10] sm:$0xff]
        %v1979 = vld [vmem:[%s1975 + $0x18] sm:$0xff]
        %s1980 = scalar_lea.vmem %s10, 6
        %v1981 = vld [vmem:[%s1980] sm:$0x1]
        %v1983 = vperm.slane %v1981, 0
        %1985 = vmatpush.msra.mxu0 0.0
        %1986 = vmatpush.msra.mxu0 0.0
        %1987 = vmatpush.msra.mxu0 0.0
        %1988 = vmatpush.msra.mxu0 0.0
        %1989 = vmatpush.msra.mxu0 0.0
        %1990 = vmatpush.msra.mxu0 0.0
        %1991 = vmatpush.msra.mxu0 0.0
        %1992 = vmatpush.msra.mxu0 0.0
        %1993 = vmatpush.msra.mxu0 0.0
        %1994 = vmatpush.msra.mxu0 0.0
        %1995 = vmatpush.msra.mxu0 0.0
        %1996 = vmatpush.msra.mxu0 0.0
        %1997 = vmatpush.msra.mxu0 %v1979
        %1998 = vmatpush.msra.mxu0 %v1978
        %1999 = vmatpush.msra.mxu0 %v1977
        %2000 = vmatpush.msra.mxu0 %v1976
        %2001 = vmatmul.f32.gmra.mxu0 %v1568
        %v2002 = vpop.f32.mrf.mxu0
        %v2003 = vadd.f32 %v1983, %v2002
        %2004 = vdwg.mxu0
        %v2006 = vsel %vm759, %v1943, 0
        %v2009 = vsel %vm759, %v1973, 0
        %2011 = vmatpush.xpose.msra.mxu0 0.0
        %2012 = vmatpush.xpose.msra.mxu0 0.0
        %2013 = vmatpush.xpose.msra.mxu0 0.0
        %2014 = vmatpush.xpose.msra.mxu0 0.0
        %2015 = vmatpush.xpose.msra.mxu0 0.0
        %2016 = vmatpush.xpose.msra.mxu0 0.0
        %2017 = vmatpush.xpose.msra.mxu0 0.0
        %2018 = vmatpush.xpose.msra.mxu0 0.0
        %2019 = vmatpush.xpose.msra.mxu0 0.0
        %2020 = vmatpush.xpose.msra.mxu0 0.0
        %2021 = vmatpush.xpose.msra.mxu0 0.0
        %2022 = vmatpush.xpose.msra.mxu0 0.0
        %2023 = vmatpush.xpose.msra.mxu0 0.0
        %2024 = vmatpush.xpose.msra.mxu0 0.0
        %2025 = vmatpush.xpose.msra.mxu0 0.0
        %2026 = vmatpush.xpose.msra.mxu0 %v2009
        %2027 = vmatmul.f32.gmra.mxu0 %v2006
        %v2028 = vpop.f32.mrf.mxu0
        %v2029 = vadd.f32 0.0, %v2028
        %2030 = vdwg.mxu0
        %v2031 = vsel %vm759, %v2029, -inf
        %2032 = vmax.xlane.f32.xlu0 %v2031
        %v2033 = vpop.xlane.xlu0 %2032
        %v2034 = vsub.f32 %v2029, %v2033
        %v2035 = vmul.f32 %v2034, 1.442695
        %v2036 = vpow.pop %v2035
        %v2037 = vsel %vm759, %v2036, 0.0
        %2038 = vadd.xlane.f32.xlu0 %v2037
        %v2039 = vpop.xlane.xlu0 %2038
        %v2040 = vrcp.pop %v2039
        %v2041 = vmul.f32 %v2036, %v2040
        %v2043 = vsel %vm759, %v2041, 0
        %2045 = vmatpush.msra.mxu0 0.0
        %2046 = vmatpush.msra.mxu0 0.0
        %2047 = vmatpush.msra.mxu0 0.0
        %2048 = vmatpush.msra.mxu0 0.0
        %2049 = vmatpush.msra.mxu0 0.0
        %2050 = vmatpush.msra.mxu0 0.0
        %2051 = vmatpush.msra.mxu0 0.0
        %2052 = vmatpush.msra.mxu0 0.0
        %2053 = vmatpush.msra.mxu0 0.0
        %2054 = vmatpush.msra.mxu0 0.0
        %2055 = vmatpush.msra.mxu0 0.0
        %2056 = vmatpush.msra.mxu0 0.0
        %2057 = vmatpush.msra.mxu0 0.0
        %2058 = vmatpush.msra.mxu0 0.0
        %2059 = vmatpush.msra.mxu0 0.0
        %2060 = vmatpush.msra.mxu0 %v2003
        %2061 = vmatmul.f32.gmra.mxu0 %v2043
        %v2062 = vpop.f32.mrf.mxu0
        %v2063 = vadd.f32 0.0, %v2062
        %2064 = vdwg.mxu0
        %s2065 = scalar_lea.vmem %s11, 48
        %v2066 = vld [vmem:[%s2065] sm:$0xff]
        %v2068 = vsel %vm759, %v2063, 0
        %2070 = vmatpush.msra.mxu0 0.0
        %2071 = vmatpush.msra.mxu0 0.0
        %2072 = vmatpush.msra.mxu0 0.0
        %2073 = vmatpush.msra.mxu0 0.0
        %2074 = vmatpush.msra.mxu0 0.0
        %2075 = vmatpush.msra.mxu0 0.0
        %2076 = vmatpush.msra.mxu0 0.0
        %2077 = vmatpush.msra.mxu0 0.0
        %2078 = vmatpush.msra.mxu0 0.0
        %2079 = vmatpush.msra.mxu0 0.0
        %2080 = vmatpush.msra.mxu0 0.0
        %2081 = vmatpush.msra.mxu0 0.0
        %2082 = vmatpush.msra.mxu0 0.0
        %2083 = vmatpush.msra.mxu0 0.0
        %2084 = vmatpush.msra.mxu0 0.0
        %2085 = vmatpush.msra.mxu0 %v2066
        %2086 = vmatmul.f32.gmra.mxu0 %v2068
        %v2087 = vpop.f32.mrf.mxu0
        %v2088 = vadd.f32 0.0, %v2087
        %2089 = vdwg.mxu0
        %v2090 = vadd.f32 %v1914, %v2088
        %s2091 = scalar_lea.vmem %s5, 224
        %v2092 = vld [vmem:[%s2091] sm:$0xff]
        %v2093 = vld [vmem:[%s2091 + $0x8] sm:$0xff]
        %v2094 = vld [vmem:[%s2091 + $0x10] sm:$0xff]
        %v2095 = vld [vmem:[%s2091 + $0x18] sm:$0xff]
        %s2096 = scalar_lea.vmem %s6, 7
        %v2097 = vld [vmem:[%s2096] sm:$0x1]
        %v2099 = vperm.slane %v2097, 0
        %2101 = vmatpush.msra.mxu0 0.0
        %2102 = vmatpush.msra.mxu0 0.0
        %2103 = vmatpush.msra.mxu0 0.0
        %2104 = vmatpush.msra.mxu0 0.0
        %2105 = vmatpush.msra.mxu0 0.0
        %2106 = vmatpush.msra.mxu0 0.0
        %2107 = vmatpush.msra.mxu0 0.0
        %2108 = vmatpush.msra.mxu0 0.0
        %2109 = vmatpush.msra.mxu0 0.0
        %2110 = vmatpush.msra.mxu0 0.0
        %2111 = vmatpush.msra.mxu0 0.0
        %2112 = vmatpush.msra.mxu0 0.0
        %2113 = vmatpush.msra.mxu0 %v2095
        %2114 = vmatpush.msra.mxu0 %v2094
        %2115 = vmatpush.msra.mxu0 %v2093
        %2116 = vmatpush.msra.mxu0 %v2092
        %2117 = vmatmul.f32.gmra.mxu0 %v1568
        %v2118 = vpop.f32.mrf.mxu0
        %v2119 = vadd.f32 %v2099, %v2118
        %2120 = vdwg.mxu0
        %s2121 = scalar_lea.vmem %s7, 224
        %v2122 = vld [vmem:[%s2121] sm:$0xff]
        %v2123 = vld [vmem:[%s2121 + $0x8] sm:$0xff]
        %v2124 = vld [vmem:[%s2121 + $0x10] sm:$0xff]
        %v2125 = vld [vmem:[%s2121 + $0x18] sm:$0xff]
        %s2126 = scalar_lea.vmem %s8, 7
        %v2127 = vld [vmem:[%s2126] sm:$0x1]
        %v2129 = vperm.slane %v2127, 0
        %2131 = vmatpush.msra.mxu0 0.0
        %2132 = vmatpush.msra.mxu0 0.0
        %2133 = vmatpush.msra.mxu0 0.0
        %2134 = vmatpush.msra.mxu0 0.0
        %2135 = vmatpush.msra.mxu0 0.0
        %2136 = vmatpush.msra.mxu0 0.0
        %2137 = vmatpush.msra.mxu0 0.0
        %2138 = vmatpush.msra.mxu0 0.0
        %2139 = vmatpush.msra.mxu0 0.0
        %2140 = vmatpush.msra.mxu0 0.0
        %2141 = vmatpush.msra.mxu0 0.0
        %2142 = vmatpush.msra.mxu0 0.0
        %2143 = vmatpush.msra.mxu0 %v2125
        %2144 = vmatpush.msra.mxu0 %v2124
        %2145 = vmatpush.msra.mxu0 %v2123
        %2146 = vmatpush.msra.mxu0 %v2122
        %2147 = vmatmul.f32.gmra.mxu0 %v1568
        %v2148 = vpop.f32.mrf.mxu0
        %v2149 = vadd.f32 %v2129, %v2148
        %2150 = vdwg.mxu0
        %s2151 = scalar_lea.vmem %s9, 224
        %v2152 = vld [vmem:[%s2151] sm:$0xff]
        %v2153 = vld [vmem:[%s2151 + $0x8] sm:$0xff]
        %v2154 = vld [vmem:[%s2151 + $0x10] sm:$0xff]
        %v2155 = vld [vmem:[%s2151 + $0x18] sm:$0xff]
        %s2156 = scalar_lea.vmem %s10, 7
        %v2157 = vld [vmem:[%s2156] sm:$0x1]
        %v2159 = vperm.slane %v2157, 0
        %2161 = vmatpush.msra.mxu0 0.0
        %2162 = vmatpush.msra.mxu0 0.0
        %2163 = vmatpush.msra.mxu0 0.0
        %2164 = vmatpush.msra.mxu0 0.0
        %2165 = vmatpush.msra.mxu0 0.0
        %2166 = vmatpush.msra.mxu0 0.0
        %2167 = vmatpush.msra.mxu0 0.0
        %2168 = vmatpush.msra.mxu0 0.0
        %2169 = vmatpush.msra.mxu0 0.0
        %2170 = vmatpush.msra.mxu0 0.0
        %2171 = vmatpush.msra.mxu0 0.0
        %2172 = vmatpush.msra.mxu0 0.0
        %2173 = vmatpush.msra.mxu0 %v2155
        %2174 = vmatpush.msra.mxu0 %v2154
        %2175 = vmatpush.msra.mxu0 %v2153
        %2176 = vmatpush.msra.mxu0 %v2152
        %2177 = vmatmul.f32.gmra.mxu0 %v1568
        %v2178 = vpop.f32.mrf.mxu0
        %v2179 = vadd.f32 %v2159, %v2178
        %2180 = vdwg.mxu0
        %v2182 = vsel %vm759, %v2119, 0
        %v2185 = vsel %vm759, %v2149, 0
        %2187 = vmatpush.xpose.msra.mxu0 0.0
        %2188 = vmatpush.xpose.msra.mxu0 0.0
        %2189 = vmatpush.xpose.msra.mxu0 0.0
        %2190 = vmatpush.xpose.msra.mxu0 0.0
        %2191 = vmatpush.xpose.msra.mxu0 0.0
        %2192 = vmatpush.xpose.msra.mxu0 0.0
        %2193 = vmatpush.xpose.msra.mxu0 0.0
        %2194 = vmatpush.xpose.msra.mxu0 0.0
        %2195 = vmatpush.xpose.msra.mxu0 0.0
        %2196 = vmatpush.xpose.msra.mxu0 0.0
        %2197 = vmatpush.xpose.msra.mxu0 0.0
        %2198 = vmatpush.xpose.msra.mxu0 0.0
        %2199 = vmatpush.xpose.msra.mxu0 0.0
        %2200 = vmatpush.xpose.msra.mxu0 0.0
        %2201 = vmatpush.xpose.msra.mxu0 0.0
        %2202 = vmatpush.xpose.msra.mxu0 %v2185
        %2203 = vmatmul.f32.gmra.mxu0 %v2182
        %v2204 = vpop.f32.mrf.mxu0
        %v2205 = vadd.f32 0.0, %v2204
        %2206 = vdwg.mxu0
        %v2207 = vsel %vm759, %v2205, -inf
        %2208 = vmax.xlane.f32.xlu0 %v2207
        %v2209 = vpop.xlane.xlu0 %2208
        %v2210 = vsub.f32 %v2205, %v2209
        %v2211 = vmul.f32 %v2210, 1.442695
        %v2212 = vpow.pop %v2211
        %v2213 = vsel %vm759, %v2212, 0.0
        %2214 = vadd.xlane.f32.xlu0 %v2213
        %v2215 = vpop.xlane.xlu0 %2214
        %v2216 = vrcp.pop %v2215
        %v2217 = vmul.f32 %v2212, %v2216
        %v2219 = vsel %vm759, %v2217, 0
        %2221 = vmatpush.msra.mxu0 0.0
        %2222 = vmatpush.msra.mxu0 0.0
        %2223 = vmatpush.msra.mxu0 0.0
        %2224 = vmatpush.msra.mxu0 0.0
        %2225 = vmatpush.msra.mxu0 0.0
        %2226 = vmatpush.msra.mxu0 0.0
        %2227 = vmatpush.msra.mxu0 0.0
        %2228 = vmatpush.msra.mxu0 0.0
        %2229 = vmatpush.msra.mxu0 0.0
        %2230 = vmatpush.msra.mxu0 0.0
        %2231 = vmatpush.msra.mxu0 0.0
        %2232 = vmatpush.msra.mxu0 0.0
        %2233 = vmatpush.msra.mxu0 0.0
        %2234 = vmatpush.msra.mxu0 0.0
        %2235 = vmatpush.msra.mxu0 0.0
        %2236 = vmatpush.msra.mxu0 %v2179
        %2237 = vmatmul.f32.gmra.mxu0 %v2219
        %v2238 = vpop.f32.mrf.mxu0
        %v2239 = vadd.f32 0.0, %v2238
        %2240 = vdwg.mxu0
        %s2241 = scalar_lea.vmem %s11, 56
        %v2242 = vld [vmem:[%s2241] sm:$0xff]
        %v2244 = vsel %vm759, %v2239, 0
        %2246 = vmatpush.msra.mxu0 0.0
        %2247 = vmatpush.msra.mxu0 0.0
        %2248 = vmatpush.msra.mxu0 0.0
        %2249 = vmatpush.msra.mxu0 0.0
        %2250 = vmatpush.msra.mxu0 0.0
        %2251 = vmatpush.msra.mxu0 0.0
        %2252 = vmatpush.msra.mxu0 0.0
        %2253 = vmatpush.msra.mxu0 0.0
        %2254 = vmatpush.msra.mxu0 0.0
        %2255 = vmatpush.msra.mxu0 0.0
        %2256 = vmatpush.msra.mxu0 0.0
        %2257 = vmatpush.msra.mxu0 0.0
        %2258 = vmatpush.msra.mxu0 0.0
        %2259 = vmatpush.msra.mxu0 0.0
        %2260 = vmatpush.msra.mxu0 0.0
        %2261 = vmatpush.msra.mxu0 %v2242
        %2262 = vmatmul.f32.gmra.mxu0 %v2244
        %v2263 = vpop.f32.mrf.mxu0
        %v2264 = vadd.f32 0.0, %v2263
        %2265 = vdwg.mxu0
        %v2266 = vadd.f32 %v2090, %v2264
        %v2267 = vadd.f32 %v1520, %v2266
        %s2268 = scalar_lea.vmem %s13, 1
        %v2269 = vld [vmem:[%s2268] sm:$0x1]
        %s2270 = scalar_lea.vmem %s14, 1
        %v2271 = vld [vmem:[%s2270] sm:$0x1]
        %v2272 = vsel %vm601, %v2267, 0.0
        %2273 = vadd.xlane.f32.xlu0 %v2272
        %v2274 = vpop.xlane.xlu0 %2273
        %v2275 = vmul.f32 %v2274, %v611
        %v2276 = vsub.f32 %v2267, %v2275
        %v2277 = vmul.f32 %v2276, %v2276
        %v2278 = vsel %vm601, %v2277, 0.0
        %2279 = vadd.xlane.f32.xlu0 %v2278
        %v2280 = vpop.xlane.xlu0 %2279
        %v2281 = vmul.f32 %v2280, %v611
        %v2282 = vadd.f32 %v2281, 1e-05
        %v2283 = vrsqrt.pop %v2282
        %v2284 = vmul.f32 %v2283, %v2282
        %v2285 = vmul.f32 %v2284, %v2283
        %v2286 = vmul.f32 0.5, %v2285
        %v2287 = vsub.f32 1.5, %v2286
        %v2288 = vmul.f32 %v2283, %v2287
        %vm2289 = vweird.f32 %v2282
        %vm2290 = vweird.f32 %v2283
        %vm2291 = vmor %vm2289, %vm2290
        %v2292 = vsel %vm2291, %v2283, %v2288
        %v2293 = vmul.f32 %v2276, %v2292
        %v2295 = vperm.slane %v2269, 0
        %v2297 = vmul.f32 %v2293, %v2295
        %v2299 = vperm.slane %v2271, 0
        %v2301 = vadd.f32 %v2297, %v2299
        %s2302 = scalar_lea.vmem %s15, 32
        %v2303 = vld [vmem:[%s2302] sm:$0xff]
        %v2304 = vld [vmem:[%s2302 + $0x8] sm:$0xff]
        %v2305 = vld [vmem:[%s2302 + $0x10] sm:$0xff]
        %v2306 = vld [vmem:[%s2302 + $0x18] sm:$0xff]
        %s2307 = scalar_lea.vmem %s16, 1
        %v2308 = vld [vmem:[%s2307] sm:$0x1]
        %v2310 = vperm.slane %v2308, 0
        %v2313 = vsel %vm601, %v2301, 0
        %2315 = vmatpush.msra.mxu0 0.0
        %2316 = vmatpush.msra.mxu0 0.0
        %2317 = vmatpush.msra.mxu0 0.0
        %2318 = vmatpush.msra.mxu0 0.0
        %2319 = vmatpush.msra.mxu0 0.0
        %2320 = vmatpush.msra.mxu0 0.0
        %2321 = vmatpush.msra.mxu0 0.0
        %2322 = vmatpush.msra.mxu0 0.0
        %2323 = vmatpush.msra.mxu0 0.0
        %2324 = vmatpush.msra.mxu0 0.0
        %2325 = vmatpush.msra.mxu0 0.0
        %2326 = vmatpush.msra.mxu0 0.0
        %2327 = vmatpush.msra.mxu0 %v2306
        %2328 = vmatpush.msra.mxu0 %v2305
        %2329 = vmatpush.msra.mxu0 %v2304
        %2330 = vmatpush.msra.mxu0 %v2303
        %2331 = vmatmul.f32.gmra.mxu0 %v2313
        %v2332 = vpop.f32.mrf.mxu0
        %v2333 = vadd.f32 %v2310, %v2332
        %2334 = vdwg.mxu0
        %v2335 = vmul.f32 %v2333, 0.5
        %v2336 = vmul.f32 %v2333, 0.70710677
        %v2337 = vmul.f32 %v2336, %v2336
        %v2338 = vmin.f32 16.0, %v2337
        %v2339 = vmul.f32 %v2338, 2.1237322e-06
        %v2340 = vadd.f32 %v2339, 0.00028619796
        %v2341 = vmul.f32 %v2338, %v2340
        %v2342 = vadd.f32 %v2341, 0.0036580483
        %v2343 = vmul.f32 %v2338, %v2342
        %v2344 = vadd.f32 %v2343, 0.05243302
        %v2345 = vmul.f32 %v2338, %v2344
        %v2346 = vadd.f32 %v2345, 0.18741608
        %v2347 = vmul.f32 %v2338, %v2346
        %v2348 = vadd.f32 %v2347, 1.1283791
        %v2349 = vmul.f32 %v2336, %v2348
        %v2350 = vmul.f32 %v2338, 3.8918573e-05
        %v2351 = vadd.f32 %v2350, 0.001143296
        %v2352 = vmul.f32 %v2338, %v2351
        %v2353 = vadd.f32 %v2352, 0.014752088
        %v2354 = vmul.f32 %v2338, %v2353
        %v2355 = vadd.f32 %v2354, 0.112945676
        %v2356 = vmul.f32 %v2338, %v2355
        %v2357 = vadd.f32 %v2356, 0.4994258
        %v2358 = vmul.f32 %v2338, %v2357
        %v2359 = vadd.f32 %v2358, 1.0
        %v2360 = vrcp.pop %v2359
        %v2361 = vmul.f32 %v2359, %v2360
        %v2362 = vsub.f32 1.0, %v2361
        %v2363 = vmul.f32 %v2360, %v2362
        %v2364 = vadd.f32 %v2360, %v2363
        %vm2365 = vweird.f32 %v2359
        %vm2366 = vweird.f32 %v2360
        %vm2367 = vmor %vm2365, %vm2366
        %v2368 = vsel %vm2367, %v2360, %v2364
        %v2369 = vand.u32 2147483647, %v2359
        %vm2370 = vcmp.eq.f32.partialorder %v2369, 8.507059e+37
        %v2371 = vand.u32 %v2359, 2147483648
        %v2372 = vor.u32 1.1754944e-38, %v2371
        %v2373 = vsel %vm2370, %v2372, %v2368
        %v2374 = vmul.f32 %v2349, %v2373
        %v2375 = vmin.f32 %v2374, 1.0
        %v2376 = vmax.f32 %v2375, -1.0
        %v2377 = vadd.f32 %v2376, 1.0
        %v2378 = vmul.f32 %v2335, %v2377
        %s2379 = scalar_lea.vmem %s17, 64
        %v2380 = vld [vmem:[%s2379] sm:$0xff]
        %v2381 = vld [vmem:[%s2379 + $0x8] sm:$0xff]
        %v2382 = vld [vmem:[%s2379 + $0x10] sm:$0xff]
        %v2383 = vld [vmem:[%s2379 + $0x18] sm:$0xff]
        %v2384 = vld [vmem:[%s2379 + $0x20] sm:$0xff]
        %v2385 = vld [vmem:[%s2379 + $0x28] sm:$0xff]
        %v2386 = vld [vmem:[%s2379 + $0x30] sm:$0xff]
        %v2387 = vld [vmem:[%s2379 + $0x38] sm:$0xff]
        %s2388 = scalar_lea.vmem %s18, 1
        %v2389 = vld [vmem:[%s2388] sm:$0x1]
        %v2391 = vperm.slane %v2389, 0
        %v2394 = vsel %vm1496, %v2378, 0
        %2396 = vmatpush.msra.mxu0 0.0
        %2397 = vmatpush.msra.mxu0 0.0
        %2398 = vmatpush.msra.mxu0 0.0
        %2399 = vmatpush.msra.mxu0 0.0
        %2400 = vmatpush.msra.mxu0 0.0
        %2401 = vmatpush.msra.mxu0 0.0
        %2402 = vmatpush.msra.mxu0 0.0
        %2403 = vmatpush.msra.mxu0 0.0
        %2404 = vmatpush.msra.mxu0 %v2387
        %2405 = vmatpush.msra.mxu0 %v2386
        %2406 = vmatpush.msra.mxu0 %v2385
        %2407 = vmatpush.msra.mxu0 %v2384
        %2408 = vmatpush.msra.mxu0 %v2383
        %2409 = vmatpush.msra.mxu0 %v2382
        %2410 = vmatpush.msra.mxu0 %v2381
        %2411 = vmatpush.msra.mxu0 %v2380
        %2412 = vmatmul.f32.gmra.mxu0 %v2394
        %v2413 = vpop.f32.mrf.mxu0
        %v2414 = vadd.f32 %v2391, %v2413
        %2415 = vdwg.mxu0
        %v2416 = vadd.f32 %v2267, %v2414
        %2417 = vst.msk [vmem:[%s593] sm:$0xff] %vm601, %v2416
        %s2418 = sand.u32 %s445, 1
        %s2419 = scalar_lea.sflag [#allocation3], %s2418
        %s2420 = sand.u32 %s445, 1
        %s2421 = smul.addr %s2420, 8
        %s2422 = scalar_lea.vmem [#allocation2], %s2421
        // Predicated region
        $region97: #{tpu_custom_call.1} parent=95 // pred_check
          %p2423 = pneg %p455
        $region98: #{tpu_custom_call.1} parent=95 // pred_check_branch
          %2425 = sbr.rel (%p2423) target = $region100
        $region99: #{tpu_custom_call.1} parent=95 // pred_region
          %2427 = vsyncadd %s2419, 0
          %s2428 = smul.addr %s33, 8
          %s2429 = scalar_lea.hbm %s19, %s2428
          %s2431 = sshll.u32 %s2422, 4
          %s2432 = int_to_ptr.vmem [resolvable:$true] %s2431
          %s2433 = sshll.u32 %s2429, 4
          %s2434 = int_to_ptr.hbm [resolvable:$true] %s2433
          %2436 = dma.vmem_to_hbm [thread:$0]  %s2432, 128, %s2434, %s2419
        $region100: #{tpu_custom_call.1} parent=95 // pred_fallthru
          _
      $region96: #{tpu_custom_call.1} parent=5 // pred_fallthru
        _
      %p2437 = scmp.le.s32.totalorder 2, %s28
      // Predicated region
      $region101: #{tpu_custom_call.1} parent=5 // pred_check
        %p2438 = pneg %p2437
      $region102: #{tpu_custom_call.1} parent=5 // pred_check_branch
        %2440 = sbr.rel (%p2438) target = $region104
      $region103: #{tpu_custom_call.1} parent=5 // pred_region
        %s2441 = ssub.s32 %s28, 2
        // Predicated region
        $region105: #{tpu_custom_call.1} parent=103 // pred_check
          %p2442 = pneg %p461
        $region106: #{tpu_custom_call.1} parent=103 // pred_check_branch
          %2444 = sbr.rel (%p2442) target = $region108
        $region107: #{tpu_custom_call.1} parent=103 // pred_region
          %s2445 = sand.u32 %s446, 1
          %s2446 = scalar_lea.sflag [#allocation3], %s2445
          %s2447 = sand.u32 %s446, 1
          %s2448 = smul.addr %s2447, 8
          %s2449 = scalar_lea.vmem [#allocation2], %s2448
          %2451 = dma.done %s2446, 128
        $region108: #{tpu_custom_call.1} parent=103 // pred_fallthru
          _
      $region104: #{tpu_custom_call.1} parent=5 // pred_fallthru
        _
    $region6: #{tpu_custom_call.1} parent=1 // loop_footer
      %s32 = sadd.s32 1, %s28
    $region7: #{tpu_custom_call.1} parent=1 // loop_footer_branch
      %27 = sbr.rel target = $region3
    $region8: #{tpu_custom_call.1} parent=1 // loop_exit
      _
    %2452 = vsyncpa [#allocation3], 1
    %s2453 = scalar_lea.sflag [#allocation3], 1
    %2454 = vsyncpa %s2453, 1

</llo_original>
